<compile_context>
chip_gen: v6e
topology: v6e:2x2x1
jax: 0.10.0
libtpu: 0.0.40
codegen_flags: <defaults>
</compile_context>

<pallas_src>
import jax
import jax.numpy as jnp
from jax import lax
from jax.experimental import pallas as pl
from jax.experimental.pallas import tpu as pltpu


# ------------------------------ fused kernel -------------------------------

def _selfnet_kernel(xp_ref, w1_ref, b1_ref, w2_ref, b2_ref, fw_ref, fb_ref,
                    o_ref):
    """Entire SelfNet forward; all intermediates stay in VMEM/vregs.

    xp_ref: (B, 4, 8, 8, 1)  input split by pool parity: plane p = ph*2 + pw
                             holds x[:, ph::2, pw::2]
    w1_ref: (9, 4)           conv1 weight, row = kh*3 + kw, col = cout
    b1_ref: (1, 4)
    w2_ref: (36, 128)        conv2 weight, row = (kh*3 + kw)*4 + cin
    b2_ref: (1, 128)
    fw_ref: (4, 128, 2)      fc weight regrouped as (pos = hp*2 + wp, c, out)
    fb_ref: (1, 2)
    o_ref : (B, 2)
    """
    B = xp_ref.shape[0]
    xp = xp_ref[...]                       # (B, 4, 8, 8, 1)
    w1 = w1_ref[...]                       # (9, 4)

    # ---- layer 1: conv(1->4) + ReLU + maxpool(2x2), VPU shifted adds ----
    # Conv values are produced grouped by pool sub-pixel (sh, sw); the running
    # max over sub-pixels is the max-pool.  Bias + ReLU are hoisted after the
    # max (they commute with it); the max starts from raw conv values.
    m1 = None
    for sh in range(2):
        for sw in range(2):
            acc = None
            for kh in range(3):
                for kw in range(3):
                    rh, ah = (sh + kh) % 2, (sh + kh) // 2
                    rw, aw = (sw + kw) % 2, (sw + kw) // 2
                    slab = xp[:, rh * 2 + rw, ah:ah + 7, aw:aw + 7, :]  # (B,7,7,1)
                    term = slab * w1[kh * 3 + kw, :]                    # (B,7,7,4)
                    acc = term if acc is None else acc + term
            m1 = acc if m1 is None else jnp.maximum(m1, acc)
    p1 = jnp.maximum(m1 + b1_ref[...], 0.0)        # (B, 7, 7, 4), VMEM-resident

    # ---- layer 2: conv(4->128) + ReLU + maxpool(2x2), ONE MXU matmul ----
    # Only conv positions (ho, wo) in [0,4)^2 feed the 2x2 pool.  Build im2col
    # patches in-VMEM; M folds batch and all conv positions (row = b*16+ho*4+wo).
    rows = []
    for b in range(B):
        for ho in range(4):
            taps = [p1[b, ho + kh, kw:kw + 4, :]            # (4, 4): (wo, cin)
                    for kh in range(3) for kw in range(3)]
            rows.append(jnp.concatenate(taps, axis=-1))     # (4, 36)
    pat2 = jnp.concatenate(rows, axis=0)                    # (B*16, 36)
    y2 = jnp.dot(pat2, w2_ref[...],
                 preferred_element_type=jnp.float32)        # (B*16, 128)

    # max-pool 2x2 over the 4x4 conv grid; output rows ordered pos-major,
    # batch-minor (row = (hp*2 + wp)*B + b) so the fc below slices contiguously.
    pooled = []
    for hp in range(2):
        for wp in range(2):
            for b in range(B):
                base = b * 16 + hp * 8 + wp * 2
                blk = jnp.maximum(
                    jnp.maximum(y2[base:base + 1], y2[base + 1:base + 2]),
                    jnp.maximum(y2[base + 4:base + 5], y2[base + 5:base + 6]))
                pooled.append(blk)                          # (1, 128)
    p2 = jnp.concatenate(pooled, axis=0)                    # (4*B, 128)
    p2 = jnp.maximum(p2 + b2_ref[...], 0.0)                 # bias+ReLU after pool

    # ---- fc: (B,512) @ (512,2) as 4 accumulated (B,128)@(128,2) dots ----
    acc = None
    for pos in range(4):
        part = jnp.dot(p2[pos * B:(pos + 1) * B, :], fw_ref[pos],
                       preferred_element_type=jnp.float32)  # (B, 2)
        acc = part if acc is None else acc + part
    o_ref[...] = acc + fb_ref[...]


def selfnet_forward_pallas(x_nchw, params):
    """SelfNet.forward (bn=False, 'relu') as one fused Pallas kernel call.

    x_nchw: (B, 1, 16, 16), params in PyTorch layouts (OIHW conv weights,
    (out_features, in_features) fc weight with (C,H,W) flatten order).
    """
    B, Cin, H, W = x_nchw.shape
    assert (Cin, H, W) == (1, 16, 16), "kernel specialized to 1x16x16 inputs"
    (W1, b1), (W2, b2) = params["conv"]
    FW, FB = params["fc"]

    # Host-side layout prep: pure repacking (no expansion), runs once in XLA.
    x = x_nchw[:, 0]                                          # (B, 16, 16)
    xp = (x.reshape(B, 8, 2, 8, 2)
            .transpose(0, 2, 4, 1, 3)                         # (B, ph, pw, i, j)
            .reshape(B, 4, 8, 8)[..., None])                  # (B, 4, 8, 8, 1)
    w1k = jnp.transpose(W1, (2, 3, 1, 0)).reshape(9, 4)       # (kh*3+kw, cout)
    w2k = jnp.transpose(W2, (2, 3, 1, 0)).reshape(36, 128)    # ((kh*3+kw)*4+ci, co)
    # PyTorch flattens (C, H, W); regroup fc rows as (pos = hp*2+wp, c, out).
    fwk = FW.reshape(2, 128, 4).transpose(2, 1, 0)            # (4, 128, 2)

    return pl.pallas_call(
        _selfnet_kernel,
        out_shape=jax.ShapeDtypeStruct((B, 2), jnp.float32),
        grid=(1,),
        in_specs=[
            pl.BlockSpec((B, 4, 8, 8, 1), lambda i: (0, 0, 0, 0, 0)),
            pl.BlockSpec((9, 4), lambda i: (0, 0)),
            pl.BlockSpec((1, 4), lambda i: (0, 0)),
            pl.BlockSpec((36, 128), lambda i: (0, 0)),
            pl.BlockSpec((1, 128), lambda i: (0, 0)),
            pl.BlockSpec((4, 128, 2), lambda i: (0, 0, 0)),
            pl.BlockSpec((1, 2), lambda i: (0, 0)),
        ],
        out_specs=pl.BlockSpec((B, 2), lambda i: (0, 0)),
        compiler_params=pltpu.CompilerParams(
            dimension_semantics=("arbitrary",)),
    )(xp, w1k, b1.reshape(1, 4), w2k, b2.reshape(1, 128), fwk, FB.reshape(1, 2))


# ------------------------- params + pure-JAX reference ----------------------

def init_selfnet_params(key):
    """Synthetic parameters in PyTorch-native layouts."""
    k = jax.random.split(key, 6)
    w1 = 0.20 * jax.random.normal(k[0], (4, 1, 3, 3), jnp.float32)     # OIHW
    b1 = 0.01 * jax.random.normal(k[1], (4,), jnp.float32)
    w2 = 0.05 * jax.random.normal(k[2], (128, 4, 3, 3), jnp.float32)   # OIHW
    b2 = 0.01 * jax.random.normal(k[3], (128,), jnp.float32)
    fw = 0.04 * jax.random.normal(k[4], (2, 512), jnp.float32)         # (out, in)
    fb = 0.04 * jax.random.normal(k[5], (2,), jnp.float32)
    return {"conv": [(w1, b1), (w2, b2)], "fc": (fw, fb)}


def selfnet_reference(x_nchw, params):
    """Pure-JAX (XLA) reference mirroring the PyTorch module exactly."""
    y = x_nchw
    for (w_oihw, b) in params["conv"]:
        y = lax.conv_general_dilated(
            y, w_oihw, window_strides=(1, 1), padding="VALID",
            rhs_dilation=(1, 1),
            dimension_numbers=("NCHW", "OIHW", "NCHW"),
            precision=lax.Precision.HIGHEST)
        y = jnp.maximum(y + b.reshape(1, -1, 1, 1), 0.0)
        y = lax.reduce_window(y, -jnp.inf, lax.max,
                              (1, 1, 2, 2), (1, 1, 2, 2), "VALID")
    flat = y.reshape(y.shape[0], -1)           # PyTorch (C, H, W) flatten order
    fw, fb = params["fc"]
    return jnp.dot(flat, fw.T, precision=lax.Precision.HIGHEST) + fb


# ----------------------------------- main -----------------------------------

if __name__ == "__main__":
    B = 2
    key = jax.random.PRNGKey(0)
    kx, kp = jax.random.split(key)
    x_nchw = jax.random.normal(kx, (B, 1, 16, 16), jnp.float32)
    params = init_selfnet_params(kp)

    out = jax.block_until_ready(jax.jit(selfnet_forward_pallas)(x_nchw, params))
    ref = jax.block_until_ready(selfnet_reference(x_nchw, params))

    assert out.shape == (B, 2), out.shape
    max_err = float(jnp.max(jnp.abs(out - ref)))
    assert max_err < 1e-2, f"mismatch vs reference: {max_err}"
    print("KERNEL_OK")
</pallas_src>

<mosaic_0001>
module attributes {stable_mosaic.version = 11 : i64} {
  func.func @_selfnet_kernel(%arg0: i32, %arg1: memref<2x4x8x8x1xf32, #tpu.memory_space<vmem>>, %arg2: memref<9x4xf32, #tpu.memory_space<vmem>>, %arg3: memref<1x4xf32, #tpu.memory_space<vmem>>, %arg4: memref<36x128xf32, #tpu.memory_space<vmem>>, %arg5: memref<1x128xf32, #tpu.memory_space<vmem>>, %arg6: memref<4x128x2xf32, #tpu.memory_space<vmem>>, %arg7: memref<1x2xf32, #tpu.memory_space<vmem>>, %arg8: memref<2x2xf32, #tpu.memory_space<vmem>>) attributes {dimension_semantics = [#tpu.dimension_semantics<arbitrary>], iteration_bounds = array<i64: 1>, scalar_prefetch = 0 : i64, scratch_operands = 0 : i64, tpu.core_type = #tpu.core_type<tc>, window_params = [{pipeline_mode = #tpu.pipeline_mode<synchronous>, transform_indices = @transform_0, window_bounds = array<i64: 2, 4, 8, 8, 1>}, {pipeline_mode = #tpu.pipeline_mode<synchronous>, transform_indices = @transform_1, window_bounds = array<i64: 9, 4>}, {pipeline_mode = #tpu.pipeline_mode<synchronous>, transform_indices = @transform_2, window_bounds = array<i64: 1, 4>}, {pipeline_mode = #tpu.pipeline_mode<synchronous>, transform_indices = @transform_3, window_bounds = array<i64: 36, 128>}, {pipeline_mode = #tpu.pipeline_mode<synchronous>, transform_indices = @transform_4, window_bounds = array<i64: 1, 128>}, {pipeline_mode = #tpu.pipeline_mode<synchronous>, transform_indices = @transform_5, window_bounds = array<i64: 4, 128, 2>}, {pipeline_mode = #tpu.pipeline_mode<synchronous>, transform_indices = @transform_6, window_bounds = array<i64: 1, 2>}, {pipeline_mode = #tpu.pipeline_mode<synchronous>, transform_indices = @transform_7, window_bounds = array<i64: 2, 2>}]} {
    %c0 = arith.constant 0 : index
    %c0_0 = arith.constant 0 : index
    %c0_1 = arith.constant 0 : index
    %c0_2 = arith.constant 0 : index
    %c0_3 = arith.constant 0 : index
    %0 = vector.load %arg1[%c0, %c0_0, %c0_1, %c0_2, %c0_3] : memref<2x4x8x8x1xf32, #tpu.memory_space<vmem>>, vector<2x4x8x8x1xf32>
    %c0_4 = arith.constant 0 : index
    %c0_5 = arith.constant 0 : index
    %1 = vector.load %arg2[%c0_4, %c0_5] : memref<9x4xf32, #tpu.memory_space<vmem>>, vector<9x4xf32>
    %2 = vector.extract_strided_slice %0 {offsets = [0, 0, 0, 0, 0], sizes = [2, 1, 7, 7, 1], strides = [1, 1, 1, 1, 1]} : vector<2x4x8x8x1xf32> to vector<2x1x7x7x1xf32>
    %3 = vector.shape_cast %2 : vector<2x1x7x7x1xf32> to vector<2x7x7x1xf32>
    %4 = vector.extract_strided_slice %1 {offsets = [0, 0], sizes = [1, 4], strides = [1, 1]} : vector<9x4xf32> to vector<1x4xf32>
    %5 = vector.shape_cast %4 : vector<1x4xf32> to vector<4xf32>
    %6 = vector.shape_cast %5 : vector<4xf32> to vector<1x1x1x4xf32>
    %7 = vector.broadcast %3 : vector<2x7x7x1xf32> to vector<2x7x7x4xf32>
    %8 = vector.broadcast %6 : vector<1x1x1x4xf32> to vector<2x7x7x4xf32>
    %9 = arith.mulf %7, %8 : vector<2x7x7x4xf32>
    %10 = vector.extract_strided_slice %0 {offsets = [0, 1, 0, 0, 0], sizes = [2, 1, 7, 7, 1], strides = [1, 1, 1, 1, 1]} : vector<2x4x8x8x1xf32> to vector<2x1x7x7x1xf32>
    %11 = vector.shape_cast %10 : vector<2x1x7x7x1xf32> to vector<2x7x7x1xf32>
    %12 = vector.extract_strided_slice %1 {offsets = [1, 0], sizes = [1, 4], strides = [1, 1]} : vector<9x4xf32> to vector<1x4xf32>
    %13 = vector.shape_cast %12 : vector<1x4xf32> to vector<4xf32>
    %14 = vector.shape_cast %13 : vector<4xf32> to vector<1x1x1x4xf32>
    %15 = vector.broadcast %11 : vector<2x7x7x1xf32> to vector<2x7x7x4xf32>
    %16 = vector.broadcast %14 : vector<1x1x1x4xf32> to vector<2x7x7x4xf32>
    %17 = arith.mulf %15, %16 : vector<2x7x7x4xf32>
    %18 = arith.addf %9, %17 : vector<2x7x7x4xf32>
    %19 = vector.extract_strided_slice %0 {offsets = [0, 0, 0, 1, 0], sizes = [2, 1, 7, 7, 1], strides = [1, 1, 1, 1, 1]} : vector<2x4x8x8x1xf32> to vector<2x1x7x7x1xf32>
    %20 = vector.shape_cast %19 : vector<2x1x7x7x1xf32> to vector<2x7x7x1xf32>
    %21 = vector.extract_strided_slice %1 {offsets = [2, 0], sizes = [1, 4], strides = [1, 1]} : vector<9x4xf32> to vector<1x4xf32>
    %22 = vector.shape_cast %21 : vector<1x4xf32> to vector<4xf32>
    %23 = vector.shape_cast %22 : vector<4xf32> to vector<1x1x1x4xf32>
    %24 = vector.broadcast %20 : vector<2x7x7x1xf32> to vector<2x7x7x4xf32>
    %25 = vector.broadcast %23 : vector<1x1x1x4xf32> to vector<2x7x7x4xf32>
    %26 = arith.mulf %24, %25 : vector<2x7x7x4xf32>
    %27 = arith.addf %18, %26 : vector<2x7x7x4xf32>
    %28 = vector.extract_strided_slice %0 {offsets = [0, 2, 0, 0, 0], sizes = [2, 1, 7, 7, 1], strides = [1, 1, 1, 1, 1]} : vector<2x4x8x8x1xf32> to vector<2x1x7x7x1xf32>
    %29 = vector.shape_cast %28 : vector<2x1x7x7x1xf32> to vector<2x7x7x1xf32>
    %30 = vector.extract_strided_slice %1 {offsets = [3, 0], sizes = [1, 4], strides = [1, 1]} : vector<9x4xf32> to vector<1x4xf32>
    %31 = vector.shape_cast %30 : vector<1x4xf32> to vector<4xf32>
    %32 = vector.shape_cast %31 : vector<4xf32> to vector<1x1x1x4xf32>
    %33 = vector.broadcast %29 : vector<2x7x7x1xf32> to vector<2x7x7x4xf32>
    %34 = vector.broadcast %32 : vector<1x1x1x4xf32> to vector<2x7x7x4xf32>
    %35 = arith.mulf %33, %34 : vector<2x7x7x4xf32>
    %36 = arith.addf %27, %35 : vector<2x7x7x4xf32>
    %37 = vector.extract_strided_slice %0 {offsets = [0, 3, 0, 0, 0], sizes = [2, 1, 7, 7, 1], strides = [1, 1, 1, 1, 1]} : vector<2x4x8x8x1xf32> to vector<2x1x7x7x1xf32>
    %38 = vector.shape_cast %37 : vector<2x1x7x7x1xf32> to vector<2x7x7x1xf32>
    %39 = vector.extract_strided_slice %1 {offsets = [4, 0], sizes = [1, 4], strides = [1, 1]} : vector<9x4xf32> to vector<1x4xf32>
    %40 = vector.shape_cast %39 : vector<1x4xf32> to vector<4xf32>
    %41 = vector.shape_cast %40 : vector<4xf32> to vector<1x1x1x4xf32>
    %42 = vector.broadcast %38 : vector<2x7x7x1xf32> to vector<2x7x7x4xf32>
    %43 = vector.broadcast %41 : vector<1x1x1x4xf32> to vector<2x7x7x4xf32>
    %44 = arith.mulf %42, %43 : vector<2x7x7x4xf32>
    %45 = arith.addf %36, %44 : vector<2x7x7x4xf32>
    %46 = vector.extract_strided_slice %0 {offsets = [0, 2, 0, 1, 0], sizes = [2, 1, 7, 7, 1], strides = [1, 1, 1, 1, 1]} : vector<2x4x8x8x1xf32> to vector<2x1x7x7x1xf32>
    %47 = vector.shape_cast %46 : vector<2x1x7x7x1xf32> to vector<2x7x7x1xf32>
    %48 = vector.extract_strided_slice %1 {offsets = [5, 0], sizes = [1, 4], strides = [1, 1]} : vector<9x4xf32> to vector<1x4xf32>
    %49 = vector.shape_cast %48 : vector<1x4xf32> to vector<4xf32>
    %50 = vector.shape_cast %49 : vector<4xf32> to vector<1x1x1x4xf32>
    %51 = vector.broadcast %47 : vector<2x7x7x1xf32> to vector<2x7x7x4xf32>
    %52 = vector.broadcast %50 : vector<1x1x1x4xf32> to vector<2x7x7x4xf32>
    %53 = arith.mulf %51, %52 : vector<2x7x7x4xf32>
    %54 = arith.addf %45, %53 : vector<2x7x7x4xf32>
    %55 = vector.extract_strided_slice %0 {offsets = [0, 0, 1, 0, 0], sizes = [2, 1, 7, 7, 1], strides = [1, 1, 1, 1, 1]} : vector<2x4x8x8x1xf32> to vector<2x1x7x7x1xf32>
    %56 = vector.shape_cast %55 : vector<2x1x7x7x1xf32> to vector<2x7x7x1xf32>
    %57 = vector.extract_strided_slice %1 {offsets = [6, 0], sizes = [1, 4], strides = [1, 1]} : vector<9x4xf32> to vector<1x4xf32>
    %58 = vector.shape_cast %57 : vector<1x4xf32> to vector<4xf32>
    %59 = vector.shape_cast %58 : vector<4xf32> to vector<1x1x1x4xf32>
    %60 = vector.broadcast %56 : vector<2x7x7x1xf32> to vector<2x7x7x4xf32>
    %61 = vector.broadcast %59 : vector<1x1x1x4xf32> to vector<2x7x7x4xf32>
    %62 = arith.mulf %60, %61 : vector<2x7x7x4xf32>
    %63 = arith.addf %54, %62 : vector<2x7x7x4xf32>
    %64 = vector.extract_strided_slice %0 {offsets = [0, 1, 1, 0, 0], sizes = [2, 1, 7, 7, 1], strides = [1, 1, 1, 1, 1]} : vector<2x4x8x8x1xf32> to vector<2x1x7x7x1xf32>
    %65 = vector.shape_cast %64 : vector<2x1x7x7x1xf32> to vector<2x7x7x1xf32>
    %66 = vector.extract_strided_slice %1 {offsets = [7, 0], sizes = [1, 4], strides = [1, 1]} : vector<9x4xf32> to vector<1x4xf32>
    %67 = vector.shape_cast %66 : vector<1x4xf32> to vector<4xf32>
    %68 = vector.shape_cast %67 : vector<4xf32> to vector<1x1x1x4xf32>
    %69 = vector.broadcast %65 : vector<2x7x7x1xf32> to vector<2x7x7x4xf32>
    %70 = vector.broadcast %68 : vector<1x1x1x4xf32> to vector<2x7x7x4xf32>
    %71 = arith.mulf %69, %70 : vector<2x7x7x4xf32>
    %72 = arith.addf %63, %71 : vector<2x7x7x4xf32>
    %73 = vector.extract_strided_slice %0 {offsets = [0, 0, 1, 1, 0], sizes = [2, 1, 7, 7, 1], strides = [1, 1, 1, 1, 1]} : vector<2x4x8x8x1xf32> to vector<2x1x7x7x1xf32>
    %74 = vector.shape_cast %73 : vector<2x1x7x7x1xf32> to vector<2x7x7x1xf32>
    %75 = vector.extract_strided_slice %1 {offsets = [8, 0], sizes = [1, 4], strides = [1, 1]} : vector<9x4xf32> to vector<1x4xf32>
    %76 = vector.shape_cast %75 : vector<1x4xf32> to vector<4xf32>
    %77 = vector.shape_cast %76 : vector<4xf32> to vector<1x1x1x4xf32>
    %78 = vector.broadcast %74 : vector<2x7x7x1xf32> to vector<2x7x7x4xf32>
    %79 = vector.broadcast %77 : vector<1x1x1x4xf32> to vector<2x7x7x4xf32>
    %80 = arith.mulf %78, %79 : vector<2x7x7x4xf32>
    %81 = arith.addf %72, %80 : vector<2x7x7x4xf32>
    %82 = vector.extract_strided_slice %0 {offsets = [0, 1, 0, 0, 0], sizes = [2, 1, 7, 7, 1], strides = [1, 1, 1, 1, 1]} : vector<2x4x8x8x1xf32> to vector<2x1x7x7x1xf32>
    %83 = vector.shape_cast %82 : vector<2x1x7x7x1xf32> to vector<2x7x7x1xf32>
    %84 = vector.extract_strided_slice %1 {offsets = [0, 0], sizes = [1, 4], strides = [1, 1]} : vector<9x4xf32> to vector<1x4xf32>
    %85 = vector.shape_cast %84 : vector<1x4xf32> to vector<4xf32>
    %86 = vector.shape_cast %85 : vector<4xf32> to vector<1x1x1x4xf32>
    %87 = vector.broadcast %83 : vector<2x7x7x1xf32> to vector<2x7x7x4xf32>
    %88 = vector.broadcast %86 : vector<1x1x1x4xf32> to vector<2x7x7x4xf32>
    %89 = arith.mulf %87, %88 : vector<2x7x7x4xf32>
    %90 = vector.extract_strided_slice %0 {offsets = [0, 0, 0, 1, 0], sizes = [2, 1, 7, 7, 1], strides = [1, 1, 1, 1, 1]} : vector<2x4x8x8x1xf32> to vector<2x1x7x7x1xf32>
    %91 = vector.shape_cast %90 : vector<2x1x7x7x1xf32> to vector<2x7x7x1xf32>
    %92 = vector.extract_strided_slice %1 {offsets = [1, 0], sizes = [1, 4], strides = [1, 1]} : vector<9x4xf32> to vector<1x4xf32>
    %93 = vector.shape_cast %92 : vector<1x4xf32> to vector<4xf32>
    %94 = vector.shape_cast %93 : vector<4xf32> to vector<1x1x1x4xf32>
    %95 = vector.broadcast %91 : vector<2x7x7x1xf32> to vector<2x7x7x4xf32>
    %96 = vector.broadcast %94 : vector<1x1x1x4xf32> to vector<2x7x7x4xf32>
    %97 = arith.mulf %95, %96 : vector<2x7x7x4xf32>
    %98 = arith.addf %89, %97 : vector<2x7x7x4xf32>
    %99 = vector.extract_strided_slice %0 {offsets = [0, 1, 0, 1, 0], sizes = [2, 1, 7, 7, 1], strides = [1, 1, 1, 1, 1]} : vector<2x4x8x8x1xf32> to vector<2x1x7x7x1xf32>
    %100 = vector.shape_cast %99 : vector<2x1x7x7x1xf32> to vector<2x7x7x1xf32>
    %101 = vector.extract_strided_slice %1 {offsets = [2, 0], sizes = [1, 4], strides = [1, 1]} : vector<9x4xf32> to vector<1x4xf32>
    %102 = vector.shape_cast %101 : vector<1x4xf32> to vector<4xf32>
    %103 = vector.shape_cast %102 : vector<4xf32> to vector<1x1x1x4xf32>
    %104 = vector.broadcast %100 : vector<2x7x7x1xf32> to vector<2x7x7x4xf32>
    %105 = vector.broadcast %103 : vector<1x1x1x4xf32> to vector<2x7x7x4xf32>
    %106 = arith.mulf %104, %105 : vector<2x7x7x4xf32>
    %107 = arith.addf %98, %106 : vector<2x7x7x4xf32>
    %108 = vector.extract_strided_slice %0 {offsets = [0, 3, 0, 0, 0], sizes = [2, 1, 7, 7, 1], strides = [1, 1, 1, 1, 1]} : vector<2x4x8x8x1xf32> to vector<2x1x7x7x1xf32>
    %109 = vector.shape_cast %108 : vector<2x1x7x7x1xf32> to vector<2x7x7x1xf32>
    %110 = vector.extract_strided_slice %1 {offsets = [3, 0], sizes = [1, 4], strides = [1, 1]} : vector<9x4xf32> to vector<1x4xf32>
    %111 = vector.shape_cast %110 : vector<1x4xf32> to vector<4xf32>
    %112 = vector.shape_cast %111 : vector<4xf32> to vector<1x1x1x4xf32>
    %113 = vector.broadcast %109 : vector<2x7x7x1xf32> to vector<2x7x7x4xf32>
    %114 = vector.broadcast %112 : vector<1x1x1x4xf32> to vector<2x7x7x4xf32>
    %115 = arith.mulf %113, %114 : vector<2x7x7x4xf32>
    %116 = arith.addf %107, %115 : vector<2x7x7x4xf32>
    %117 = vector.extract_strided_slice %0 {offsets = [0, 2, 0, 1, 0], sizes = [2, 1, 7, 7, 1], strides = [1, 1, 1, 1, 1]} : vector<2x4x8x8x1xf32> to vector<2x1x7x7x1xf32>
    %118 = vector.shape_cast %117 : vector<2x1x7x7x1xf32> to vector<2x7x7x1xf32>
    %119 = vector.extract_strided_slice %1 {offsets = [4, 0], sizes = [1, 4], strides = [1, 1]} : vector<9x4xf32> to vector<1x4xf32>
    %120 = vector.shape_cast %119 : vector<1x4xf32> to vector<4xf32>
    %121 = vector.shape_cast %120 : vector<4xf32> to vector<1x1x1x4xf32>
    %122 = vector.broadcast %118 : vector<2x7x7x1xf32> to vector<2x7x7x4xf32>
    %123 = vector.broadcast %121 : vector<1x1x1x4xf32> to vector<2x7x7x4xf32>
    %124 = arith.mulf %122, %123 : vector<2x7x7x4xf32>
    %125 = arith.addf %116, %124 : vector<2x7x7x4xf32>
    %126 = vector.extract_strided_slice %0 {offsets = [0, 3, 0, 1, 0], sizes = [2, 1, 7, 7, 1], strides = [1, 1, 1, 1, 1]} : vector<2x4x8x8x1xf32> to vector<2x1x7x7x1xf32>
    %127 = vector.shape_cast %126 : vector<2x1x7x7x1xf32> to vector<2x7x7x1xf32>
    %128 = vector.extract_strided_slice %1 {offsets = [5, 0], sizes = [1, 4], strides = [1, 1]} : vector<9x4xf32> to vector<1x4xf32>
    %129 = vector.shape_cast %128 : vector<1x4xf32> to vector<4xf32>
    %130 = vector.shape_cast %129 : vector<4xf32> to vector<1x1x1x4xf32>
    %131 = vector.broadcast %127 : vector<2x7x7x1xf32> to vector<2x7x7x4xf32>
    %132 = vector.broadcast %130 : vector<1x1x1x4xf32> to vector<2x7x7x4xf32>
    %133 = arith.mulf %131, %132 : vector<2x7x7x4xf32>
    %134 = arith.addf %125, %133 : vector<2x7x7x4xf32>
    %135 = vector.extract_strided_slice %0 {offsets = [0, 1, 1, 0, 0], sizes = [2, 1, 7, 7, 1], strides = [1, 1, 1, 1, 1]} : vector<2x4x8x8x1xf32> to vector<2x1x7x7x1xf32>
    %136 = vector.shape_cast %135 : vector<2x1x7x7x1xf32> to vector<2x7x7x1xf32>
    %137 = vector.extract_strided_slice %1 {offsets = [6, 0], sizes = [1, 4], strides = [1, 1]} : vector<9x4xf32> to vector<1x4xf32>
    %138 = vector.shape_cast %137 : vector<1x4xf32> to vector<4xf32>
    %139 = vector.shape_cast %138 : vector<4xf32> to vector<1x1x1x4xf32>
    %140 = vector.broadcast %136 : vector<2x7x7x1xf32> to vector<2x7x7x4xf32>
    %141 = vector.broadcast %139 : vector<1x1x1x4xf32> to vector<2x7x7x4xf32>
    %142 = arith.mulf %140, %141 : vector<2x7x7x4xf32>
    %143 = arith.addf %134, %142 : vector<2x7x7x4xf32>
    %144 = vector.extract_strided_slice %0 {offsets = [0, 0, 1, 1, 0], sizes = [2, 1, 7, 7, 1], strides = [1, 1, 1, 1, 1]} : vector<2x4x8x8x1xf32> to vector<2x1x7x7x1xf32>
    %145 = vector.shape_cast %144 : vector<2x1x7x7x1xf32> to vector<2x7x7x1xf32>
    %146 = vector.extract_strided_slice %1 {offsets = [7, 0], sizes = [1, 4], strides = [1, 1]} : vector<9x4xf32> to vector<1x4xf32>
    %147 = vector.shape_cast %146 : vector<1x4xf32> to vector<4xf32>
    %148 = vector.shape_cast %147 : vector<4xf32> to vector<1x1x1x4xf32>
    %149 = vector.broadcast %145 : vector<2x7x7x1xf32> to vector<2x7x7x4xf32>
    %150 = vector.broadcast %148 : vector<1x1x1x4xf32> to vector<2x7x7x4xf32>
    %151 = arith.mulf %149, %150 : vector<2x7x7x4xf32>
    %152 = arith.addf %143, %151 : vector<2x7x7x4xf32>
    %153 = vector.extract_strided_slice %0 {offsets = [0, 1, 1, 1, 0], sizes = [2, 1, 7, 7, 1], strides = [1, 1, 1, 1, 1]} : vector<2x4x8x8x1xf32> to vector<2x1x7x7x1xf32>
    %154 = vector.shape_cast %153 : vector<2x1x7x7x1xf32> to vector<2x7x7x1xf32>
    %155 = vector.extract_strided_slice %1 {offsets = [8, 0], sizes = [1, 4], strides = [1, 1]} : vector<9x4xf32> to vector<1x4xf32>
    %156 = vector.shape_cast %155 : vector<1x4xf32> to vector<4xf32>
    %157 = vector.shape_cast %156 : vector<4xf32> to vector<1x1x1x4xf32>
    %158 = vector.broadcast %154 : vector<2x7x7x1xf32> to vector<2x7x7x4xf32>
    %159 = vector.broadcast %157 : vector<1x1x1x4xf32> to vector<2x7x7x4xf32>
    %160 = arith.mulf %158, %159 : vector<2x7x7x4xf32>
    %161 = arith.addf %152, %160 : vector<2x7x7x4xf32>
    %162 = arith.maximumf %81, %161 : vector<2x7x7x4xf32>
    %163 = vector.extract_strided_slice %0 {offsets = [0, 2, 0, 0, 0], sizes = [2, 1, 7, 7, 1], strides = [1, 1, 1, 1, 1]} : vector<2x4x8x8x1xf32> to vector<2x1x7x7x1xf32>
    %164 = vector.shape_cast %163 : vector<2x1x7x7x1xf32> to vector<2x7x7x1xf32>
    %165 = vector.extract_strided_slice %1 {offsets = [0, 0], sizes = [1, 4], strides = [1, 1]} : vector<9x4xf32> to vector<1x4xf32>
    %166 = vector.shape_cast %165 : vector<1x4xf32> to vector<4xf32>
    %167 = vector.shape_cast %166 : vector<4xf32> to vector<1x1x1x4xf32>
    %168 = vector.broadcast %164 : vector<2x7x7x1xf32> to vector<2x7x7x4xf32>
    %169 = vector.broadcast %167 : vector<1x1x1x4xf32> to vector<2x7x7x4xf32>
    %170 = arith.mulf %168, %169 : vector<2x7x7x4xf32>
    %171 = vector.extract_strided_slice %0 {offsets = [0, 3, 0, 0, 0], sizes = [2, 1, 7, 7, 1], strides = [1, 1, 1, 1, 1]} : vector<2x4x8x8x1xf32> to vector<2x1x7x7x1xf32>
    %172 = vector.shape_cast %171 : vector<2x1x7x7x1xf32> to vector<2x7x7x1xf32>
    %173 = vector.extract_strided_slice %1 {offsets = [1, 0], sizes = [1, 4], strides = [1, 1]} : vector<9x4xf32> to vector<1x4xf32>
    %174 = vector.shape_cast %173 : vector<1x4xf32> to vector<4xf32>
    %175 = vector.shape_cast %174 : vector<4xf32> to vector<1x1x1x4xf32>
    %176 = vector.broadcast %172 : vector<2x7x7x1xf32> to vector<2x7x7x4xf32>
    %177 = vector.broadcast %175 : vector<1x1x1x4xf32> to vector<2x7x7x4xf32>
    %178 = arith.mulf %176, %177 : vector<2x7x7x4xf32>
    %179 = arith.addf %170, %178 : vector<2x7x7x4xf32>
    %180 = vector.extract_strided_slice %0 {offsets = [0, 2, 0, 1, 0], sizes = [2, 1, 7, 7, 1], strides = [1, 1, 1, 1, 1]} : vector<2x4x8x8x1xf32> to vector<2x1x7x7x1xf32>
    %181 = vector.shape_cast %180 : vector<2x1x7x7x1xf32> to vector<2x7x7x1xf32>
    %182 = vector.extract_strided_slice %1 {offsets = [2, 0], sizes = [1, 4], strides = [1, 1]} : vector<9x4xf32> to vector<1x4xf32>
    %183 = vector.shape_cast %182 : vector<1x4xf32> to vector<4xf32>
    %184 = vector.shape_cast %183 : vector<4xf32> to vector<1x1x1x4xf32>
    %185 = vector.broadcast %181 : vector<2x7x7x1xf32> to vector<2x7x7x4xf32>
    %186 = vector.broadcast %184 : vector<1x1x1x4xf32> to vector<2x7x7x4xf32>
    %187 = arith.mulf %185, %186 : vector<2x7x7x4xf32>
    %188 = arith.addf %179, %187 : vector<2x7x7x4xf32>
    %189 = vector.extract_strided_slice %0 {offsets = [0, 0, 1, 0, 0], sizes = [2, 1, 7, 7, 1], strides = [1, 1, 1, 1, 1]} : vector<2x4x8x8x1xf32> to vector<2x1x7x7x1xf32>
    %190 = vector.shape_cast %189 : vector<2x1x7x7x1xf32> to vector<2x7x7x1xf32>
    %191 = vector.extract_strided_slice %1 {offsets = [3, 0], sizes = [1, 4], strides = [1, 1]} : vector<9x4xf32> to vector<1x4xf32>
    %192 = vector.shape_cast %191 : vector<1x4xf32> to vector<4xf32>
    %193 = vector.shape_cast %192 : vector<4xf32> to vector<1x1x1x4xf32>
    %194 = vector.broadcast %190 : vector<2x7x7x1xf32> to vector<2x7x7x4xf32>
    %195 = vector.broadcast %193 : vector<1x1x1x4xf32> to vector<2x7x7x4xf32>
    %196 = arith.mulf %194, %195 : vector<2x7x7x4xf32>
    %197 = arith.addf %188, %196 : vector<2x7x7x4xf32>
    %198 = vector.extract_strided_slice %0 {offsets = [0, 1, 1, 0, 0], sizes = [2, 1, 7, 7, 1], strides = [1, 1, 1, 1, 1]} : vector<2x4x8x8x1xf32> to vector<2x1x7x7x1xf32>
    %199 = vector.shape_cast %198 : vector<2x1x7x7x1xf32> to vector<2x7x7x1xf32>
    %200 = vector.extract_strided_slice %1 {offsets = [4, 0], sizes = [1, 4], strides = [1, 1]} : vector<9x4xf32> to vector<1x4xf32>
    %201 = vector.shape_cast %200 : vector<1x4xf32> to vector<4xf32>
    %202 = vector.shape_cast %201 : vector<4xf32> to vector<1x1x1x4xf32>
    %203 = vector.broadcast %199 : vector<2x7x7x1xf32> to vector<2x7x7x4xf32>
    %204 = vector.broadcast %202 : vector<1x1x1x4xf32> to vector<2x7x7x4xf32>
    %205 = arith.mulf %203, %204 : vector<2x7x7x4xf32>
    %206 = arith.addf %197, %205 : vector<2x7x7x4xf32>
    %207 = vector.extract_strided_slice %0 {offsets = [0, 0, 1, 1, 0], sizes = [2, 1, 7, 7, 1], strides = [1, 1, 1, 1, 1]} : vector<2x4x8x8x1xf32> to vector<2x1x7x7x1xf32>
    %208 = vector.shape_cast %207 : vector<2x1x7x7x1xf32> to vector<2x7x7x1xf32>
    %209 = vector.extract_strided_slice %1 {offsets = [5, 0], sizes = [1, 4], strides = [1, 1]} : vector<9x4xf32> to vector<1x4xf32>
    %210 = vector.shape_cast %209 : vector<1x4xf32> to vector<4xf32>
    %211 = vector.shape_cast %210 : vector<4xf32> to vector<1x1x1x4xf32>
    %212 = vector.broadcast %208 : vector<2x7x7x1xf32> to vector<2x7x7x4xf32>
    %213 = vector.broadcast %211 : vector<1x1x1x4xf32> to vector<2x7x7x4xf32>
    %214 = arith.mulf %212, %213 : vector<2x7x7x4xf32>
    %215 = arith.addf %206, %214 : vector<2x7x7x4xf32>
    %216 = vector.extract_strided_slice %0 {offsets = [0, 2, 1, 0, 0], sizes = [2, 1, 7, 7, 1], strides = [1, 1, 1, 1, 1]} : vector<2x4x8x8x1xf32> to vector<2x1x7x7x1xf32>
    %217 = vector.shape_cast %216 : vector<2x1x7x7x1xf32> to vector<2x7x7x1xf32>
    %218 = vector.extract_strided_slice %1 {offsets = [6, 0], sizes = [1, 4], strides = [1, 1]} : vector<9x4xf32> to vector<1x4xf32>
    %219 = vector.shape_cast %218 : vector<1x4xf32> to vector<4xf32>
    %220 = vector.shape_cast %219 : vector<4xf32> to vector<1x1x1x4xf32>
    %221 = vector.broadcast %217 : vector<2x7x7x1xf32> to vector<2x7x7x4xf32>
    %222 = vector.broadcast %220 : vector<1x1x1x4xf32> to vector<2x7x7x4xf32>
    %223 = arith.mulf %221, %222 : vector<2x7x7x4xf32>
    %224 = arith.addf %215, %223 : vector<2x7x7x4xf32>
    %225 = vector.extract_strided_slice %0 {offsets = [0, 3, 1, 0, 0], sizes = [2, 1, 7, 7, 1], strides = [1, 1, 1, 1, 1]} : vector<2x4x8x8x1xf32> to vector<2x1x7x7x1xf32>
    %226 = vector.shape_cast %225 : vector<2x1x7x7x1xf32> to vector<2x7x7x1xf32>
    %227 = vector.extract_strided_slice %1 {offsets = [7, 0], sizes = [1, 4], strides = [1, 1]} : vector<9x4xf32> to vector<1x4xf32>
    %228 = vector.shape_cast %227 : vector<1x4xf32> to vector<4xf32>
    %229 = vector.shape_cast %228 : vector<4xf32> to vector<1x1x1x4xf32>
    %230 = vector.broadcast %226 : vector<2x7x7x1xf32> to vector<2x7x7x4xf32>
    %231 = vector.broadcast %229 : vector<1x1x1x4xf32> to vector<2x7x7x4xf32>
    %232 = arith.mulf %230, %231 : vector<2x7x7x4xf32>
    %233 = arith.addf %224, %232 : vector<2x7x7x4xf32>
    %234 = vector.extract_strided_slice %0 {offsets = [0, 2, 1, 1, 0], sizes = [2, 1, 7, 7, 1], strides = [1, 1, 1, 1, 1]} : vector<2x4x8x8x1xf32> to vector<2x1x7x7x1xf32>
    %235 = vector.shape_cast %234 : vector<2x1x7x7x1xf32> to vector<2x7x7x1xf32>
    %236 = vector.extract_strided_slice %1 {offsets = [8, 0], sizes = [1, 4], strides = [1, 1]} : vector<9x4xf32> to vector<1x4xf32>
    %237 = vector.shape_cast %236 : vector<1x4xf32> to vector<4xf32>
    %238 = vector.shape_cast %237 : vector<4xf32> to vector<1x1x1x4xf32>
    %239 = vector.broadcast %235 : vector<2x7x7x1xf32> to vector<2x7x7x4xf32>
    %240 = vector.broadcast %238 : vector<1x1x1x4xf32> to vector<2x7x7x4xf32>
    %241 = arith.mulf %239, %240 : vector<2x7x7x4xf32>
    %242 = arith.addf %233, %241 : vector<2x7x7x4xf32>
    %243 = arith.maximumf %162, %242 : vector<2x7x7x4xf32>
    %244 = vector.extract_strided_slice %0 {offsets = [0, 3, 0, 0, 0], sizes = [2, 1, 7, 7, 1], strides = [1, 1, 1, 1, 1]} : vector<2x4x8x8x1xf32> to vector<2x1x7x7x1xf32>
    %245 = vector.shape_cast %244 : vector<2x1x7x7x1xf32> to vector<2x7x7x1xf32>
    %246 = vector.extract_strided_slice %1 {offsets = [0, 0], sizes = [1, 4], strides = [1, 1]} : vector<9x4xf32> to vector<1x4xf32>
    %247 = vector.shape_cast %246 : vector<1x4xf32> to vector<4xf32>
    %248 = vector.shape_cast %247 : vector<4xf32> to vector<1x1x1x4xf32>
    %249 = vector.broadcast %245 : vector<2x7x7x1xf32> to vector<2x7x7x4xf32>
    %250 = vector.broadcast %248 : vector<1x1x1x4xf32> to vector<2x7x7x4xf32>
    %251 = arith.mulf %249, %250 : vector<2x7x7x4xf32>
    %252 = vector.extract_strided_slice %0 {offsets = [0, 2, 0, 1, 0], sizes = [2, 1, 7, 7, 1], strides = [1, 1, 1, 1, 1]} : vector<2x4x8x8x1xf32> to vector<2x1x7x7x1xf32>
    %253 = vector.shape_cast %252 : vector<2x1x7x7x1xf32> to vector<2x7x7x1xf32>
    %254 = vector.extract_strided_slice %1 {offsets = [1, 0], sizes = [1, 4], strides = [1, 1]} : vector<9x4xf32> to vector<1x4xf32>
    %255 = vector.shape_cast %254 : vector<1x4xf32> to vector<4xf32>
    %256 = vector.shape_cast %255 : vector<4xf32> to vector<1x1x1x4xf32>
    %257 = vector.broadcast %253 : vector<2x7x7x1xf32> to vector<2x7x7x4xf32>
    %258 = vector.broadcast %256 : vector<1x1x1x4xf32> to vector<2x7x7x4xf32>
    %259 = arith.mulf %257, %258 : vector<2x7x7x4xf32>
    %260 = arith.addf %251, %259 : vector<2x7x7x4xf32>
    %261 = vector.extract_strided_slice %0 {offsets = [0, 3, 0, 1, 0], sizes = [2, 1, 7, 7, 1], strides = [1, 1, 1, 1, 1]} : vector<2x4x8x8x1xf32> to vector<2x1x7x7x1xf32>
    %262 = vector.shape_cast %261 : vector<2x1x7x7x1xf32> to vector<2x7x7x1xf32>
    %263 = vector.extract_strided_slice %1 {offsets = [2, 0], sizes = [1, 4], strides = [1, 1]} : vector<9x4xf32> to vector<1x4xf32>
    %264 = vector.shape_cast %263 : vector<1x4xf32> to vector<4xf32>
    %265 = vector.shape_cast %264 : vector<4xf32> to vector<1x1x1x4xf32>
    %266 = vector.broadcast %262 : vector<2x7x7x1xf32> to vector<2x7x7x4xf32>
    %267 = vector.broadcast %265 : vector<1x1x1x4xf32> to vector<2x7x7x4xf32>
    %268 = arith.mulf %266, %267 : vector<2x7x7x4xf32>
    %269 = arith.addf %260, %268 : vector<2x7x7x4xf32>
    %270 = vector.extract_strided_slice %0 {offsets = [0, 1, 1, 0, 0], sizes = [2, 1, 7, 7, 1], strides = [1, 1, 1, 1, 1]} : vector<2x4x8x8x1xf32> to vector<2x1x7x7x1xf32>
    %271 = vector.shape_cast %270 : vector<2x1x7x7x1xf32> to vector<2x7x7x1xf32>
    %272 = vector.extract_strided_slice %1 {offsets = [3, 0], sizes = [1, 4], strides = [1, 1]} : vector<9x4xf32> to vector<1x4xf32>
    %273 = vector.shape_cast %272 : vector<1x4xf32> to vector<4xf32>
    %274 = vector.shape_cast %273 : vector<4xf32> to vector<1x1x1x4xf32>
    %275 = vector.broadcast %271 : vector<2x7x7x1xf32> to vector<2x7x7x4xf32>
    %276 = vector.broadcast %274 : vector<1x1x1x4xf32> to vector<2x7x7x4xf32>
    %277 = arith.mulf %275, %276 : vector<2x7x7x4xf32>
    %278 = arith.addf %269, %277 : vector<2x7x7x4xf32>
    %279 = vector.extract_strided_slice %0 {offsets = [0, 0, 1, 1, 0], sizes = [2, 1, 7, 7, 1], strides = [1, 1, 1, 1, 1]} : vector<2x4x8x8x1xf32> to vector<2x1x7x7x1xf32>
    %280 = vector.shape_cast %279 : vector<2x1x7x7x1xf32> to vector<2x7x7x1xf32>
    %281 = vector.extract_strided_slice %1 {offsets = [4, 0], sizes = [1, 4], strides = [1, 1]} : vector<9x4xf32> to vector<1x4xf32>
    %282 = vector.shape_cast %281 : vector<1x4xf32> to vector<4xf32>
    %283 = vector.shape_cast %282 : vector<4xf32> to vector<1x1x1x4xf32>
    %284 = vector.broadcast %280 : vector<2x7x7x1xf32> to vector<2x7x7x4xf32>
    %285 = vector.broadcast %283 : vector<1x1x1x4xf32> to vector<2x7x7x4xf32>
    %286 = arith.mulf %284, %285 : vector<2x7x7x4xf32>
    %287 = arith.addf %278, %286 : vector<2x7x7x4xf32>
    %288 = vector.extract_strided_slice %0 {offsets = [0, 1, 1, 1, 0], sizes = [2, 1, 7, 7, 1], strides = [1, 1, 1, 1, 1]} : vector<2x4x8x8x1xf32> to vector<2x1x7x7x1xf32>
    %289 = vector.shape_cast %288 : vector<2x1x7x7x1xf32> to vector<2x7x7x1xf32>
    %290 = vector.extract_strided_slice %1 {offsets = [5, 0], sizes = [1, 4], strides = [1, 1]} : vector<9x4xf32> to vector<1x4xf32>
    %291 = vector.shape_cast %290 : vector<1x4xf32> to vector<4xf32>
    %292 = vector.shape_cast %291 : vector<4xf32> to vector<1x1x1x4xf32>
    %293 = vector.broadcast %289 : vector<2x7x7x1xf32> to vector<2x7x7x4xf32>
    %294 = vector.broadcast %292 : vector<1x1x1x4xf32> to vector<2x7x7x4xf32>
    %295 = arith.mulf %293, %294 : vector<2x7x7x4xf32>
    %296 = arith.addf %287, %295 : vector<2x7x7x4xf32>
    %297 = vector.extract_strided_slice %0 {offsets = [0, 3, 1, 0, 0], sizes = [2, 1, 7, 7, 1], strides = [1, 1, 1, 1, 1]} : vector<2x4x8x8x1xf32> to vector<2x1x7x7x1xf32>
    %298 = vector.shape_cast %297 : vector<2x1x7x7x1xf32> to vector<2x7x7x1xf32>
    %299 = vector.extract_strided_slice %1 {offsets = [6, 0], sizes = [1, 4], strides = [1, 1]} : vector<9x4xf32> to vector<1x4xf32>
    %300 = vector.shape_cast %299 : vector<1x4xf32> to vector<4xf32>
    %301 = vector.shape_cast %300 : vector<4xf32> to vector<1x1x1x4xf32>
    %302 = vector.broadcast %298 : vector<2x7x7x1xf32> to vector<2x7x7x4xf32>
    %303 = vector.broadcast %301 : vector<1x1x1x4xf32> to vector<2x7x7x4xf32>
    %304 = arith.mulf %302, %303 : vector<2x7x7x4xf32>
    %305 = arith.addf %296, %304 : vector<2x7x7x4xf32>
    %306 = vector.extract_strided_slice %0 {offsets = [0, 2, 1, 1, 0], sizes = [2, 1, 7, 7, 1], strides = [1, 1, 1, 1, 1]} : vector<2x4x8x8x1xf32> to vector<2x1x7x7x1xf32>
    %307 = vector.shape_cast %306 : vector<2x1x7x7x1xf32> to vector<2x7x7x1xf32>
    %308 = vector.extract_strided_slice %1 {offsets = [7, 0], sizes = [1, 4], strides = [1, 1]} : vector<9x4xf32> to vector<1x4xf32>
    %309 = vector.shape_cast %308 : vector<1x4xf32> to vector<4xf32>
    %310 = vector.shape_cast %309 : vector<4xf32> to vector<1x1x1x4xf32>
    %311 = vector.broadcast %307 : vector<2x7x7x1xf32> to vector<2x7x7x4xf32>
    %312 = vector.broadcast %310 : vector<1x1x1x4xf32> to vector<2x7x7x4xf32>
    %313 = arith.mulf %311, %312 : vector<2x7x7x4xf32>
    %314 = arith.addf %305, %313 : vector<2x7x7x4xf32>
    %315 = vector.extract_strided_slice %0 {offsets = [0, 3, 1, 1, 0], sizes = [2, 1, 7, 7, 1], strides = [1, 1, 1, 1, 1]} : vector<2x4x8x8x1xf32> to vector<2x1x7x7x1xf32>
    %316 = vector.shape_cast %315 : vector<2x1x7x7x1xf32> to vector<2x7x7x1xf32>
    %317 = vector.extract_strided_slice %1 {offsets = [8, 0], sizes = [1, 4], strides = [1, 1]} : vector<9x4xf32> to vector<1x4xf32>
    %318 = vector.shape_cast %317 : vector<1x4xf32> to vector<4xf32>
    %319 = vector.shape_cast %318 : vector<4xf32> to vector<1x1x1x4xf32>
    %320 = vector.broadcast %316 : vector<2x7x7x1xf32> to vector<2x7x7x4xf32>
    %321 = vector.broadcast %319 : vector<1x1x1x4xf32> to vector<2x7x7x4xf32>
    %322 = arith.mulf %320, %321 : vector<2x7x7x4xf32>
    %323 = arith.addf %314, %322 : vector<2x7x7x4xf32>
    %324 = arith.maximumf %243, %323 : vector<2x7x7x4xf32>
    %c0_6 = arith.constant 0 : index
    %c0_7 = arith.constant 0 : index
    %325 = vector.load %arg3[%c0_6, %c0_7] : memref<1x4xf32, #tpu.memory_space<vmem>>, vector<1x4xf32>
    %326 = vector.shape_cast %325 : vector<1x4xf32> to vector<1x1x1x4xf32>
    %327 = vector.broadcast %326 : vector<1x1x1x4xf32> to vector<2x7x7x4xf32>
    %328 = arith.addf %324, %327 : vector<2x7x7x4xf32>
    %cst = arith.constant 0.000000e+00 : f32
    %329 = vector.broadcast %cst : f32 to vector<2x7x7x4xf32>
    %330 = arith.maximumf %328, %329 : vector<2x7x7x4xf32>
    %331 = vector.extract_strided_slice %330 {offsets = [0, 0, 0, 0], sizes = [1, 1, 4, 4], strides = [1, 1, 1, 1]} : vector<2x7x7x4xf32> to vector<1x1x4x4xf32>
    %332 = vector.shape_cast %331 : vector<1x1x4x4xf32> to vector<4x4xf32>
    %333 = vector.extract_strided_slice %330 {offsets = [0, 0, 1, 0], sizes = [1, 1, 4, 4], strides = [1, 1, 1, 1]} : vector<2x7x7x4xf32> to vector<1x1x4x4xf32>
    %334 = vector.shape_cast %333 : vector<1x1x4x4xf32> to vector<4x4xf32>
    %335 = vector.extract_strided_slice %330 {offsets = [0, 0, 2, 0], sizes = [1, 1, 4, 4], strides = [1, 1, 1, 1]} : vector<2x7x7x4xf32> to vector<1x1x4x4xf32>
    %336 = vector.shape_cast %335 : vector<1x1x4x4xf32> to vector<4x4xf32>
    %337 = vector.extract_strided_slice %330 {offsets = [0, 1, 0, 0], sizes = [1, 1, 4, 4], strides = [1, 1, 1, 1]} : vector<2x7x7x4xf32> to vector<1x1x4x4xf32>
    %338 = vector.shape_cast %337 : vector<1x1x4x4xf32> to vector<4x4xf32>
    %339 = vector.extract_strided_slice %330 {offsets = [0, 1, 1, 0], sizes = [1, 1, 4, 4], strides = [1, 1, 1, 1]} : vector<2x7x7x4xf32> to vector<1x1x4x4xf32>
    %340 = vector.shape_cast %339 : vector<1x1x4x4xf32> to vector<4x4xf32>
    %341 = vector.extract_strided_slice %330 {offsets = [0, 1, 2, 0], sizes = [1, 1, 4, 4], strides = [1, 1, 1, 1]} : vector<2x7x7x4xf32> to vector<1x1x4x4xf32>
    %342 = vector.shape_cast %341 : vector<1x1x4x4xf32> to vector<4x4xf32>
    %343 = vector.extract_strided_slice %330 {offsets = [0, 2, 0, 0], sizes = [1, 1, 4, 4], strides = [1, 1, 1, 1]} : vector<2x7x7x4xf32> to vector<1x1x4x4xf32>
    %344 = vector.shape_cast %343 : vector<1x1x4x4xf32> to vector<4x4xf32>
    %345 = vector.extract_strided_slice %330 {offsets = [0, 2, 1, 0], sizes = [1, 1, 4, 4], strides = [1, 1, 1, 1]} : vector<2x7x7x4xf32> to vector<1x1x4x4xf32>
    %346 = vector.shape_cast %345 : vector<1x1x4x4xf32> to vector<4x4xf32>
    %347 = vector.extract_strided_slice %330 {offsets = [0, 2, 2, 0], sizes = [1, 1, 4, 4], strides = [1, 1, 1, 1]} : vector<2x7x7x4xf32> to vector<1x1x4x4xf32>
    %348 = vector.shape_cast %347 : vector<1x1x4x4xf32> to vector<4x4xf32>
    %349 = tpu.concatenate %332, %334, %336, %338, %340, %342, %344, %346, %348 in 1 : vector<4x4xf32>, vector<4x4xf32>, vector<4x4xf32>, vector<4x4xf32>, vector<4x4xf32>, vector<4x4xf32>, vector<4x4xf32>, vector<4x4xf32>, vector<4x4xf32> -> vector<4x36xf32>
    %350 = vector.extract_strided_slice %330 {offsets = [0, 1, 0, 0], sizes = [1, 1, 4, 4], strides = [1, 1, 1, 1]} : vector<2x7x7x4xf32> to vector<1x1x4x4xf32>
    %351 = vector.shape_cast %350 : vector<1x1x4x4xf32> to vector<4x4xf32>
    %352 = vector.extract_strided_slice %330 {offsets = [0, 1, 1, 0], sizes = [1, 1, 4, 4], strides = [1, 1, 1, 1]} : vector<2x7x7x4xf32> to vector<1x1x4x4xf32>
    %353 = vector.shape_cast %352 : vector<1x1x4x4xf32> to vector<4x4xf32>
    %354 = vector.extract_strided_slice %330 {offsets = [0, 1, 2, 0], sizes = [1, 1, 4, 4], strides = [1, 1, 1, 1]} : vector<2x7x7x4xf32> to vector<1x1x4x4xf32>
    %355 = vector.shape_cast %354 : vector<1x1x4x4xf32> to vector<4x4xf32>
    %356 = vector.extract_strided_slice %330 {offsets = [0, 2, 0, 0], sizes = [1, 1, 4, 4], strides = [1, 1, 1, 1]} : vector<2x7x7x4xf32> to vector<1x1x4x4xf32>
    %357 = vector.shape_cast %356 : vector<1x1x4x4xf32> to vector<4x4xf32>
    %358 = vector.extract_strided_slice %330 {offsets = [0, 2, 1, 0], sizes = [1, 1, 4, 4], strides = [1, 1, 1, 1]} : vector<2x7x7x4xf32> to vector<1x1x4x4xf32>
    %359 = vector.shape_cast %358 : vector<1x1x4x4xf32> to vector<4x4xf32>
    %360 = vector.extract_strided_slice %330 {offsets = [0, 2, 2, 0], sizes = [1, 1, 4, 4], strides = [1, 1, 1, 1]} : vector<2x7x7x4xf32> to vector<1x1x4x4xf32>
    %361 = vector.shape_cast %360 : vector<1x1x4x4xf32> to vector<4x4xf32>
    %362 = vector.extract_strided_slice %330 {offsets = [0, 3, 0, 0], sizes = [1, 1, 4, 4], strides = [1, 1, 1, 1]} : vector<2x7x7x4xf32> to vector<1x1x4x4xf32>
    %363 = vector.shape_cast %362 : vector<1x1x4x4xf32> to vector<4x4xf32>
    %364 = vector.extract_strided_slice %330 {offsets = [0, 3, 1, 0], sizes = [1, 1, 4, 4], strides = [1, 1, 1, 1]} : vector<2x7x7x4xf32> to vector<1x1x4x4xf32>
    %365 = vector.shape_cast %364 : vector<1x1x4x4xf32> to vector<4x4xf32>
    %366 = vector.extract_strided_slice %330 {offsets = [0, 3, 2, 0], sizes = [1, 1, 4, 4], strides = [1, 1, 1, 1]} : vector<2x7x7x4xf32> to vector<1x1x4x4xf32>
    %367 = vector.shape_cast %366 : vector<1x1x4x4xf32> to vector<4x4xf32>
    %368 = tpu.concatenate %351, %353, %355, %357, %359, %361, %363, %365, %367 in 1 : vector<4x4xf32>, vector<4x4xf32>, vector<4x4xf32>, vector<4x4xf32>, vector<4x4xf32>, vector<4x4xf32>, vector<4x4xf32>, vector<4x4xf32>, vector<4x4xf32> -> vector<4x36xf32>
    %369 = vector.extract_strided_slice %330 {offsets = [0, 2, 0, 0], sizes = [1, 1, 4, 4], strides = [1, 1, 1, 1]} : vector<2x7x7x4xf32> to vector<1x1x4x4xf32>
    %370 = vector.shape_cast %369 : vector<1x1x4x4xf32> to vector<4x4xf32>
    %371 = vector.extract_strided_slice %330 {offsets = [0, 2, 1, 0], sizes = [1, 1, 4, 4], strides = [1, 1, 1, 1]} : vector<2x7x7x4xf32> to vector<1x1x4x4xf32>
    %372 = vector.shape_cast %371 : vector<1x1x4x4xf32> to vector<4x4xf32>
    %373 = vector.extract_strided_slice %330 {offsets = [0, 2, 2, 0], sizes = [1, 1, 4, 4], strides = [1, 1, 1, 1]} : vector<2x7x7x4xf32> to vector<1x1x4x4xf32>
    %374 = vector.shape_cast %373 : vector<1x1x4x4xf32> to vector<4x4xf32>
    %375 = vector.extract_strided_slice %330 {offsets = [0, 3, 0, 0], sizes = [1, 1, 4, 4], strides = [1, 1, 1, 1]} : vector<2x7x7x4xf32> to vector<1x1x4x4xf32>
    %376 = vector.shape_cast %375 : vector<1x1x4x4xf32> to vector<4x4xf32>
    %377 = vector.extract_strided_slice %330 {offsets = [0, 3, 1, 0], sizes = [1, 1, 4, 4], strides = [1, 1, 1, 1]} : vector<2x7x7x4xf32> to vector<1x1x4x4xf32>
    %378 = vector.shape_cast %377 : vector<1x1x4x4xf32> to vector<4x4xf32>
    %379 = vector.extract_strided_slice %330 {offsets = [0, 3, 2, 0], sizes = [1, 1, 4, 4], strides = [1, 1, 1, 1]} : vector<2x7x7x4xf32> to vector<1x1x4x4xf32>
    %380 = vector.shape_cast %379 : vector<1x1x4x4xf32> to vector<4x4xf32>
    %381 = vector.extract_strided_slice %330 {offsets = [0, 4, 0, 0], sizes = [1, 1, 4, 4], strides = [1, 1, 1, 1]} : vector<2x7x7x4xf32> to vector<1x1x4x4xf32>
    %382 = vector.shape_cast %381 : vector<1x1x4x4xf32> to vector<4x4xf32>
    %383 = vector.extract_strided_slice %330 {offsets = [0, 4, 1, 0], sizes = [1, 1, 4, 4], strides = [1, 1, 1, 1]} : vector<2x7x7x4xf32> to vector<1x1x4x4xf32>
    %384 = vector.shape_cast %383 : vector<1x1x4x4xf32> to vector<4x4xf32>
    %385 = vector.extract_strided_slice %330 {offsets = [0, 4, 2, 0], sizes = [1, 1, 4, 4], strides = [1, 1, 1, 1]} : vector<2x7x7x4xf32> to vector<1x1x4x4xf32>
    %386 = vector.shape_cast %385 : vector<1x1x4x4xf32> to vector<4x4xf32>
    %387 = tpu.concatenate %370, %372, %374, %376, %378, %380, %382, %384, %386 in 1 : vector<4x4xf32>, vector<4x4xf32>, vector<4x4xf32>, vector<4x4xf32>, vector<4x4xf32>, vector<4x4xf32>, vector<4x4xf32>, vector<4x4xf32>, vector<4x4xf32> -> vector<4x36xf32>
    %388 = vector.extract_strided_slice %330 {offsets = [0, 3, 0, 0], sizes = [1, 1, 4, 4], strides = [1, 1, 1, 1]} : vector<2x7x7x4xf32> to vector<1x1x4x4xf32>
    %389 = vector.shape_cast %388 : vector<1x1x4x4xf32> to vector<4x4xf32>
    %390 = vector.extract_strided_slice %330 {offsets = [0, 3, 1, 0], sizes = [1, 1, 4, 4], strides = [1, 1, 1, 1]} : vector<2x7x7x4xf32> to vector<1x1x4x4xf32>
    %391 = vector.shape_cast %390 : vector<1x1x4x4xf32> to vector<4x4xf32>
    %392 = vector.extract_strided_slice %330 {offsets = [0, 3, 2, 0], sizes = [1, 1, 4, 4], strides = [1, 1, 1, 1]} : vector<2x7x7x4xf32> to vector<1x1x4x4xf32>
    %393 = vector.shape_cast %392 : vector<1x1x4x4xf32> to vector<4x4xf32>
    %394 = vector.extract_strided_slice %330 {offsets = [0, 4, 0, 0], sizes = [1, 1, 4, 4], strides = [1, 1, 1, 1]} : vector<2x7x7x4xf32> to vector<1x1x4x4xf32>
    %395 = vector.shape_cast %394 : vector<1x1x4x4xf32> to vector<4x4xf32>
    %396 = vector.extract_strided_slice %330 {offsets = [0, 4, 1, 0], sizes = [1, 1, 4, 4], strides = [1, 1, 1, 1]} : vector<2x7x7x4xf32> to vector<1x1x4x4xf32>
    %397 = vector.shape_cast %396 : vector<1x1x4x4xf32> to vector<4x4xf32>
    %398 = vector.extract_strided_slice %330 {offsets = [0, 4, 2, 0], sizes = [1, 1, 4, 4], strides = [1, 1, 1, 1]} : vector<2x7x7x4xf32> to vector<1x1x4x4xf32>
    %399 = vector.shape_cast %398 : vector<1x1x4x4xf32> to vector<4x4xf32>
    %400 = vector.extract_strided_slice %330 {offsets = [0, 5, 0, 0], sizes = [1, 1, 4, 4], strides = [1, 1, 1, 1]} : vector<2x7x7x4xf32> to vector<1x1x4x4xf32>
    %401 = vector.shape_cast %400 : vector<1x1x4x4xf32> to vector<4x4xf32>
    %402 = vector.extract_strided_slice %330 {offsets = [0, 5, 1, 0], sizes = [1, 1, 4, 4], strides = [1, 1, 1, 1]} : vector<2x7x7x4xf32> to vector<1x1x4x4xf32>
    %403 = vector.shape_cast %402 : vector<1x1x4x4xf32> to vector<4x4xf32>
    %404 = vector.extract_strided_slice %330 {offsets = [0, 5, 2, 0], sizes = [1, 1, 4, 4], strides = [1, 1, 1, 1]} : vector<2x7x7x4xf32> to vector<1x1x4x4xf32>
    %405 = vector.shape_cast %404 : vector<1x1x4x4xf32> to vector<4x4xf32>
    %406 = tpu.concatenate %389, %391, %393, %395, %397, %399, %401, %403, %405 in 1 : vector<4x4xf32>, vector<4x4xf32>, vector<4x4xf32>, vector<4x4xf32>, vector<4x4xf32>, vector<4x4xf32>, vector<4x4xf32>, vector<4x4xf32>, vector<4x4xf32> -> vector<4x36xf32>
    %407 = vector.extract_strided_slice %330 {offsets = [1, 0, 0, 0], sizes = [1, 1, 4, 4], strides = [1, 1, 1, 1]} : vector<2x7x7x4xf32> to vector<1x1x4x4xf32>
    %408 = vector.shape_cast %407 : vector<1x1x4x4xf32> to vector<4x4xf32>
    %409 = vector.extract_strided_slice %330 {offsets = [1, 0, 1, 0], sizes = [1, 1, 4, 4], strides = [1, 1, 1, 1]} : vector<2x7x7x4xf32> to vector<1x1x4x4xf32>
    %410 = vector.shape_cast %409 : vector<1x1x4x4xf32> to vector<4x4xf32>
    %411 = vector.extract_strided_slice %330 {offsets = [1, 0, 2, 0], sizes = [1, 1, 4, 4], strides = [1, 1, 1, 1]} : vector<2x7x7x4xf32> to vector<1x1x4x4xf32>
    %412 = vector.shape_cast %411 : vector<1x1x4x4xf32> to vector<4x4xf32>
    %413 = vector.extract_strided_slice %330 {offsets = [1, 1, 0, 0], sizes = [1, 1, 4, 4], strides = [1, 1, 1, 1]} : vector<2x7x7x4xf32> to vector<1x1x4x4xf32>
    %414 = vector.shape_cast %413 : vector<1x1x4x4xf32> to vector<4x4xf32>
    %415 = vector.extract_strided_slice %330 {offsets = [1, 1, 1, 0], sizes = [1, 1, 4, 4], strides = [1, 1, 1, 1]} : vector<2x7x7x4xf32> to vector<1x1x4x4xf32>
    %416 = vector.shape_cast %415 : vector<1x1x4x4xf32> to vector<4x4xf32>
    %417 = vector.extract_strided_slice %330 {offsets = [1, 1, 2, 0], sizes = [1, 1, 4, 4], strides = [1, 1, 1, 1]} : vector<2x7x7x4xf32> to vector<1x1x4x4xf32>
    %418 = vector.shape_cast %417 : vector<1x1x4x4xf32> to vector<4x4xf32>
    %419 = vector.extract_strided_slice %330 {offsets = [1, 2, 0, 0], sizes = [1, 1, 4, 4], strides = [1, 1, 1, 1]} : vector<2x7x7x4xf32> to vector<1x1x4x4xf32>
    %420 = vector.shape_cast %419 : vector<1x1x4x4xf32> to vector<4x4xf32>
    %421 = vector.extract_strided_slice %330 {offsets = [1, 2, 1, 0], sizes = [1, 1, 4, 4], strides = [1, 1, 1, 1]} : vector<2x7x7x4xf32> to vector<1x1x4x4xf32>
    %422 = vector.shape_cast %421 : vector<1x1x4x4xf32> to vector<4x4xf32>
    %423 = vector.extract_strided_slice %330 {offsets = [1, 2, 2, 0], sizes = [1, 1, 4, 4], strides = [1, 1, 1, 1]} : vector<2x7x7x4xf32> to vector<1x1x4x4xf32>
    %424 = vector.shape_cast %423 : vector<1x1x4x4xf32> to vector<4x4xf32>
    %425 = tpu.concatenate %408, %410, %412, %414, %416, %418, %420, %422, %424 in 1 : vector<4x4xf32>, vector<4x4xf32>, vector<4x4xf32>, vector<4x4xf32>, vector<4x4xf32>, vector<4x4xf32>, vector<4x4xf32>, vector<4x4xf32>, vector<4x4xf32> -> vector<4x36xf32>
    %426 = vector.extract_strided_slice %330 {offsets = [1, 1, 0, 0], sizes = [1, 1, 4, 4], strides = [1, 1, 1, 1]} : vector<2x7x7x4xf32> to vector<1x1x4x4xf32>
    %427 = vector.shape_cast %426 : vector<1x1x4x4xf32> to vector<4x4xf32>
    %428 = vector.extract_strided_slice %330 {offsets = [1, 1, 1, 0], sizes = [1, 1, 4, 4], strides = [1, 1, 1, 1]} : vector<2x7x7x4xf32> to vector<1x1x4x4xf32>
    %429 = vector.shape_cast %428 : vector<1x1x4x4xf32> to vector<4x4xf32>
    %430 = vector.extract_strided_slice %330 {offsets = [1, 1, 2, 0], sizes = [1, 1, 4, 4], strides = [1, 1, 1, 1]} : vector<2x7x7x4xf32> to vector<1x1x4x4xf32>
    %431 = vector.shape_cast %430 : vector<1x1x4x4xf32> to vector<4x4xf32>
    %432 = vector.extract_strided_slice %330 {offsets = [1, 2, 0, 0], sizes = [1, 1, 4, 4], strides = [1, 1, 1, 1]} : vector<2x7x7x4xf32> to vector<1x1x4x4xf32>
    %433 = vector.shape_cast %432 : vector<1x1x4x4xf32> to vector<4x4xf32>
    %434 = vector.extract_strided_slice %330 {offsets = [1, 2, 1, 0], sizes = [1, 1, 4, 4], strides = [1, 1, 1, 1]} : vector<2x7x7x4xf32> to vector<1x1x4x4xf32>
    %435 = vector.shape_cast %434 : vector<1x1x4x4xf32> to vector<4x4xf32>
    %436 = vector.extract_strided_slice %330 {offsets = [1, 2, 2, 0], sizes = [1, 1, 4, 4], strides = [1, 1, 1, 1]} : vector<2x7x7x4xf32> to vector<1x1x4x4xf32>
    %437 = vector.shape_cast %436 : vector<1x1x4x4xf32> to vector<4x4xf32>
    %438 = vector.extract_strided_slice %330 {offsets = [1, 3, 0, 0], sizes = [1, 1, 4, 4], strides = [1, 1, 1, 1]} : vector<2x7x7x4xf32> to vector<1x1x4x4xf32>
    %439 = vector.shape_cast %438 : vector<1x1x4x4xf32> to vector<4x4xf32>
    %440 = vector.extract_strided_slice %330 {offsets = [1, 3, 1, 0], sizes = [1, 1, 4, 4], strides = [1, 1, 1, 1]} : vector<2x7x7x4xf32> to vector<1x1x4x4xf32>
    %441 = vector.shape_cast %440 : vector<1x1x4x4xf32> to vector<4x4xf32>
    %442 = vector.extract_strided_slice %330 {offsets = [1, 3, 2, 0], sizes = [1, 1, 4, 4], strides = [1, 1, 1, 1]} : vector<2x7x7x4xf32> to vector<1x1x4x4xf32>
    %443 = vector.shape_cast %442 : vector<1x1x4x4xf32> to vector<4x4xf32>
    %444 = tpu.concatenate %427, %429, %431, %433, %435, %437, %439, %441, %443 in 1 : vector<4x4xf32>, vector<4x4xf32>, vector<4x4xf32>, vector<4x4xf32>, vector<4x4xf32>, vector<4x4xf32>, vector<4x4xf32>, vector<4x4xf32>, vector<4x4xf32> -> vector<4x36xf32>
    %445 = vector.extract_strided_slice %330 {offsets = [1, 2, 0, 0], sizes = [1, 1, 4, 4], strides = [1, 1, 1, 1]} : vector<2x7x7x4xf32> to vector<1x1x4x4xf32>
    %446 = vector.shape_cast %445 : vector<1x1x4x4xf32> to vector<4x4xf32>
    %447 = vector.extract_strided_slice %330 {offsets = [1, 2, 1, 0], sizes = [1, 1, 4, 4], strides = [1, 1, 1, 1]} : vector<2x7x7x4xf32> to vector<1x1x4x4xf32>
    %448 = vector.shape_cast %447 : vector<1x1x4x4xf32> to vector<4x4xf32>
    %449 = vector.extract_strided_slice %330 {offsets = [1, 2, 2, 0], sizes = [1, 1, 4, 4], strides = [1, 1, 1, 1]} : vector<2x7x7x4xf32> to vector<1x1x4x4xf32>
    %450 = vector.shape_cast %449 : vector<1x1x4x4xf32> to vector<4x4xf32>
    %451 = vector.extract_strided_slice %330 {offsets = [1, 3, 0, 0], sizes = [1, 1, 4, 4], strides = [1, 1, 1, 1]} : vector<2x7x7x4xf32> to vector<1x1x4x4xf32>
    %452 = vector.shape_cast %451 : vector<1x1x4x4xf32> to vector<4x4xf32>
    %453 = vector.extract_strided_slice %330 {offsets = [1, 3, 1, 0], sizes = [1, 1, 4, 4], strides = [1, 1, 1, 1]} : vector<2x7x7x4xf32> to vector<1x1x4x4xf32>
    %454 = vector.shape_cast %453 : vector<1x1x4x4xf32> to vector<4x4xf32>
    %455 = vector.extract_strided_slice %330 {offsets = [1, 3, 2, 0], sizes = [1, 1, 4, 4], strides = [1, 1, 1, 1]} : vector<2x7x7x4xf32> to vector<1x1x4x4xf32>
    %456 = vector.shape_cast %455 : vector<1x1x4x4xf32> to vector<4x4xf32>
    %457 = vector.extract_strided_slice %330 {offsets = [1, 4, 0, 0], sizes = [1, 1, 4, 4], strides = [1, 1, 1, 1]} : vector<2x7x7x4xf32> to vector<1x1x4x4xf32>
    %458 = vector.shape_cast %457 : vector<1x1x4x4xf32> to vector<4x4xf32>
    %459 = vector.extract_strided_slice %330 {offsets = [1, 4, 1, 0], sizes = [1, 1, 4, 4], strides = [1, 1, 1, 1]} : vector<2x7x7x4xf32> to vector<1x1x4x4xf32>
    %460 = vector.shape_cast %459 : vector<1x1x4x4xf32> to vector<4x4xf32>
    %461 = vector.extract_strided_slice %330 {offsets = [1, 4, 2, 0], sizes = [1, 1, 4, 4], strides = [1, 1, 1, 1]} : vector<2x7x7x4xf32> to vector<1x1x4x4xf32>
    %462 = vector.shape_cast %461 : vector<1x1x4x4xf32> to vector<4x4xf32>
    %463 = tpu.concatenate %446, %448, %450, %452, %454, %456, %458, %460, %462 in 1 : vector<4x4xf32>, vector<4x4xf32>, vector<4x4xf32>, vector<4x4xf32>, vector<4x4xf32>, vector<4x4xf32>, vector<4x4xf32>, vector<4x4xf32>, vector<4x4xf32> -> vector<4x36xf32>
    %464 = vector.extract_strided_slice %330 {offsets = [1, 3, 0, 0], sizes = [1, 1, 4, 4], strides = [1, 1, 1, 1]} : vector<2x7x7x4xf32> to vector<1x1x4x4xf32>
    %465 = vector.shape_cast %464 : vector<1x1x4x4xf32> to vector<4x4xf32>
    %466 = vector.extract_strided_slice %330 {offsets = [1, 3, 1, 0], sizes = [1, 1, 4, 4], strides = [1, 1, 1, 1]} : vector<2x7x7x4xf32> to vector<1x1x4x4xf32>
    %467 = vector.shape_cast %466 : vector<1x1x4x4xf32> to vector<4x4xf32>
    %468 = vector.extract_strided_slice %330 {offsets = [1, 3, 2, 0], sizes = [1, 1, 4, 4], strides = [1, 1, 1, 1]} : vector<2x7x7x4xf32> to vector<1x1x4x4xf32>
    %469 = vector.shape_cast %468 : vector<1x1x4x4xf32> to vector<4x4xf32>
    %470 = vector.extract_strided_slice %330 {offsets = [1, 4, 0, 0], sizes = [1, 1, 4, 4], strides = [1, 1, 1, 1]} : vector<2x7x7x4xf32> to vector<1x1x4x4xf32>
    %471 = vector.shape_cast %470 : vector<1x1x4x4xf32> to vector<4x4xf32>
    %472 = vector.extract_strided_slice %330 {offsets = [1, 4, 1, 0], sizes = [1, 1, 4, 4], strides = [1, 1, 1, 1]} : vector<2x7x7x4xf32> to vector<1x1x4x4xf32>
    %473 = vector.shape_cast %472 : vector<1x1x4x4xf32> to vector<4x4xf32>
    %474 = vector.extract_strided_slice %330 {offsets = [1, 4, 2, 0], sizes = [1, 1, 4, 4], strides = [1, 1, 1, 1]} : vector<2x7x7x4xf32> to vector<1x1x4x4xf32>
    %475 = vector.shape_cast %474 : vector<1x1x4x4xf32> to vector<4x4xf32>
    %476 = vector.extract_strided_slice %330 {offsets = [1, 5, 0, 0], sizes = [1, 1, 4, 4], strides = [1, 1, 1, 1]} : vector<2x7x7x4xf32> to vector<1x1x4x4xf32>
    %477 = vector.shape_cast %476 : vector<1x1x4x4xf32> to vector<4x4xf32>
    %478 = vector.extract_strided_slice %330 {offsets = [1, 5, 1, 0], sizes = [1, 1, 4, 4], strides = [1, 1, 1, 1]} : vector<2x7x7x4xf32> to vector<1x1x4x4xf32>
    %479 = vector.shape_cast %478 : vector<1x1x4x4xf32> to vector<4x4xf32>
    %480 = vector.extract_strided_slice %330 {offsets = [1, 5, 2, 0], sizes = [1, 1, 4, 4], strides = [1, 1, 1, 1]} : vector<2x7x7x4xf32> to vector<1x1x4x4xf32>
    %481 = vector.shape_cast %480 : vector<1x1x4x4xf32> to vector<4x4xf32>
    %482 = tpu.concatenate %465, %467, %469, %471, %473, %475, %477, %479, %481 in 1 : vector<4x4xf32>, vector<4x4xf32>, vector<4x4xf32>, vector<4x4xf32>, vector<4x4xf32>, vector<4x4xf32>, vector<4x4xf32>, vector<4x4xf32>, vector<4x4xf32> -> vector<4x36xf32>
    %483 = tpu.concatenate %349, %368, %387, %406, %425, %444, %463, %482 in 0 : vector<4x36xf32>, vector<4x36xf32>, vector<4x36xf32>, vector<4x36xf32>, vector<4x36xf32>, vector<4x36xf32>, vector<4x36xf32>, vector<4x36xf32> -> vector<32x36xf32>
    %c0_8 = arith.constant 0 : index
    %c0_9 = arith.constant 0 : index
    %484 = vector.load %arg4[%c0_8, %c0_9] : memref<36x128xf32, #tpu.memory_space<vmem>>, vector<36x128xf32>
    %cst_10 = arith.constant dense<0.000000e+00> : vector<32x128xf32>
    %485 = tpu.matmul %483, %484, %cst_10 {dimension_numbers = #tpu.dot_dimension_numbers<[1], [0], [0], [1], [0, 0, 1, 1], [], []>} : vector<32x36xf32>, vector<36x128xf32>, vector<32x128xf32> -> vector<32x128xf32>
    %486 = vector.extract_strided_slice %485 {offsets = [0, 0], sizes = [1, 128], strides = [1, 1]} : vector<32x128xf32> to vector<1x128xf32>
    %487 = vector.extract_strided_slice %485 {offsets = [1, 0], sizes = [1, 128], strides = [1, 1]} : vector<32x128xf32> to vector<1x128xf32>
    %488 = arith.maximumf %486, %487 : vector<1x128xf32>
    %489 = vector.extract_strided_slice %485 {offsets = [4, 0], sizes = [1, 128], strides = [1, 1]} : vector<32x128xf32> to vector<1x128xf32>
    %490 = vector.extract_strided_slice %485 {offsets = [5, 0], sizes = [1, 128], strides = [1, 1]} : vector<32x128xf32> to vector<1x128xf32>
    %491 = arith.maximumf %489, %490 : vector<1x128xf32>
    %492 = arith.maximumf %488, %491 : vector<1x128xf32>
    %493 = vector.extract_strided_slice %485 {offsets = [16, 0], sizes = [1, 128], strides = [1, 1]} : vector<32x128xf32> to vector<1x128xf32>
    %494 = vector.extract_strided_slice %485 {offsets = [17, 0], sizes = [1, 128], strides = [1, 1]} : vector<32x128xf32> to vector<1x128xf32>
    %495 = arith.maximumf %493, %494 : vector<1x128xf32>
    %496 = vector.extract_strided_slice %485 {offsets = [20, 0], sizes = [1, 128], strides = [1, 1]} : vector<32x128xf32> to vector<1x128xf32>
    %497 = vector.extract_strided_slice %485 {offsets = [21, 0], sizes = [1, 128], strides = [1, 1]} : vector<32x128xf32> to vector<1x128xf32>
    %498 = arith.maximumf %496, %497 : vector<1x128xf32>
    %499 = arith.maximumf %495, %498 : vector<1x128xf32>
    %500 = vector.extract_strided_slice %485 {offsets = [2, 0], sizes = [1, 128], strides = [1, 1]} : vector<32x128xf32> to vector<1x128xf32>
    %501 = vector.extract_strided_slice %485 {offsets = [3, 0], sizes = [1, 128], strides = [1, 1]} : vector<32x128xf32> to vector<1x128xf32>
    %502 = arith.maximumf %500, %501 : vector<1x128xf32>
    %503 = vector.extract_strided_slice %485 {offsets = [6, 0], sizes = [1, 128], strides = [1, 1]} : vector<32x128xf32> to vector<1x128xf32>
    %504 = vector.extract_strided_slice %485 {offsets = [7, 0], sizes = [1, 128], strides = [1, 1]} : vector<32x128xf32> to vector<1x128xf32>
    %505 = arith.maximumf %503, %504 : vector<1x128xf32>
    %506 = arith.maximumf %502, %505 : vector<1x128xf32>
    %507 = vector.extract_strided_slice %485 {offsets = [18, 0], sizes = [1, 128], strides = [1, 1]} : vector<32x128xf32> to vector<1x128xf32>
    %508 = vector.extract_strided_slice %485 {offsets = [19, 0], sizes = [1, 128], strides = [1, 1]} : vector<32x128xf32> to vector<1x128xf32>
    %509 = arith.maximumf %507, %508 : vector<1x128xf32>
    %510 = vector.extract_strided_slice %485 {offsets = [22, 0], sizes = [1, 128], strides = [1, 1]} : vector<32x128xf32> to vector<1x128xf32>
    %511 = vector.extract_strided_slice %485 {offsets = [23, 0], sizes = [1, 128], strides = [1, 1]} : vector<32x128xf32> to vector<1x128xf32>
    %512 = arith.maximumf %510, %511 : vector<1x128xf32>
    %513 = arith.maximumf %509, %512 : vector<1x128xf32>
    %514 = vector.extract_strided_slice %485 {offsets = [8, 0], sizes = [1, 128], strides = [1, 1]} : vector<32x128xf32> to vector<1x128xf32>
    %515 = vector.extract_strided_slice %485 {offsets = [9, 0], sizes = [1, 128], strides = [1, 1]} : vector<32x128xf32> to vector<1x128xf32>
    %516 = arith.maximumf %514, %515 : vector<1x128xf32>
    %517 = vector.extract_strided_slice %485 {offsets = [12, 0], sizes = [1, 128], strides = [1, 1]} : vector<32x128xf32> to vector<1x128xf32>
    %518 = vector.extract_strided_slice %485 {offsets = [13, 0], sizes = [1, 128], strides = [1, 1]} : vector<32x128xf32> to vector<1x128xf32>
    %519 = arith.maximumf %517, %518 : vector<1x128xf32>
    %520 = arith.maximumf %516, %519 : vector<1x128xf32>
    %521 = vector.extract_strided_slice %485 {offsets = [24, 0], sizes = [1, 128], strides = [1, 1]} : vector<32x128xf32> to vector<1x128xf32>
    %522 = vector.extract_strided_slice %485 {offsets = [25, 0], sizes = [1, 128], strides = [1, 1]} : vector<32x128xf32> to vector<1x128xf32>
    %523 = arith.maximumf %521, %522 : vector<1x128xf32>
    %524 = vector.extract_strided_slice %485 {offsets = [28, 0], sizes = [1, 128], strides = [1, 1]} : vector<32x128xf32> to vector<1x128xf32>
    %525 = vector.extract_strided_slice %485 {offsets = [29, 0], sizes = [1, 128], strides = [1, 1]} : vector<32x128xf32> to vector<1x128xf32>
    %526 = arith.maximumf %524, %525 : vector<1x128xf32>
    %527 = arith.maximumf %523, %526 : vector<1x128xf32>
    %528 = vector.extract_strided_slice %485 {offsets = [10, 0], sizes = [1, 128], strides = [1, 1]} : vector<32x128xf32> to vector<1x128xf32>
    %529 = vector.extract_strided_slice %485 {offsets = [11, 0], sizes = [1, 128], strides = [1, 1]} : vector<32x128xf32> to vector<1x128xf32>
    %530 = arith.maximumf %528, %529 : vector<1x128xf32>
    %531 = vector.extract_strided_slice %485 {offsets = [14, 0], sizes = [1, 128], strides = [1, 1]} : vector<32x128xf32> to vector<1x128xf32>
    %532 = vector.extract_strided_slice %485 {offsets = [15, 0], sizes = [1, 128], strides = [1, 1]} : vector<32x128xf32> to vector<1x128xf32>
    %533 = arith.maximumf %531, %532 : vector<1x128xf32>
    %534 = arith.maximumf %530, %533 : vector<1x128xf32>
    %535 = vector.extract_strided_slice %485 {offsets = [26, 0], sizes = [1, 128], strides = [1, 1]} : vector<32x128xf32> to vector<1x128xf32>
    %536 = vector.extract_strided_slice %485 {offsets = [27, 0], sizes = [1, 128], strides = [1, 1]} : vector<32x128xf32> to vector<1x128xf32>
    %537 = arith.maximumf %535, %536 : vector<1x128xf32>
    %538 = vector.extract_strided_slice %485 {offsets = [30, 0], sizes = [1, 128], strides = [1, 1]} : vector<32x128xf32> to vector<1x128xf32>
    %539 = vector.extract_strided_slice %485 {offsets = [31, 0], sizes = [1, 128], strides = [1, 1]} : vector<32x128xf32> to vector<1x128xf32>
    %540 = arith.maximumf %538, %539 : vector<1x128xf32>
    %541 = arith.maximumf %537, %540 : vector<1x128xf32>
    %542 = tpu.concatenate %492, %499, %506, %513, %520, %527, %534, %541 in 0 : vector<1x128xf32>, vector<1x128xf32>, vector<1x128xf32>, vector<1x128xf32>, vector<1x128xf32>, vector<1x128xf32>, vector<1x128xf32>, vector<1x128xf32> -> vector<8x128xf32>
    %c0_11 = arith.constant 0 : index
    %c0_12 = arith.constant 0 : index
    %543 = vector.load %arg5[%c0_11, %c0_12] : memref<1x128xf32, #tpu.memory_space<vmem>>, vector<1x128xf32>
    %544 = vector.broadcast %543 : vector<1x128xf32> to vector<8x128xf32>
    %545 = arith.addf %542, %544 : vector<8x128xf32>
    %cst_13 = arith.constant 0.000000e+00 : f32
    %546 = vector.broadcast %cst_13 : f32 to vector<8x128xf32>
    %547 = arith.maximumf %545, %546 : vector<8x128xf32>
    %548 = vector.extract_strided_slice %547 {offsets = [0, 0], sizes = [2, 128], strides = [1, 1]} : vector<8x128xf32> to vector<2x128xf32>
    %c0_14 = arith.constant 0 : index
    %c0_15 = arith.constant 0 : index
    %c0_16 = arith.constant 0 : index
    %549 = vector.load %arg6[%c0_14, %c0_15, %c0_16] : memref<4x128x2xf32, #tpu.memory_space<vmem>>, vector<1x128x2xf32>
    %550 = vector.shape_cast %549 : vector<1x128x2xf32> to vector<128x2xf32>
    %cst_17 = arith.constant dense<0.000000e+00> : vector<2x2xf32>
    %551 = tpu.matmul %548, %550, %cst_17 {dimension_numbers = #tpu.dot_dimension_numbers<[1], [0], [0], [1], [0, 0, 1, 1], [], []>} : vector<2x128xf32>, vector<128x2xf32>, vector<2x2xf32> -> vector<2x2xf32>
    %552 = vector.extract_strided_slice %547 {offsets = [2, 0], sizes = [2, 128], strides = [1, 1]} : vector<8x128xf32> to vector<2x128xf32>
    %c1 = arith.constant 1 : index
    %c0_18 = arith.constant 0 : index
    %c0_19 = arith.constant 0 : index
    %553 = vector.load %arg6[%c1, %c0_18, %c0_19] : memref<4x128x2xf32, #tpu.memory_space<vmem>>, vector<1x128x2xf32>
    %554 = vector.shape_cast %553 : vector<1x128x2xf32> to vector<128x2xf32>
    %cst_20 = arith.constant dense<0.000000e+00> : vector<2x2xf32>
    %555 = tpu.matmul %552, %554, %cst_20 {dimension_numbers = #tpu.dot_dimension_numbers<[1], [0], [0], [1], [0, 0, 1, 1], [], []>} : vector<2x128xf32>, vector<128x2xf32>, vector<2x2xf32> -> vector<2x2xf32>
    %556 = arith.addf %551, %555 : vector<2x2xf32>
    %557 = vector.extract_strided_slice %547 {offsets = [4, 0], sizes = [2, 128], strides = [1, 1]} : vector<8x128xf32> to vector<2x128xf32>
    %c2 = arith.constant 2 : index
    %c0_21 = arith.constant 0 : index
    %c0_22 = arith.constant 0 : index
    %558 = vector.load %arg6[%c2, %c0_21, %c0_22] : memref<4x128x2xf32, #tpu.memory_space<vmem>>, vector<1x128x2xf32>
    %559 = vector.shape_cast %558 : vector<1x128x2xf32> to vector<128x2xf32>
    %cst_23 = arith.constant dense<0.000000e+00> : vector<2x2xf32>
    %560 = tpu.matmul %557, %559, %cst_23 {dimension_numbers = #tpu.dot_dimension_numbers<[1], [0], [0], [1], [0, 0, 1, 1], [], []>} : vector<2x128xf32>, vector<128x2xf32>, vector<2x2xf32> -> vector<2x2xf32>
    %561 = arith.addf %556, %560 : vector<2x2xf32>
    %562 = vector.extract_strided_slice %547 {offsets = [6, 0], sizes = [2, 128], strides = [1, 1]} : vector<8x128xf32> to vector<2x128xf32>
    %c3 = arith.constant 3 : index
    %c0_24 = arith.constant 0 : index
    %c0_25 = arith.constant 0 : index
    %563 = vector.load %arg6[%c3, %c0_24, %c0_25] : memref<4x128x2xf32, #tpu.memory_space<vmem>>, vector<1x128x2xf32>
    %564 = vector.shape_cast %563 : vector<1x128x2xf32> to vector<128x2xf32>
    %cst_26 = arith.constant dense<0.000000e+00> : vector<2x2xf32>
    %565 = tpu.matmul %562, %564, %cst_26 {dimension_numbers = #tpu.dot_dimension_numbers<[1], [0], [0], [1], [0, 0, 1, 1], [], []>} : vector<2x128xf32>, vector<128x2xf32>, vector<2x2xf32> -> vector<2x2xf32>
    %566 = arith.addf %561, %565 : vector<2x2xf32>
    %c0_27 = arith.constant 0 : index
    %c0_28 = arith.constant 0 : index
    %567 = vector.load %arg7[%c0_27, %c0_28] : memref<1x2xf32, #tpu.memory_space<vmem>>, vector<1x2xf32>
    %568 = vector.broadcast %567 : vector<1x2xf32> to vector<2x2xf32>
    %569 = arith.addf %566, %568 : vector<2x2xf32>
    %c0_29 = arith.constant 0 : index
    %c0_30 = arith.constant 0 : index
    %570 = vector.load %arg8[%c0_29, %c0_30] : memref<2x2xf32, #tpu.memory_space<vmem>>, vector<2x2xf32>
    tpu.vector_store %arg8[%c0_29, %c0_30], %569 {strides = array<i32>} : memref<2x2xf32, #tpu.memory_space<vmem>>, vector<2x2xf32>,
    return
  }
  func.func @transform_0(%arg0: i32) -> (i32, i32, i32, i32, i32) {
    %c0_i32 = arith.constant 0 : i32
    %c0_i32_0 = arith.constant 0 : i32
    %c0_i32_1 = arith.constant 0 : i32
    %c0_i32_2 = arith.constant 0 : i32
    %c0_i32_3 = arith.constant 0 : i32
    %c0_i32_4 = arith.constant 0 : i32
    return %c0_i32, %c0_i32_0, %c0_i32_1, %c0_i32_2, %c0_i32_3 : i32, i32, i32, i32, i32
  }
  func.func @transform_1(%arg0: i32) -> (i32, i32) {
    %c0_i32 = arith.constant 0 : i32
    %c0_i32_0 = arith.constant 0 : i32
    %c0_i32_1 = arith.constant 0 : i32
    return %c0_i32, %c0_i32_0 : i32, i32
  }
  func.func @transform_2(%arg0: i32) -> (i32, i32) {
    %c0_i32 = arith.constant 0 : i32
    %c0_i32_0 = arith.constant 0 : i32
    %c0_i32_1 = arith.constant 0 : i32
    return %c0_i32, %c0_i32_0 : i32, i32
  }
  func.func @transform_3(%arg0: i32) -> (i32, i32) {
    %c0_i32 = arith.constant 0 : i32
    %c0_i32_0 = arith.constant 0 : i32
    %c0_i32_1 = arith.constant 0 : i32
    return %c0_i32, %c0_i32_0 : i32, i32
  }
  func.func @transform_4(%arg0: i32) -> (i32, i32) {
    %c0_i32 = arith.constant 0 : i32
    %c0_i32_0 = arith.constant 0 : i32
    %c0_i32_1 = arith.constant 0 : i32
    return %c0_i32, %c0_i32_0 : i32, i32
  }
  func.func @transform_5(%arg0: i32) -> (i32, i32, i32) {
    %c0_i32 = arith.constant 0 : i32
    %c0_i32_0 = arith.constant 0 : i32
    %c0_i32_1 = arith.constant 0 : i32
    %c0_i32_2 = arith.constant 0 : i32
    return %c0_i32, %c0_i32_0, %c0_i32_1 : i32, i32, i32
  }
  func.func @transform_6(%arg0: i32) -> (i32, i32) {
    %c0_i32 = arith.constant 0 : i32
    %c0_i32_0 = arith.constant 0 : i32
    %c0_i32_1 = arith.constant 0 : i32
    return %c0_i32, %c0_i32_0 : i32, i32
  }
  func.func @transform_7(%arg0: i32) -> (i32, i32) {
    %c0_i32 = arith.constant 0 : i32
    %c0_i32_0 = arith.constant 0 : i32
    %c0_i32_1 = arith.constant 0 : i32
    return %c0_i32, %c0_i32_0 : i32, i32
  }
}

</mosaic_0001>

<llo_original>
// kernel: squeeze.1
$region0: #{squeeze.1}
  %s0 = inlined_call_operand.vmem [shape: f32[2,1,16,16], index: 0, kind: input, shape index: {}]
  %s1 = inlined_call_operand.vmem [shape: f32[2,8,2,8,2], index: 1, kind: output, shape index: {}]
  %v2 = vld [vmem:[%s0] sm:$0xff]
  %vm3 = vcmask 15360
  %4 = vst.msk [vmem:[%s1] ss:$8 sm:$0xf] %vm3, %v2
  %5 = vst.msk [vmem:[%s1] ss:$8 sm:$0xf0] %vm3, %v2
  %s6 = scalar_lea.vmem %s0, 8
  %v7 = vld [vmem:[%s6] sm:$0xff]
  %vm8 = vcmask 15360
  %s9 = scalar_lea.vmem %s1, 64
  %10 = vst.msk [vmem:[%s9] ss:$8 sm:$0xf] %vm8, %v7
  %s11 = scalar_lea.vmem %s1, 64
  %12 = vst.msk [vmem:[%s11] ss:$8 sm:$0xf0] %vm8, %v7
  %s13 = scalar_lea.vmem %s0, 16
  %v14 = vld [vmem:[%s13] sm:$0xff]
  %vm15 = vcmask 15360
  %s16 = scalar_lea.vmem %s1, 128
  %17 = vst.msk [vmem:[%s16] ss:$8 sm:$0xf] %vm15, %v14
  %s18 = scalar_lea.vmem %s1, 128
  %19 = vst.msk [vmem:[%s18] ss:$8 sm:$0xf0] %vm15, %v14
  %s20 = scalar_lea.vmem %s0, 24
  %v21 = vld [vmem:[%s20] sm:$0xff]
  %vm22 = vcmask 15360
  %s23 = scalar_lea.vmem %s1, 192
  %24 = vst.msk [vmem:[%s23] ss:$8 sm:$0xf] %vm22, %v21
  %s25 = scalar_lea.vmem %s1, 192
  %26 = vst.msk [vmem:[%s25] ss:$8 sm:$0xf0] %vm22, %v21
  %v27 = vld [vmem:[%s0] sm:$0xff]
  %28 = vrot.lane.b32.xlu0 %v27, 126
  %v29 = vpop.permute.xlu0 %28
  %vm30 = vcmask 15360
  %s31 = scalar_lea.vmem %s1, 1
  %32 = vst.msk [vmem:[%s31] ss:$8 sm:$0xf] %vm30, %v29
  %s33 = scalar_lea.vmem %s1, 1
  %34 = vst.msk [vmem:[%s33] ss:$8 sm:$0xf0] %vm30, %v29
  %s35 = scalar_lea.vmem %s0, 8
  %v36 = vld [vmem:[%s35] sm:$0xff]
  %37 = vrot.lane.b32.xlu0 %v36, 126
  %v38 = vpop.permute.xlu0 %37
  %vm39 = vcmask 15360
  %s40 = scalar_lea.vmem %s1, 65
  %41 = vst.msk [vmem:[%s40] ss:$8 sm:$0xf] %vm39, %v38
  %s42 = scalar_lea.vmem %s1, 65
  %43 = vst.msk [vmem:[%s42] ss:$8 sm:$0xf0] %vm39, %v38
  %s44 = scalar_lea.vmem %s0, 16
  %v45 = vld [vmem:[%s44] sm:$0xff]
  %46 = vrot.lane.b32.xlu0 %v45, 126
  %v47 = vpop.permute.xlu0 %46
  %vm48 = vcmask 15360
  %s49 = scalar_lea.vmem %s1, 129
  %50 = vst.msk [vmem:[%s49] ss:$8 sm:$0xf] %vm48, %v47
  %s51 = scalar_lea.vmem %s1, 129
  %52 = vst.msk [vmem:[%s51] ss:$8 sm:$0xf0] %vm48, %v47
  %s53 = scalar_lea.vmem %s0, 24
  %v54 = vld [vmem:[%s53] sm:$0xff]
  %55 = vrot.lane.b32.xlu0 %v54, 126
  %v56 = vpop.permute.xlu0 %55
  %vm57 = vcmask 15360
  %s58 = scalar_lea.vmem %s1, 193
  %59 = vst.msk [vmem:[%s58] ss:$8 sm:$0xf] %vm57, %v56
  %s60 = scalar_lea.vmem %s1, 193
  %61 = vst.msk [vmem:[%s60] ss:$8 sm:$0xf0] %vm57, %v56
  %v62 = vld [vmem:[%s0] sm:$0xff]
  %63 = vrot.lane.b32.xlu0 %v62, 124
  %v64 = vpop.permute.xlu0 %63
  %vm65 = vcmask 15360
  %s66 = scalar_lea.vmem %s1, 2
  %67 = vst.msk [vmem:[%s66] ss:$8 sm:$0xf] %vm65, %v64
  %s68 = scalar_lea.vmem %s1, 2
  %69 = vst.msk [vmem:[%s68] ss:$8 sm:$0xf0] %vm65, %v64
  %s70 = scalar_lea.vmem %s0, 8
  %v71 = vld [vmem:[%s70] sm:$0xff]
  %72 = vrot.lane.b32.xlu0 %v71, 124
  %v73 = vpop.permute.xlu0 %72
  %vm74 = vcmask 15360
  %s75 = scalar_lea.vmem %s1, 66
  %76 = vst.msk [vmem:[%s75] ss:$8 sm:$0xf] %vm74, %v73
  %s77 = scalar_lea.vmem %s1, 66
  %78 = vst.msk [vmem:[%s77] ss:$8 sm:$0xf0] %vm74, %v73
  %s79 = scalar_lea.vmem %s0, 16
  %v80 = vld [vmem:[%s79] sm:$0xff]
  %81 = vrot.lane.b32.xlu0 %v80, 124
  %v82 = vpop.permute.xlu0 %81
  %vm83 = vcmask 15360
  %s84 = scalar_lea.vmem %s1, 130
  %85 = vst.msk [vmem:[%s84] ss:$8 sm:$0xf] %vm83, %v82
  %s86 = scalar_lea.vmem %s1, 130
  %87 = vst.msk [vmem:[%s86] ss:$8 sm:$0xf0] %vm83, %v82
  %s88 = scalar_lea.vmem %s0, 24
  %v89 = vld [vmem:[%s88] sm:$0xff]
  %90 = vrot.lane.b32.xlu0 %v89, 124
  %v91 = vpop.permute.xlu0 %90
  %vm92 = vcmask 15360
  %s93 = scalar_lea.vmem %s1, 194
  %94 = vst.msk [vmem:[%s93] ss:$8 sm:$0xf] %vm92, %v91
  %s95 = scalar_lea.vmem %s1, 194
  %96 = vst.msk [vmem:[%s95] ss:$8 sm:$0xf0] %vm92, %v91
  %v97 = vld [vmem:[%s0] sm:$0xff]
  %98 = vrot.lane.b32.xlu0 %v97, 122
  %v99 = vpop.permute.xlu0 %98
  %vm100 = vcmask 15360
  %s101 = scalar_lea.vmem %s1, 3
  %102 = vst.msk [vmem:[%s101] ss:$8 sm:$0xf] %vm100, %v99
  %s103 = scalar_lea.vmem %s1, 3
  %104 = vst.msk [vmem:[%s103] ss:$8 sm:$0xf0] %vm100, %v99
  %s105 = scalar_lea.vmem %s0, 8
  %v106 = vld [vmem:[%s105] sm:$0xff]
  %107 = vrot.lane.b32.xlu0 %v106, 122
  %v108 = vpop.permute.xlu0 %107
  %vm109 = vcmask 15360
  %s110 = scalar_lea.vmem %s1, 67
  %111 = vst.msk [vmem:[%s110] ss:$8 sm:$0xf] %vm109, %v108
  %s112 = scalar_lea.vmem %s1, 67
  %113 = vst.msk [vmem:[%s112] ss:$8 sm:$0xf0] %vm109, %v108
  %s114 = scalar_lea.vmem %s0, 16
  %v115 = vld [vmem:[%s114] sm:$0xff]
  %116 = vrot.lane.b32.xlu0 %v115, 122
  %v117 = vpop.permute.xlu0 %116
  %vm118 = vcmask 15360
  %s119 = scalar_lea.vmem %s1, 131
  %120 = vst.msk [vmem:[%s119] ss:$8 sm:$0xf] %vm118, %v117
  %s121 = scalar_lea.vmem %s1, 131
  %122 = vst.msk [vmem:[%s121] ss:$8 sm:$0xf0] %vm118, %v117
  %s123 = scalar_lea.vmem %s0, 24
  %v124 = vld [vmem:[%s123] sm:$0xff]
  %125 = vrot.lane.b32.xlu0 %v124, 122
  %v126 = vpop.permute.xlu0 %125
  %vm127 = vcmask 15360
  %s128 = scalar_lea.vmem %s1, 195
  %129 = vst.msk [vmem:[%s128] ss:$8 sm:$0xf] %vm127, %v126
  %s130 = scalar_lea.vmem %s1, 195
  %131 = vst.msk [vmem:[%s130] ss:$8 sm:$0xf0] %vm127, %v126
  %v132 = vld [vmem:[%s0] sm:$0xff]
  %133 = vrot.lane.b32.xlu0 %v132, 120
  %v134 = vpop.permute.xlu0 %133
  %vm135 = vcmask 15360
  %s136 = scalar_lea.vmem %s1, 4
  %137 = vst.msk [vmem:[%s136] ss:$8 sm:$0xf] %vm135, %v134
  %s138 = scalar_lea.vmem %s1, 4
  %139 = vst.msk [vmem:[%s138] ss:$8 sm:$0xf0] %vm135, %v134
  %s140 = scalar_lea.vmem %s0, 8
  %v141 = vld [vmem:[%s140] sm:$0xff]
  %142 = vrot.lane.b32.xlu0 %v141, 120
  %v143 = vpop.permute.xlu0 %142
  %vm144 = vcmask 15360
  %s145 = scalar_lea.vmem %s1, 68
  %146 = vst.msk [vmem:[%s145] ss:$8 sm:$0xf] %vm144, %v143
  %s147 = scalar_lea.vmem %s1, 68
  %148 = vst.msk [vmem:[%s147] ss:$8 sm:$0xf0] %vm144, %v143
  %s149 = scalar_lea.vmem %s0, 16
  %v150 = vld [vmem:[%s149] sm:$0xff]
  %151 = vrot.lane.b32.xlu0 %v150, 120
  %v152 = vpop.permute.xlu0 %151
  %vm153 = vcmask 15360
  %s154 = scalar_lea.vmem %s1, 132
  %155 = vst.msk [vmem:[%s154] ss:$8 sm:$0xf] %vm153, %v152
  %s156 = scalar_lea.vmem %s1, 132
  %157 = vst.msk [vmem:[%s156] ss:$8 sm:$0xf0] %vm153, %v152
  %s158 = scalar_lea.vmem %s0, 24
  %v159 = vld [vmem:[%s158] sm:$0xff]
  %160 = vrot.lane.b32.xlu0 %v159, 120
  %v161 = vpop.permute.xlu0 %160
  %vm162 = vcmask 15360
  %s163 = scalar_lea.vmem %s1, 196
  %164 = vst.msk [vmem:[%s163] ss:$8 sm:$0xf] %vm162, %v161
  %s165 = scalar_lea.vmem %s1, 196
  %166 = vst.msk [vmem:[%s165] ss:$8 sm:$0xf0] %vm162, %v161
  %v167 = vld [vmem:[%s0] sm:$0xff]
  %168 = vrot.lane.b32.xlu0 %v167, 118
  %v169 = vpop.permute.xlu0 %168
  %vm170 = vcmask 15360
  %s171 = scalar_lea.vmem %s1, 5
  %172 = vst.msk [vmem:[%s171] ss:$8 sm:$0xf] %vm170, %v169
  %s173 = scalar_lea.vmem %s1, 5
  %174 = vst.msk [vmem:[%s173] ss:$8 sm:$0xf0] %vm170, %v169
  %s175 = scalar_lea.vmem %s0, 8
  %v176 = vld [vmem:[%s175] sm:$0xff]
  %177 = vrot.lane.b32.xlu0 %v176, 118
  %v178 = vpop.permute.xlu0 %177
  %vm179 = vcmask 15360
  %s180 = scalar_lea.vmem %s1, 69
  %181 = vst.msk [vmem:[%s180] ss:$8 sm:$0xf] %vm179, %v178
  %s182 = scalar_lea.vmem %s1, 69
  %183 = vst.msk [vmem:[%s182] ss:$8 sm:$0xf0] %vm179, %v178
  %s184 = scalar_lea.vmem %s0, 16
  %v185 = vld [vmem:[%s184] sm:$0xff]
  %186 = vrot.lane.b32.xlu0 %v185, 118
  %v187 = vpop.permute.xlu0 %186
  %vm188 = vcmask 15360
  %s189 = scalar_lea.vmem %s1, 133
  %190 = vst.msk [vmem:[%s189] ss:$8 sm:$0xf] %vm188, %v187
  %s191 = scalar_lea.vmem %s1, 133
  %192 = vst.msk [vmem:[%s191] ss:$8 sm:$0xf0] %vm188, %v187
  %s193 = scalar_lea.vmem %s0, 24
  %v194 = vld [vmem:[%s193] sm:$0xff]
  %195 = vrot.lane.b32.xlu0 %v194, 118
  %v196 = vpop.permute.xlu0 %195
  %vm197 = vcmask 15360
  %s198 = scalar_lea.vmem %s1, 197
  %199 = vst.msk [vmem:[%s198] ss:$8 sm:$0xf] %vm197, %v196
  %s200 = scalar_lea.vmem %s1, 197
  %201 = vst.msk [vmem:[%s200] ss:$8 sm:$0xf0] %vm197, %v196
  %v202 = vld [vmem:[%s0] sm:$0xff]
  %203 = vrot.lane.b32.xlu0 %v202, 116
  %v204 = vpop.permute.xlu0 %203
  %vm205 = vcmask 15360
  %s206 = scalar_lea.vmem %s1, 6
  %207 = vst.msk [vmem:[%s206] ss:$8 sm:$0xf] %vm205, %v204
  %s208 = scalar_lea.vmem %s1, 6
  %209 = vst.msk [vmem:[%s208] ss:$8 sm:$0xf0] %vm205, %v204
  %s210 = scalar_lea.vmem %s0, 8
  %v211 = vld [vmem:[%s210] sm:$0xff]
  %212 = vrot.lane.b32.xlu0 %v211, 116
  %v213 = vpop.permute.xlu0 %212
  %vm214 = vcmask 15360
  %s215 = scalar_lea.vmem %s1, 70
  %216 = vst.msk [vmem:[%s215] ss:$8 sm:$0xf] %vm214, %v213
  %s217 = scalar_lea.vmem %s1, 70
  %218 = vst.msk [vmem:[%s217] ss:$8 sm:$0xf0] %vm214, %v213
  %s219 = scalar_lea.vmem %s0, 16
  %v220 = vld [vmem:[%s219] sm:$0xff]
  %221 = vrot.lane.b32.xlu0 %v220, 116
  %v222 = vpop.permute.xlu0 %221
  %vm223 = vcmask 15360
  %s224 = scalar_lea.vmem %s1, 134
  %225 = vst.msk [vmem:[%s224] ss:$8 sm:$0xf] %vm223, %v222
  %s226 = scalar_lea.vmem %s1, 134
  %227 = vst.msk [vmem:[%s226] ss:$8 sm:$0xf0] %vm223, %v222
  %s228 = scalar_lea.vmem %s0, 24
  %v229 = vld [vmem:[%s228] sm:$0xff]
  %230 = vrot.lane.b32.xlu0 %v229, 116
  %v231 = vpop.permute.xlu0 %230
  %vm232 = vcmask 15360
  %s233 = scalar_lea.vmem %s1, 198
  %234 = vst.msk [vmem:[%s233] ss:$8 sm:$0xf] %vm232, %v231
  %s235 = scalar_lea.vmem %s1, 198
  %236 = vst.msk [vmem:[%s235] ss:$8 sm:$0xf0] %vm232, %v231
  %v237 = vld [vmem:[%s0] sm:$0xff]
  %238 = vrot.lane.b32.xlu0 %v237, 114
  %v239 = vpop.permute.xlu0 %238
  %vm240 = vcmask 15360
  %s241 = scalar_lea.vmem %s1, 7
  %242 = vst.msk [vmem:[%s241] ss:$8 sm:$0xf] %vm240, %v239
  %s243 = scalar_lea.vmem %s1, 7
  %244 = vst.msk [vmem:[%s243] ss:$8 sm:$0xf0] %vm240, %v239
  %s245 = scalar_lea.vmem %s0, 8
  %v246 = vld [vmem:[%s245] sm:$0xff]
  %247 = vrot.lane.b32.xlu0 %v246, 114
  %v248 = vpop.permute.xlu0 %247
  %vm249 = vcmask 15360
  %s250 = scalar_lea.vmem %s1, 71
  %251 = vst.msk [vmem:[%s250] ss:$8 sm:$0xf] %vm249, %v248
  %s252 = scalar_lea.vmem %s1, 71
  %253 = vst.msk [vmem:[%s252] ss:$8 sm:$0xf0] %vm249, %v248
  %s254 = scalar_lea.vmem %s0, 16
  %v255 = vld [vmem:[%s254] sm:$0xff]
  %256 = vrot.lane.b32.xlu0 %v255, 114
  %v257 = vpop.permute.xlu0 %256
  %vm258 = vcmask 15360
  %s259 = scalar_lea.vmem %s1, 135
  %260 = vst.msk [vmem:[%s259] ss:$8 sm:$0xf] %vm258, %v257
  %s261 = scalar_lea.vmem %s1, 135
  %262 = vst.msk [vmem:[%s261] ss:$8 sm:$0xf0] %vm258, %v257
  %s263 = scalar_lea.vmem %s0, 24
  %v264 = vld [vmem:[%s263] sm:$0xff]
  %265 = vrot.lane.b32.xlu0 %v264, 114
  %v266 = vpop.permute.xlu0 %265
  %vm267 = vcmask 15360
  %s268 = scalar_lea.vmem %s1, 199
  %269 = vst.msk [vmem:[%s268] ss:$8 sm:$0xf] %vm267, %v266
  %s270 = scalar_lea.vmem %s1, 199
  %271 = vst.msk [vmem:[%s270] ss:$8 sm:$0xf0] %vm267, %v266

// kernel: selfnet_forward_pallas.1
$region0: #{selfnet_forward_pallas.1}
  #allocation0 [shape = 'u32[]', space=smem, size = 0x4, offset = 0x4, fixed_abs, tag = 'smem constant byte address 0x4 - core index']
  #allocation1 [shape = 'u32[144,128]{1,0:T(1,128)}', space=vmem, size = 0x12000, scoped, tag = 'internal scratch']
  %s0 = inlined_call_operand.vmem [shape: f32[2,4,8,8,1], index: 0, kind: input, shape index: {}]
  %s1 = inlined_call_operand.vmem [shape: f32[9,4], index: 1, kind: input, shape index: {}]
  %s2 = inlined_call_operand.vmem [shape: f32[1,4], index: 2, kind: input, shape index: {}]
  %s3 = inlined_call_operand.vmem [shape: f32[36,128], index: 3, kind: input, shape index: {}]
  %s4 = inlined_call_operand.vmem [shape: f32[1,128], index: 4, kind: input, shape index: {}]
  %s5 = inlined_call_operand.vmem [shape: f32[4,128,2], index: 5, kind: input, shape index: {}]
  %s6 = inlined_call_operand.vmem [shape: f32[1,2], index: 6, kind: input, shape index: {}]
  %s7 = inlined_call_operand.hbm [shape: f32[2,2], index: 7, kind: output, shape index: {}]
  %s8 = sld [smem:[#allocation0]]
  $region38: #{selfnet_forward_pallas.1} parent=0
    _
  %s10 = ssub.s32 1, %s8
  %s11 = scalar_select 0, %s10, %s8
  $region1: #{selfnet_forward_pallas.1} parent=0
    #allocation2 [shape = 'u8[1024]{0}', space=vmem, size = 0x400, scoped, tag = 'output window, operand 0, single buffered']
    #allocation3 [shape = 's32[1]{0}', space=sflag, size = 0x4, scoped, tag = 'scoped memory for selfnet_forward_pallas.1']
    %12 = vsyncpa [#allocation3], 0
    // Predicated region
    $region2: #{selfnet_forward_pallas.1} parent=1 // pred_check
      _
    $region3: #{selfnet_forward_pallas.1} parent=1 // pred_check_branch
      %14 = sbr.rel (0) target = $region5
    $region4: #{selfnet_forward_pallas.1} parent=1 // pred_region
      _
    $region5: #{selfnet_forward_pallas.1} parent=1 // pred_fallthru
      _
    // Predicated region
    $region6: #{selfnet_forward_pallas.1} parent=1 // pred_check
      _
    $region7: #{selfnet_forward_pallas.1} parent=1 // pred_check_branch
      %16 = sbr.rel (0) target = $region9
    $region8: #{selfnet_forward_pallas.1} parent=1 // pred_region
      _
    $region9: #{selfnet_forward_pallas.1} parent=1 // pred_fallthru
      _
    // Predicated region
    $region10: #{selfnet_forward_pallas.1} parent=1 // pred_check
      _
    $region11: #{selfnet_forward_pallas.1} parent=1 // pred_check_branch
      %18 = sbr.rel (0) target = $region13
    $region12: #{selfnet_forward_pallas.1} parent=1 // pred_region
      _
    $region13: #{selfnet_forward_pallas.1} parent=1 // pred_fallthru
      _
    // Predicated region
    $region14: #{selfnet_forward_pallas.1} parent=1 // pred_check
      _
    $region15: #{selfnet_forward_pallas.1} parent=1 // pred_check_branch
      %20 = sbr.rel (0) target = $region17
    $region16: #{selfnet_forward_pallas.1} parent=1 // pred_region
      _
    $region17: #{selfnet_forward_pallas.1} parent=1 // pred_fallthru
      _
    // Predicated region
    $region18: #{selfnet_forward_pallas.1} parent=1 // pred_check
      _
    $region19: #{selfnet_forward_pallas.1} parent=1 // pred_check_branch
      %22 = sbr.rel (0) target = $region21
    $region20: #{selfnet_forward_pallas.1} parent=1 // pred_region
      _
    $region21: #{selfnet_forward_pallas.1} parent=1 // pred_fallthru
      _
    // Predicated region
    $region22: #{selfnet_forward_pallas.1} parent=1 // pred_check
      _
    $region23: #{selfnet_forward_pallas.1} parent=1 // pred_check_branch
      %24 = sbr.rel (0) target = $region25
    $region24: #{selfnet_forward_pallas.1} parent=1 // pred_region
      _
    $region25: #{selfnet_forward_pallas.1} parent=1 // pred_fallthru
      _
    // Predicated region
    $region26: #{selfnet_forward_pallas.1} parent=1 // pred_check
      _
    $region27: #{selfnet_forward_pallas.1} parent=1 // pred_check_branch
      %26 = sbr.rel (0) target = $region29
    $region28: #{selfnet_forward_pallas.1} parent=1 // pred_region
      _
    $region29: #{selfnet_forward_pallas.1} parent=1 // pred_fallthru
      _
    %v27 = vld [vmem:[%s0] sm:$0xff]
    %v28 = vld [vmem:[%s0 + $0x8] sm:$0xff]
    %v29 = vld [vmem:[%s0 + $0x10] sm:$0xff]
    %v30 = vld [vmem:[%s0 + $0x18] sm:$0xff]
    %v31 = vld [vmem:[%s0 + $0x20] sm:$0xff]
    %v32 = vld [vmem:[%s0 + $0x28] sm:$0xff]
    %v33 = vld [vmem:[%s0 + $0x30] sm:$0xff]
    %v34 = vld [vmem:[%s0 + $0x40] sm:$0xff]
    %v35 = vld [vmem:[%s0 + $0x48] sm:$0xff]
    %v36 = vld [vmem:[%s0 + $0x50] sm:$0xff]
    %v37 = vld [vmem:[%s0 + $0x58] sm:$0xff]
    %v38 = vld [vmem:[%s0 + $0x60] sm:$0xff]
    %v39 = vld [vmem:[%s0 + $0x68] sm:$0xff]
    %v40 = vld [vmem:[%s0 + $0x70] sm:$0xff]
    %v41 = vld [vmem:[%s0 + $0x80] sm:$0xff]
    %v42 = vld [vmem:[%s0 + $0x88] sm:$0xff]
    %v43 = vld [vmem:[%s0 + $0x90] sm:$0xff]
    %v44 = vld [vmem:[%s0 + $0x98] sm:$0xff]
    %v45 = vld [vmem:[%s0 + $0xa0] sm:$0xff]
    %v46 = vld [vmem:[%s0 + $0xa8] sm:$0xff]
    %v47 = vld [vmem:[%s0 + $0xb0] sm:$0xff]
    %v48 = vld [vmem:[%s0 + $0xc0] sm:$0xff]
    %v49 = vld [vmem:[%s0 + $0xc8] sm:$0xff]
    %v50 = vld [vmem:[%s0 + $0xd0] sm:$0xff]
    %v51 = vld [vmem:[%s0 + $0xd8] sm:$0xff]
    %v52 = vld [vmem:[%s0 + $0xe0] sm:$0xff]
    %v53 = vld [vmem:[%s0 + $0xe8] sm:$0xff]
    %v54 = vld [vmem:[%s0 + $0xf0] sm:$0xff]
    %v55 = vld [vmem:[%s0 + $0x100] sm:$0xff]
    %v56 = vld [vmem:[%s0 + $0x108] sm:$0xff]
    %v57 = vld [vmem:[%s0 + $0x110] sm:$0xff]
    %v58 = vld [vmem:[%s0 + $0x118] sm:$0xff]
    %v59 = vld [vmem:[%s0 + $0x120] sm:$0xff]
    %v60 = vld [vmem:[%s0 + $0x128] sm:$0xff]
    %v61 = vld [vmem:[%s0 + $0x130] sm:$0xff]
    %v62 = vld [vmem:[%s0 + $0x140] sm:$0xff]
    %v63 = vld [vmem:[%s0 + $0x148] sm:$0xff]
    %v64 = vld [vmem:[%s0 + $0x150] sm:$0xff]
    %v65 = vld [vmem:[%s0 + $0x158] sm:$0xff]
    %v66 = vld [vmem:[%s0 + $0x160] sm:$0xff]
    %v67 = vld [vmem:[%s0 + $0x168] sm:$0xff]
    %v68 = vld [vmem:[%s0 + $0x170] sm:$0xff]
    %v69 = vld [vmem:[%s0 + $0x180] sm:$0xff]
    %v70 = vld [vmem:[%s0 + $0x188] sm:$0xff]
    %v71 = vld [vmem:[%s0 + $0x190] sm:$0xff]
    %v72 = vld [vmem:[%s0 + $0x198] sm:$0xff]
    %v73 = vld [vmem:[%s0 + $0x1a0] sm:$0xff]
    %v74 = vld [vmem:[%s0 + $0x1a8] sm:$0xff]
    %v75 = vld [vmem:[%s0 + $0x1b0] sm:$0xff]
    %v76 = vld [vmem:[%s0 + $0x1c0] sm:$0xff]
    %v77 = vld [vmem:[%s0 + $0x1c8] sm:$0xff]
    %v78 = vld [vmem:[%s0 + $0x1d0] sm:$0xff]
    %v79 = vld [vmem:[%s0 + $0x1d8] sm:$0xff]
    %v80 = vld [vmem:[%s0 + $0x1e0] sm:$0xff]
    %v81 = vld [vmem:[%s0 + $0x1e8] sm:$0xff]
    %v82 = vld [vmem:[%s0 + $0x1f0] sm:$0xff]
    %v83 = vld [vmem:[%s1] sm:$0xff]
    %v84 = vld [vmem:[%s1 + $0x8] sm:$0x1]
    %86 = vset.pattern.permute.xlu0 0
    %87 = vperm.xlu0 %86, %v27
    %v88 = vpop.permute.xlu0 %87
    %91 = vset.pattern.permute.xlu0 0
    %92 = vperm.xlu0 %91, %v28
    %v93 = vpop.permute.xlu0 %92
    %96 = vset.pattern.permute.xlu0 0
    %97 = vperm.xlu0 %96, %v29
    %v98 = vpop.permute.xlu0 %97
    %101 = vset.pattern.permute.xlu0 0
    %102 = vperm.xlu0 %101, %v30
    %v103 = vpop.permute.xlu0 %102
    %106 = vset.pattern.permute.xlu0 0
    %107 = vperm.xlu0 %106, %v31
    %v108 = vpop.permute.xlu0 %107
    %111 = vset.pattern.permute.xlu0 0
    %112 = vperm.xlu0 %111, %v32
    %v113 = vpop.permute.xlu0 %112
    %116 = vset.pattern.permute.xlu0 0
    %117 = vperm.xlu0 %116, %v55
    %v118 = vpop.permute.xlu0 %117
    %121 = vset.pattern.permute.xlu0 0
    %122 = vperm.xlu0 %121, %v56
    %v123 = vpop.permute.xlu0 %122
    %126 = vset.pattern.permute.xlu0 0
    %127 = vperm.xlu0 %126, %v57
    %v128 = vpop.permute.xlu0 %127
    %131 = vset.pattern.permute.xlu0 0
    %132 = vperm.xlu0 %131, %v58
    %v133 = vpop.permute.xlu0 %132
    %136 = vset.pattern.permute.xlu0 0
    %137 = vperm.xlu0 %136, %v59
    %v138 = vpop.permute.xlu0 %137
    %141 = vset.pattern.permute.xlu0 0
    %142 = vperm.xlu0 %141, %v60
    %v143 = vpop.permute.xlu0 %142
    %v145 = vlaneseq
    %v146 = vshrl.u32 %v145, 7
    %v147 = vsub.s32 0, %v146
    %v148 = vrot.slane %v83, %v147
    %v149 = vmul.f32 %v88, %v148
    %v150 = vmul.f32 %v93, %v148
    %v151 = vmul.f32 %v98, %v148
    %v152 = vmul.f32 %v103, %v148
    %v153 = vmul.f32 %v108, %v148
    %v154 = vmul.f32 %v113, %v148
    %v155 = vmul.f32 %v118, %v148
    %v156 = vmul.f32 %v123, %v148
    %v157 = vmul.f32 %v128, %v148
    %v158 = vmul.f32 %v133, %v148
    %v159 = vmul.f32 %v138, %v148
    %v160 = vmul.f32 %v143, %v148
    %162 = vset.pattern.permute.xlu0 0
    %163 = vperm.xlu0 %162, %v34
    %v164 = vpop.permute.xlu0 %163
    %167 = vset.pattern.permute.xlu0 0
    %168 = vperm.xlu0 %167, %v35
    %v169 = vpop.permute.xlu0 %168
    %172 = vset.pattern.permute.xlu0 0
    %173 = vperm.xlu0 %172, %v36
    %v174 = vpop.permute.xlu0 %173
    %177 = vset.pattern.permute.xlu0 0
    %178 = vperm.xlu0 %177, %v37
    %v179 = vpop.permute.xlu0 %178
    %182 = vset.pattern.permute.xlu0 0
    %183 = vperm.xlu0 %182, %v38
    %v184 = vpop.permute.xlu0 %183
    %187 = vset.pattern.permute.xlu0 0
    %188 = vperm.xlu0 %187, %v39
    %v189 = vpop.permute.xlu0 %188
    %192 = vset.pattern.permute.xlu0 0
    %193 = vperm.xlu0 %192, %v62
    %v194 = vpop.permute.xlu0 %193
    %197 = vset.pattern.permute.xlu0 0
    %198 = vperm.xlu0 %197, %v63
    %v199 = vpop.permute.xlu0 %198
    %202 = vset.pattern.permute.xlu0 0
    %203 = vperm.xlu0 %202, %v64
    %v204 = vpop.permute.xlu0 %203
    %207 = vset.pattern.permute.xlu0 0
    %208 = vperm.xlu0 %207, %v65
    %v209 = vpop.permute.xlu0 %208
    %212 = vset.pattern.permute.xlu0 0
    %213 = vperm.xlu0 %212, %v66
    %v214 = vpop.permute.xlu0 %213
    %217 = vset.pattern.permute.xlu0 0
    %218 = vperm.xlu0 %217, %v67
    %v219 = vpop.permute.xlu0 %218
    %v221 = vlaneseq
    %v222 = vshrl.u32 %v221, 7
    %v223 = vsub.s32 1, %v222
    %v224 = vrot.slane %v83, %v223
    %v225 = vmul.f32 %v164, %v224
    %v226 = vmul.f32 %v169, %v224
    %v227 = vmul.f32 %v174, %v224
    %v228 = vmul.f32 %v179, %v224
    %v229 = vmul.f32 %v184, %v224
    %v230 = vmul.f32 %v189, %v224
    %v231 = vmul.f32 %v194, %v224
    %v232 = vmul.f32 %v199, %v224
    %v233 = vmul.f32 %v204, %v224
    %v234 = vmul.f32 %v209, %v224
    %v235 = vmul.f32 %v214, %v224
    %v236 = vmul.f32 %v219, %v224
    %v237 = vadd.f32 %v149, %v225
    %v238 = vadd.f32 %v150, %v226
    %v239 = vadd.f32 %v151, %v227
    %v240 = vadd.f32 %v152, %v228
    %v241 = vadd.f32 %v153, %v229
    %v242 = vadd.f32 %v154, %v230
    %v243 = vadd.f32 %v155, %v231
    %v244 = vadd.f32 %v156, %v232
    %v245 = vadd.f32 %v157, %v233
    %v246 = vadd.f32 %v158, %v234
    %v247 = vadd.f32 %v159, %v235
    %v248 = vadd.f32 %v160, %v236
    %v249 = vlaneseq
    %v250 = vshrl.u32 %v249, 7
    %v251 = vsub.s32 2, %v250
    %v252 = vrot.slane %v83, %v251
    %v253 = vmul.f32 %v88, %v252
    %v254 = vmul.f32 %v93, %v252
    %v255 = vmul.f32 %v98, %v252
    %v256 = vmul.f32 %v103, %v252
    %v257 = vmul.f32 %v108, %v252
    %v258 = vmul.f32 %v113, %v252
    %v259 = vmul.f32 %v118, %v252
    %v260 = vmul.f32 %v123, %v252
    %v261 = vmul.f32 %v128, %v252
    %v262 = vmul.f32 %v133, %v252
    %v263 = vmul.f32 %v138, %v252
    %v264 = vmul.f32 %v143, %v252
    %v277 = vrot.slane %v253, 1
    %v278 = vrot.slane %v254, 1
    %v279 = vrot.slane %v255, 1
    %v280 = vrot.slane %v256, 1
    %v281 = vrot.slane %v257, 1
    %v282 = vrot.slane %v258, 1
    %v283 = vrot.slane %v259, 1
    %v284 = vrot.slane %v260, 1
    %v285 = vrot.slane %v261, 1
    %v286 = vrot.slane %v262, 1
    %v287 = vrot.slane %v263, 1
    %v288 = vrot.slane %v264, 1
    %v301 = vadd.f32 %v237, %v277
    %v302 = vadd.f32 %v238, %v278
    %v303 = vadd.f32 %v239, %v279
    %v304 = vadd.f32 %v240, %v280
    %v305 = vadd.f32 %v241, %v281
    %v306 = vadd.f32 %v242, %v282
    %v307 = vadd.f32 %v243, %v283
    %v308 = vadd.f32 %v244, %v284
    %v309 = vadd.f32 %v245, %v285
    %v310 = vadd.f32 %v246, %v286
    %v311 = vadd.f32 %v247, %v287
    %v312 = vadd.f32 %v248, %v288
    %314 = vset.pattern.permute.xlu0 0
    %315 = vperm.xlu0 %314, %v41
    %v316 = vpop.permute.xlu0 %315
    %319 = vset.pattern.permute.xlu0 0
    %320 = vperm.xlu0 %319, %v42
    %v321 = vpop.permute.xlu0 %320
    %324 = vset.pattern.permute.xlu0 0
    %325 = vperm.xlu0 %324, %v43
    %v326 = vpop.permute.xlu0 %325
    %329 = vset.pattern.permute.xlu0 0
    %330 = vperm.xlu0 %329, %v44
    %v331 = vpop.permute.xlu0 %330
    %334 = vset.pattern.permute.xlu0 0
    %335 = vperm.xlu0 %334, %v45
    %v336 = vpop.permute.xlu0 %335
    %339 = vset.pattern.permute.xlu0 0
    %340 = vperm.xlu0 %339, %v46
    %v341 = vpop.permute.xlu0 %340
    %344 = vset.pattern.permute.xlu0 0
    %345 = vperm.xlu0 %344, %v69
    %v346 = vpop.permute.xlu0 %345
    %349 = vset.pattern.permute.xlu0 0
    %350 = vperm.xlu0 %349, %v70
    %v351 = vpop.permute.xlu0 %350
    %354 = vset.pattern.permute.xlu0 0
    %355 = vperm.xlu0 %354, %v71
    %v356 = vpop.permute.xlu0 %355
    %359 = vset.pattern.permute.xlu0 0
    %360 = vperm.xlu0 %359, %v72
    %v361 = vpop.permute.xlu0 %360
    %364 = vset.pattern.permute.xlu0 0
    %365 = vperm.xlu0 %364, %v73
    %v366 = vpop.permute.xlu0 %365
    %369 = vset.pattern.permute.xlu0 0
    %370 = vperm.xlu0 %369, %v74
    %v371 = vpop.permute.xlu0 %370
    %v373 = vlaneseq
    %v374 = vshrl.u32 %v373, 7
    %v375 = vsub.s32 3, %v374
    %v376 = vrot.slane %v83, %v375
    %v377 = vmul.f32 %v316, %v376
    %v378 = vmul.f32 %v321, %v376
    %v379 = vmul.f32 %v326, %v376
    %v380 = vmul.f32 %v331, %v376
    %v381 = vmul.f32 %v336, %v376
    %v382 = vmul.f32 %v341, %v376
    %v383 = vmul.f32 %v346, %v376
    %v384 = vmul.f32 %v351, %v376
    %v385 = vmul.f32 %v356, %v376
    %v386 = vmul.f32 %v361, %v376
    %v387 = vmul.f32 %v366, %v376
    %v388 = vmul.f32 %v371, %v376
    %v389 = vadd.f32 %v301, %v377
    %v390 = vadd.f32 %v302, %v378
    %v391 = vadd.f32 %v303, %v379
    %v392 = vadd.f32 %v304, %v380
    %v393 = vadd.f32 %v305, %v381
    %v394 = vadd.f32 %v306, %v382
    %v395 = vadd.f32 %v307, %v383
    %v396 = vadd.f32 %v308, %v384
    %v397 = vadd.f32 %v309, %v385
    %v398 = vadd.f32 %v310, %v386
    %v399 = vadd.f32 %v311, %v387
    %v400 = vadd.f32 %v312, %v388
    %402 = vset.pattern.permute.xlu0 0
    %403 = vperm.xlu0 %402, %v48
    %v404 = vpop.permute.xlu0 %403
    %407 = vset.pattern.permute.xlu0 0
    %408 = vperm.xlu0 %407, %v49
    %v409 = vpop.permute.xlu0 %408
    %412 = vset.pattern.permute.xlu0 0
    %413 = vperm.xlu0 %412, %v50
    %v414 = vpop.permute.xlu0 %413
    %417 = vset.pattern.permute.xlu0 0
    %418 = vperm.xlu0 %417, %v51
    %v419 = vpop.permute.xlu0 %418
    %422 = vset.pattern.permute.xlu0 0
    %423 = vperm.xlu0 %422, %v52
    %v424 = vpop.permute.xlu0 %423
    %427 = vset.pattern.permute.xlu0 0
    %428 = vperm.xlu0 %427, %v53
    %v429 = vpop.permute.xlu0 %428
    %432 = vset.pattern.permute.xlu0 0
    %433 = vperm.xlu0 %432, %v76
    %v434 = vpop.permute.xlu0 %433
    %437 = vset.pattern.permute.xlu0 0
    %438 = vperm.xlu0 %437, %v77
    %v439 = vpop.permute.xlu0 %438
    %442 = vset.pattern.permute.xlu0 0
    %443 = vperm.xlu0 %442, %v78
    %v444 = vpop.permute.xlu0 %443
    %447 = vset.pattern.permute.xlu0 0
    %448 = vperm.xlu0 %447, %v79
    %v449 = vpop.permute.xlu0 %448
    %452 = vset.pattern.permute.xlu0 0
    %453 = vperm.xlu0 %452, %v80
    %v454 = vpop.permute.xlu0 %453
    %457 = vset.pattern.permute.xlu0 0
    %458 = vperm.xlu0 %457, %v81
    %v459 = vpop.permute.xlu0 %458
    %v461 = vlaneseq
    %v462 = vshrl.u32 %v461, 7
    %v463 = vsub.s32 4, %v462
    %v464 = vrot.slane %v83, %v463
    %v465 = vmul.f32 %v404, %v464
    %v466 = vmul.f32 %v409, %v464
    %v467 = vmul.f32 %v414, %v464
    %v468 = vmul.f32 %v419, %v464
    %v469 = vmul.f32 %v424, %v464
    %v470 = vmul.f32 %v429, %v464
    %v471 = vmul.f32 %v434, %v464
    %v472 = vmul.f32 %v439, %v464
    %v473 = vmul.f32 %v444, %v464
    %v474 = vmul.f32 %v449, %v464
    %v475 = vmul.f32 %v454, %v464
    %v476 = vmul.f32 %v459, %v464
    %v477 = vadd.f32 %v389, %v465
    %v478 = vadd.f32 %v390, %v466
    %v479 = vadd.f32 %v391, %v467
    %v480 = vadd.f32 %v392, %v468
    %v481 = vadd.f32 %v393, %v469
    %v482 = vadd.f32 %v394, %v470
    %v483 = vadd.f32 %v395, %v471
    %v484 = vadd.f32 %v396, %v472
    %v485 = vadd.f32 %v397, %v473
    %v486 = vadd.f32 %v398, %v474
    %v487 = vadd.f32 %v399, %v475
    %v488 = vadd.f32 %v400, %v476
    %v489 = vlaneseq
    %v490 = vshrl.u32 %v489, 7
    %v491 = vsub.s32 5, %v490
    %v492 = vrot.slane %v83, %v491
    %v493 = vmul.f32 %v316, %v492
    %v494 = vmul.f32 %v321, %v492
    %v495 = vmul.f32 %v326, %v492
    %v496 = vmul.f32 %v331, %v492
    %v497 = vmul.f32 %v336, %v492
    %v498 = vmul.f32 %v341, %v492
    %v499 = vmul.f32 %v346, %v492
    %v500 = vmul.f32 %v351, %v492
    %v501 = vmul.f32 %v356, %v492
    %v502 = vmul.f32 %v361, %v492
    %v503 = vmul.f32 %v366, %v492
    %v504 = vmul.f32 %v371, %v492
    %v517 = vrot.slane %v493, 1
    %v518 = vrot.slane %v494, 1
    %v519 = vrot.slane %v495, 1
    %v520 = vrot.slane %v496, 1
    %v521 = vrot.slane %v497, 1
    %v522 = vrot.slane %v498, 1
    %v523 = vrot.slane %v499, 1
    %v524 = vrot.slane %v500, 1
    %v525 = vrot.slane %v501, 1
    %v526 = vrot.slane %v502, 1
    %v527 = vrot.slane %v503, 1
    %v528 = vrot.slane %v504, 1
    %v541 = vadd.f32 %v477, %v517
    %v542 = vadd.f32 %v478, %v518
    %v543 = vadd.f32 %v479, %v519
    %v544 = vadd.f32 %v480, %v520
    %v545 = vadd.f32 %v481, %v521
    %v546 = vadd.f32 %v482, %v522
    %v547 = vadd.f32 %v483, %v523
    %v548 = vadd.f32 %v484, %v524
    %v549 = vadd.f32 %v485, %v525
    %v550 = vadd.f32 %v486, %v526
    %v551 = vadd.f32 %v487, %v527
    %v552 = vadd.f32 %v488, %v528
    %554 = vset.pattern.permute.xlu0 0
    %555 = vperm.xlu0 %554, %v33
    %v556 = vpop.permute.xlu0 %555
    %559 = vset.pattern.permute.xlu0 0
    %560 = vperm.xlu0 %559, %v61
    %v561 = vpop.permute.xlu0 %560
    %v563 = vlaneseq
    %v564 = vshrl.u32 %v563, 7
    %v565 = vsub.s32 6, %v564
    %v566 = vrot.slane %v83, %v565
    %v567 = vmul.f32 %v93, %v566
    %v568 = vmul.f32 %v98, %v566
    %v569 = vmul.f32 %v103, %v566
    %v570 = vmul.f32 %v108, %v566
    %v571 = vmul.f32 %v113, %v566
    %v572 = vmul.f32 %v556, %v566
    %v573 = vmul.f32 %v123, %v566
    %v574 = vmul.f32 %v128, %v566
    %v575 = vmul.f32 %v133, %v566
    %v576 = vmul.f32 %v138, %v566
    %v577 = vmul.f32 %v143, %v566
    %v578 = vmul.f32 %v561, %v566
    %v579 = vadd.f32 %v541, %v567
    %v580 = vadd.f32 %v542, %v568
    %v581 = vadd.f32 %v543, %v569
    %v582 = vadd.f32 %v544, %v570
    %v583 = vadd.f32 %v545, %v571
    %v584 = vadd.f32 %v546, %v572
    %v585 = vadd.f32 %v547, %v573
    %v586 = vadd.f32 %v548, %v574
    %v587 = vadd.f32 %v549, %v575
    %v588 = vadd.f32 %v550, %v576
    %v589 = vadd.f32 %v551, %v577
    %v590 = vadd.f32 %v552, %v578
    %592 = vset.pattern.permute.xlu0 0
    %593 = vperm.xlu0 %592, %v40
    %v594 = vpop.permute.xlu0 %593
    %597 = vset.pattern.permute.xlu0 0
    %598 = vperm.xlu0 %597, %v68
    %v599 = vpop.permute.xlu0 %598
    %v601 = vlaneseq
    %v602 = vshrl.u32 %v601, 7
    %v603 = vsub.s32 7, %v602
    %v604 = vrot.slane %v83, %v603
    %v605 = vmul.f32 %v169, %v604
    %v606 = vmul.f32 %v174, %v604
    %v607 = vmul.f32 %v179, %v604
    %v608 = vmul.f32 %v184, %v604
    %v609 = vmul.f32 %v189, %v604
    %v610 = vmul.f32 %v594, %v604
    %v611 = vmul.f32 %v199, %v604
    %v612 = vmul.f32 %v204, %v604
    %v613 = vmul.f32 %v209, %v604
    %v614 = vmul.f32 %v214, %v604
    %v615 = vmul.f32 %v219, %v604
    %v616 = vmul.f32 %v599, %v604
    %v617 = vadd.f32 %v579, %v605
    %v618 = vadd.f32 %v580, %v606
    %v619 = vadd.f32 %v581, %v607
    %v620 = vadd.f32 %v582, %v608
    %v621 = vadd.f32 %v583, %v609
    %v622 = vadd.f32 %v584, %v610
    %v623 = vadd.f32 %v585, %v611
    %v624 = vadd.f32 %v586, %v612
    %v625 = vadd.f32 %v587, %v613
    %v626 = vadd.f32 %v588, %v614
    %v627 = vadd.f32 %v589, %v615
    %v628 = vadd.f32 %v590, %v616
    %v629 = vlaneseq
    %v630 = vshrl.u32 %v629, 7
    %v631 = vsub.s32 0, %v630
    %v632 = vrot.slane %v84, %v631
    %v633 = vmul.f32 %v93, %v632
    %v634 = vmul.f32 %v98, %v632
    %v635 = vmul.f32 %v103, %v632
    %v636 = vmul.f32 %v108, %v632
    %v637 = vmul.f32 %v113, %v632
    %v638 = vmul.f32 %v556, %v632
    %v639 = vmul.f32 %v123, %v632
    %v640 = vmul.f32 %v128, %v632
    %v641 = vmul.f32 %v133, %v632
    %v642 = vmul.f32 %v138, %v632
    %v643 = vmul.f32 %v143, %v632
    %v644 = vmul.f32 %v561, %v632
    %v657 = vrot.slane %v633, 1
    %v658 = vrot.slane %v634, 1
    %v659 = vrot.slane %v635, 1
    %v660 = vrot.slane %v636, 1
    %v661 = vrot.slane %v637, 1
    %v662 = vrot.slane %v638, 1
    %v663 = vrot.slane %v639, 1
    %v664 = vrot.slane %v640, 1
    %v665 = vrot.slane %v641, 1
    %v666 = vrot.slane %v642, 1
    %v667 = vrot.slane %v643, 1
    %v668 = vrot.slane %v644, 1
    %v681 = vadd.f32 %v617, %v657
    %v682 = vadd.f32 %v618, %v658
    %v683 = vadd.f32 %v619, %v659
    %v684 = vadd.f32 %v620, %v660
    %v685 = vadd.f32 %v621, %v661
    %v686 = vadd.f32 %v622, %v662
    %v687 = vadd.f32 %v623, %v663
    %v688 = vadd.f32 %v624, %v664
    %v689 = vadd.f32 %v625, %v665
    %v690 = vadd.f32 %v626, %v666
    %v691 = vadd.f32 %v627, %v667
    %v692 = vadd.f32 %v628, %v668
    %v693 = vmul.f32 %v164, %v148
    %v694 = vmul.f32 %v169, %v148
    %v695 = vmul.f32 %v174, %v148
    %v696 = vmul.f32 %v179, %v148
    %v697 = vmul.f32 %v184, %v148
    %v698 = vmul.f32 %v189, %v148
    %v699 = vmul.f32 %v194, %v148
    %v700 = vmul.f32 %v199, %v148
    %v701 = vmul.f32 %v204, %v148
    %v702 = vmul.f32 %v209, %v148
    %v703 = vmul.f32 %v214, %v148
    %v704 = vmul.f32 %v219, %v148
    %v705 = vmul.f32 %v88, %v224
    %v706 = vmul.f32 %v93, %v224
    %v707 = vmul.f32 %v98, %v224
    %v708 = vmul.f32 %v103, %v224
    %v709 = vmul.f32 %v108, %v224
    %v710 = vmul.f32 %v113, %v224
    %v711 = vmul.f32 %v118, %v224
    %v712 = vmul.f32 %v123, %v224
    %v713 = vmul.f32 %v128, %v224
    %v714 = vmul.f32 %v133, %v224
    %v715 = vmul.f32 %v138, %v224
    %v716 = vmul.f32 %v143, %v224
    %v729 = vrot.slane %v705, 1
    %v730 = vrot.slane %v706, 1
    %v731 = vrot.slane %v707, 1
    %v732 = vrot.slane %v708, 1
    %v733 = vrot.slane %v709, 1
    %v734 = vrot.slane %v710, 1
    %v735 = vrot.slane %v711, 1
    %v736 = vrot.slane %v712, 1
    %v737 = vrot.slane %v713, 1
    %v738 = vrot.slane %v714, 1
    %v739 = vrot.slane %v715, 1
    %v740 = vrot.slane %v716, 1
    %v753 = vadd.f32 %v693, %v729
    %v754 = vadd.f32 %v694, %v730
    %v755 = vadd.f32 %v695, %v731
    %v756 = vadd.f32 %v696, %v732
    %v757 = vadd.f32 %v697, %v733
    %v758 = vadd.f32 %v698, %v734
    %v759 = vadd.f32 %v699, %v735
    %v760 = vadd.f32 %v700, %v736
    %v761 = vadd.f32 %v701, %v737
    %v762 = vadd.f32 %v702, %v738
    %v763 = vadd.f32 %v703, %v739
    %v764 = vadd.f32 %v704, %v740
    %v765 = vmul.f32 %v164, %v252
    %v766 = vmul.f32 %v169, %v252
    %v767 = vmul.f32 %v174, %v252
    %v768 = vmul.f32 %v179, %v252
    %v769 = vmul.f32 %v184, %v252
    %v770 = vmul.f32 %v189, %v252
    %v771 = vmul.f32 %v194, %v252
    %v772 = vmul.f32 %v199, %v252
    %v773 = vmul.f32 %v204, %v252
    %v774 = vmul.f32 %v209, %v252
    %v775 = vmul.f32 %v214, %v252
    %v776 = vmul.f32 %v219, %v252
    %v789 = vrot.slane %v765, 1
    %v790 = vrot.slane %v766, 1
    %v791 = vrot.slane %v767, 1
    %v792 = vrot.slane %v768, 1
    %v793 = vrot.slane %v769, 1
    %v794 = vrot.slane %v770, 1
    %v795 = vrot.slane %v771, 1
    %v796 = vrot.slane %v772, 1
    %v797 = vrot.slane %v773, 1
    %v798 = vrot.slane %v774, 1
    %v799 = vrot.slane %v775, 1
    %v800 = vrot.slane %v776, 1
    %v813 = vadd.f32 %v753, %v789
    %v814 = vadd.f32 %v754, %v790
    %v815 = vadd.f32 %v755, %v791
    %v816 = vadd.f32 %v756, %v792
    %v817 = vadd.f32 %v757, %v793
    %v818 = vadd.f32 %v758, %v794
    %v819 = vadd.f32 %v759, %v795
    %v820 = vadd.f32 %v760, %v796
    %v821 = vadd.f32 %v761, %v797
    %v822 = vadd.f32 %v762, %v798
    %v823 = vadd.f32 %v763, %v799
    %v824 = vadd.f32 %v764, %v800
    %v825 = vmul.f32 %v404, %v376
    %v826 = vmul.f32 %v409, %v376
    %v827 = vmul.f32 %v414, %v376
    %v828 = vmul.f32 %v419, %v376
    %v829 = vmul.f32 %v424, %v376
    %v830 = vmul.f32 %v429, %v376
    %v831 = vmul.f32 %v434, %v376
    %v832 = vmul.f32 %v439, %v376
    %v833 = vmul.f32 %v444, %v376
    %v834 = vmul.f32 %v449, %v376
    %v835 = vmul.f32 %v454, %v376
    %v836 = vmul.f32 %v459, %v376
    %v837 = vadd.f32 %v813, %v825
    %v838 = vadd.f32 %v814, %v826
    %v839 = vadd.f32 %v815, %v827
    %v840 = vadd.f32 %v816, %v828
    %v841 = vadd.f32 %v817, %v829
    %v842 = vadd.f32 %v818, %v830
    %v843 = vadd.f32 %v819, %v831
    %v844 = vadd.f32 %v820, %v832
    %v845 = vadd.f32 %v821, %v833
    %v846 = vadd.f32 %v822, %v834
    %v847 = vadd.f32 %v823, %v835
    %v848 = vadd.f32 %v824, %v836
    %v849 = vmul.f32 %v316, %v464
    %v850 = vmul.f32 %v321, %v464
    %v851 = vmul.f32 %v326, %v464
    %v852 = vmul.f32 %v331, %v464
    %v853 = vmul.f32 %v336, %v464
    %v854 = vmul.f32 %v341, %v464
    %v855 = vmul.f32 %v346, %v464
    %v856 = vmul.f32 %v351, %v464
    %v857 = vmul.f32 %v356, %v464
    %v858 = vmul.f32 %v361, %v464
    %v859 = vmul.f32 %v366, %v464
    %v860 = vmul.f32 %v371, %v464
    %v873 = vrot.slane %v849, 1
    %v874 = vrot.slane %v850, 1
    %v875 = vrot.slane %v851, 1
    %v876 = vrot.slane %v852, 1
    %v877 = vrot.slane %v853, 1
    %v878 = vrot.slane %v854, 1
    %v879 = vrot.slane %v855, 1
    %v880 = vrot.slane %v856, 1
    %v881 = vrot.slane %v857, 1
    %v882 = vrot.slane %v858, 1
    %v883 = vrot.slane %v859, 1
    %v884 = vrot.slane %v860, 1
    %v897 = vadd.f32 %v837, %v873
    %v898 = vadd.f32 %v838, %v874
    %v899 = vadd.f32 %v839, %v875
    %v900 = vadd.f32 %v840, %v876
    %v901 = vadd.f32 %v841, %v877
    %v902 = vadd.f32 %v842, %v878
    %v903 = vadd.f32 %v843, %v879
    %v904 = vadd.f32 %v844, %v880
    %v905 = vadd.f32 %v845, %v881
    %v906 = vadd.f32 %v846, %v882
    %v907 = vadd.f32 %v847, %v883
    %v908 = vadd.f32 %v848, %v884
    %v909 = vmul.f32 %v404, %v492
    %v910 = vmul.f32 %v409, %v492
    %v911 = vmul.f32 %v414, %v492
    %v912 = vmul.f32 %v419, %v492
    %v913 = vmul.f32 %v424, %v492
    %v914 = vmul.f32 %v429, %v492
    %v915 = vmul.f32 %v434, %v492
    %v916 = vmul.f32 %v439, %v492
    %v917 = vmul.f32 %v444, %v492
    %v918 = vmul.f32 %v449, %v492
    %v919 = vmul.f32 %v454, %v492
    %v920 = vmul.f32 %v459, %v492
    %v933 = vrot.slane %v909, 1
    %v934 = vrot.slane %v910, 1
    %v935 = vrot.slane %v911, 1
    %v936 = vrot.slane %v912, 1
    %v937 = vrot.slane %v913, 1
    %v938 = vrot.slane %v914, 1
    %v939 = vrot.slane %v915, 1
    %v940 = vrot.slane %v916, 1
    %v941 = vrot.slane %v917, 1
    %v942 = vrot.slane %v918, 1
    %v943 = vrot.slane %v919, 1
    %v944 = vrot.slane %v920, 1
    %v957 = vadd.f32 %v897, %v933
    %v958 = vadd.f32 %v898, %v934
    %v959 = vadd.f32 %v899, %v935
    %v960 = vadd.f32 %v900, %v936
    %v961 = vadd.f32 %v901, %v937
    %v962 = vadd.f32 %v902, %v938
    %v963 = vadd.f32 %v903, %v939
    %v964 = vadd.f32 %v904, %v940
    %v965 = vadd.f32 %v905, %v941
    %v966 = vadd.f32 %v906, %v942
    %v967 = vadd.f32 %v907, %v943
    %v968 = vadd.f32 %v908, %v944
    %v969 = vmul.f32 %v169, %v566
    %v970 = vmul.f32 %v174, %v566
    %v971 = vmul.f32 %v179, %v566
    %v972 = vmul.f32 %v184, %v566
    %v973 = vmul.f32 %v189, %v566
    %v974 = vmul.f32 %v594, %v566
    %v975 = vmul.f32 %v199, %v566
    %v976 = vmul.f32 %v204, %v566
    %v977 = vmul.f32 %v209, %v566
    %v978 = vmul.f32 %v214, %v566
    %v979 = vmul.f32 %v219, %v566
    %v980 = vmul.f32 %v599, %v566
    %v981 = vadd.f32 %v957, %v969
    %v982 = vadd.f32 %v958, %v970
    %v983 = vadd.f32 %v959, %v971
    %v984 = vadd.f32 %v960, %v972
    %v985 = vadd.f32 %v961, %v973
    %v986 = vadd.f32 %v962, %v974
    %v987 = vadd.f32 %v963, %v975
    %v988 = vadd.f32 %v964, %v976
    %v989 = vadd.f32 %v965, %v977
    %v990 = vadd.f32 %v966, %v978
    %v991 = vadd.f32 %v967, %v979
    %v992 = vadd.f32 %v968, %v980
    %v993 = vmul.f32 %v93, %v604
    %v994 = vmul.f32 %v98, %v604
    %v995 = vmul.f32 %v103, %v604
    %v996 = vmul.f32 %v108, %v604
    %v997 = vmul.f32 %v113, %v604
    %v998 = vmul.f32 %v556, %v604
    %v999 = vmul.f32 %v123, %v604
    %v1000 = vmul.f32 %v128, %v604
    %v1001 = vmul.f32 %v133, %v604
    %v1002 = vmul.f32 %v138, %v604
    %v1003 = vmul.f32 %v143, %v604
    %v1004 = vmul.f32 %v561, %v604
    %v1017 = vrot.slane %v993, 1
    %v1018 = vrot.slane %v994, 1
    %v1019 = vrot.slane %v995, 1
    %v1020 = vrot.slane %v996, 1
    %v1021 = vrot.slane %v997, 1
    %v1022 = vrot.slane %v998, 1
    %v1023 = vrot.slane %v999, 1
    %v1024 = vrot.slane %v1000, 1
    %v1025 = vrot.slane %v1001, 1
    %v1026 = vrot.slane %v1002, 1
    %v1027 = vrot.slane %v1003, 1
    %v1028 = vrot.slane %v1004, 1
    %v1041 = vadd.f32 %v981, %v1017
    %v1042 = vadd.f32 %v982, %v1018
    %v1043 = vadd.f32 %v983, %v1019
    %v1044 = vadd.f32 %v984, %v1020
    %v1045 = vadd.f32 %v985, %v1021
    %v1046 = vadd.f32 %v986, %v1022
    %v1047 = vadd.f32 %v987, %v1023
    %v1048 = vadd.f32 %v988, %v1024
    %v1049 = vadd.f32 %v989, %v1025
    %v1050 = vadd.f32 %v990, %v1026
    %v1051 = vadd.f32 %v991, %v1027
    %v1052 = vadd.f32 %v992, %v1028
    %v1053 = vmul.f32 %v169, %v632
    %v1054 = vmul.f32 %v174, %v632
    %v1055 = vmul.f32 %v179, %v632
    %v1056 = vmul.f32 %v184, %v632
    %v1057 = vmul.f32 %v189, %v632
    %v1058 = vmul.f32 %v594, %v632
    %v1059 = vmul.f32 %v199, %v632
    %v1060 = vmul.f32 %v204, %v632
    %v1061 = vmul.f32 %v209, %v632
    %v1062 = vmul.f32 %v214, %v632
    %v1063 = vmul.f32 %v219, %v632
    %v1064 = vmul.f32 %v599, %v632
    %v1077 = vrot.slane %v1053, 1
    %v1078 = vrot.slane %v1054, 1
    %v1079 = vrot.slane %v1055, 1
    %v1080 = vrot.slane %v1056, 1
    %v1081 = vrot.slane %v1057, 1
    %v1082 = vrot.slane %v1058, 1
    %v1083 = vrot.slane %v1059, 1
    %v1084 = vrot.slane %v1060, 1
    %v1085 = vrot.slane %v1061, 1
    %v1086 = vrot.slane %v1062, 1
    %v1087 = vrot.slane %v1063, 1
    %v1088 = vrot.slane %v1064, 1
    %v1101 = vadd.f32 %v1041, %v1077
    %v1102 = vadd.f32 %v1042, %v1078
    %v1103 = vadd.f32 %v1043, %v1079
    %v1104 = vadd.f32 %v1044, %v1080
    %v1105 = vadd.f32 %v1045, %v1081
    %v1106 = vadd.f32 %v1046, %v1082
    %v1107 = vadd.f32 %v1047, %v1083
    %v1108 = vadd.f32 %v1048, %v1084
    %v1109 = vadd.f32 %v1049, %v1085
    %v1110 = vadd.f32 %v1050, %v1086
    %v1111 = vadd.f32 %v1051, %v1087
    %v1112 = vadd.f32 %v1052, %v1088
    %v1113 = vmax.f32 %v681, %v1101
    %v1114 = vmax.f32 %v682, %v1102
    %v1115 = vmax.f32 %v683, %v1103
    %v1116 = vmax.f32 %v684, %v1104
    %v1117 = vmax.f32 %v685, %v1105
    %v1118 = vmax.f32 %v686, %v1106
    %v1119 = vmax.f32 %v687, %v1107
    %v1120 = vmax.f32 %v688, %v1108
    %v1121 = vmax.f32 %v689, %v1109
    %v1122 = vmax.f32 %v690, %v1110
    %v1123 = vmax.f32 %v691, %v1111
    %v1124 = vmax.f32 %v692, %v1112
    %v1125 = vmul.f32 %v316, %v148
    %v1126 = vmul.f32 %v321, %v148
    %v1127 = vmul.f32 %v326, %v148
    %v1128 = vmul.f32 %v331, %v148
    %v1129 = vmul.f32 %v336, %v148
    %v1130 = vmul.f32 %v341, %v148
    %v1131 = vmul.f32 %v346, %v148
    %v1132 = vmul.f32 %v351, %v148
    %v1133 = vmul.f32 %v356, %v148
    %v1134 = vmul.f32 %v361, %v148
    %v1135 = vmul.f32 %v366, %v148
    %v1136 = vmul.f32 %v371, %v148
    %v1137 = vmul.f32 %v404, %v224
    %v1138 = vmul.f32 %v409, %v224
    %v1139 = vmul.f32 %v414, %v224
    %v1140 = vmul.f32 %v419, %v224
    %v1141 = vmul.f32 %v424, %v224
    %v1142 = vmul.f32 %v429, %v224
    %v1143 = vmul.f32 %v434, %v224
    %v1144 = vmul.f32 %v439, %v224
    %v1145 = vmul.f32 %v444, %v224
    %v1146 = vmul.f32 %v449, %v224
    %v1147 = vmul.f32 %v454, %v224
    %v1148 = vmul.f32 %v459, %v224
    %v1149 = vadd.f32 %v1125, %v1137
    %v1150 = vadd.f32 %v1126, %v1138
    %v1151 = vadd.f32 %v1127, %v1139
    %v1152 = vadd.f32 %v1128, %v1140
    %v1153 = vadd.f32 %v1129, %v1141
    %v1154 = vadd.f32 %v1130, %v1142
    %v1155 = vadd.f32 %v1131, %v1143
    %v1156 = vadd.f32 %v1132, %v1144
    %v1157 = vadd.f32 %v1133, %v1145
    %v1158 = vadd.f32 %v1134, %v1146
    %v1159 = vadd.f32 %v1135, %v1147
    %v1160 = vadd.f32 %v1136, %v1148
    %v1161 = vmul.f32 %v316, %v252
    %v1162 = vmul.f32 %v321, %v252
    %v1163 = vmul.f32 %v326, %v252
    %v1164 = vmul.f32 %v331, %v252
    %v1165 = vmul.f32 %v336, %v252
    %v1166 = vmul.f32 %v341, %v252
    %v1167 = vmul.f32 %v346, %v252
    %v1168 = vmul.f32 %v351, %v252
    %v1169 = vmul.f32 %v356, %v252
    %v1170 = vmul.f32 %v361, %v252
    %v1171 = vmul.f32 %v366, %v252
    %v1172 = vmul.f32 %v371, %v252
    %v1185 = vrot.slane %v1161, 1
    %v1186 = vrot.slane %v1162, 1
    %v1187 = vrot.slane %v1163, 1
    %v1188 = vrot.slane %v1164, 1
    %v1189 = vrot.slane %v1165, 1
    %v1190 = vrot.slane %v1166, 1
    %v1191 = vrot.slane %v1167, 1
    %v1192 = vrot.slane %v1168, 1
    %v1193 = vrot.slane %v1169, 1
    %v1194 = vrot.slane %v1170, 1
    %v1195 = vrot.slane %v1171, 1
    %v1196 = vrot.slane %v1172, 1
    %v1209 = vadd.f32 %v1149, %v1185
    %v1210 = vadd.f32 %v1150, %v1186
    %v1211 = vadd.f32 %v1151, %v1187
    %v1212 = vadd.f32 %v1152, %v1188
    %v1213 = vadd.f32 %v1153, %v1189
    %v1214 = vadd.f32 %v1154, %v1190
    %v1215 = vadd.f32 %v1155, %v1191
    %v1216 = vadd.f32 %v1156, %v1192
    %v1217 = vadd.f32 %v1157, %v1193
    %v1218 = vadd.f32 %v1158, %v1194
    %v1219 = vadd.f32 %v1159, %v1195
    %v1220 = vadd.f32 %v1160, %v1196
    %v1221 = vmul.f32 %v93, %v376
    %v1222 = vmul.f32 %v98, %v376
    %v1223 = vmul.f32 %v103, %v376
    %v1224 = vmul.f32 %v108, %v376
    %v1225 = vmul.f32 %v113, %v376
    %v1226 = vmul.f32 %v556, %v376
    %v1227 = vmul.f32 %v123, %v376
    %v1228 = vmul.f32 %v128, %v376
    %v1229 = vmul.f32 %v133, %v376
    %v1230 = vmul.f32 %v138, %v376
    %v1231 = vmul.f32 %v143, %v376
    %v1232 = vmul.f32 %v561, %v376
    %v1233 = vadd.f32 %v1209, %v1221
    %v1234 = vadd.f32 %v1210, %v1222
    %v1235 = vadd.f32 %v1211, %v1223
    %v1236 = vadd.f32 %v1212, %v1224
    %v1237 = vadd.f32 %v1213, %v1225
    %v1238 = vadd.f32 %v1214, %v1226
    %v1239 = vadd.f32 %v1215, %v1227
    %v1240 = vadd.f32 %v1216, %v1228
    %v1241 = vadd.f32 %v1217, %v1229
    %v1242 = vadd.f32 %v1218, %v1230
    %v1243 = vadd.f32 %v1219, %v1231
    %v1244 = vadd.f32 %v1220, %v1232
    %v1245 = vmul.f32 %v169, %v464
    %v1246 = vmul.f32 %v174, %v464
    %v1247 = vmul.f32 %v179, %v464
    %v1248 = vmul.f32 %v184, %v464
    %v1249 = vmul.f32 %v189, %v464
    %v1250 = vmul.f32 %v594, %v464
    %v1251 = vmul.f32 %v199, %v464
    %v1252 = vmul.f32 %v204, %v464
    %v1253 = vmul.f32 %v209, %v464
    %v1254 = vmul.f32 %v214, %v464
    %v1255 = vmul.f32 %v219, %v464
    %v1256 = vmul.f32 %v599, %v464
    %v1257 = vadd.f32 %v1233, %v1245
    %v1258 = vadd.f32 %v1234, %v1246
    %v1259 = vadd.f32 %v1235, %v1247
    %v1260 = vadd.f32 %v1236, %v1248
    %v1261 = vadd.f32 %v1237, %v1249
    %v1262 = vadd.f32 %v1238, %v1250
    %v1263 = vadd.f32 %v1239, %v1251
    %v1264 = vadd.f32 %v1240, %v1252
    %v1265 = vadd.f32 %v1241, %v1253
    %v1266 = vadd.f32 %v1242, %v1254
    %v1267 = vadd.f32 %v1243, %v1255
    %v1268 = vadd.f32 %v1244, %v1256
    %v1269 = vmul.f32 %v93, %v492
    %v1270 = vmul.f32 %v98, %v492
    %v1271 = vmul.f32 %v103, %v492
    %v1272 = vmul.f32 %v108, %v492
    %v1273 = vmul.f32 %v113, %v492
    %v1274 = vmul.f32 %v556, %v492
    %v1275 = vmul.f32 %v123, %v492
    %v1276 = vmul.f32 %v128, %v492
    %v1277 = vmul.f32 %v133, %v492
    %v1278 = vmul.f32 %v138, %v492
    %v1279 = vmul.f32 %v143, %v492
    %v1280 = vmul.f32 %v561, %v492
    %v1293 = vrot.slane %v1269, 1
    %v1294 = vrot.slane %v1270, 1
    %v1295 = vrot.slane %v1271, 1
    %v1296 = vrot.slane %v1272, 1
    %v1297 = vrot.slane %v1273, 1
    %v1298 = vrot.slane %v1274, 1
    %v1299 = vrot.slane %v1275, 1
    %v1300 = vrot.slane %v1276, 1
    %v1301 = vrot.slane %v1277, 1
    %v1302 = vrot.slane %v1278, 1
    %v1303 = vrot.slane %v1279, 1
    %v1304 = vrot.slane %v1280, 1
    %v1317 = vadd.f32 %v1257, %v1293
    %v1318 = vadd.f32 %v1258, %v1294
    %v1319 = vadd.f32 %v1259, %v1295
    %v1320 = vadd.f32 %v1260, %v1296
    %v1321 = vadd.f32 %v1261, %v1297
    %v1322 = vadd.f32 %v1262, %v1298
    %v1323 = vadd.f32 %v1263, %v1299
    %v1324 = vadd.f32 %v1264, %v1300
    %v1325 = vadd.f32 %v1265, %v1301
    %v1326 = vadd.f32 %v1266, %v1302
    %v1327 = vadd.f32 %v1267, %v1303
    %v1328 = vadd.f32 %v1268, %v1304
    %1330 = vset.pattern.permute.xlu0 0
    %1331 = vperm.xlu0 %1330, %v47
    %v1332 = vpop.permute.xlu0 %1331
    %1335 = vset.pattern.permute.xlu0 0
    %1336 = vperm.xlu0 %1335, %v75
    %v1337 = vpop.permute.xlu0 %1336
    %v1339 = vmul.f32 %v321, %v566
    %v1340 = vmul.f32 %v326, %v566
    %v1341 = vmul.f32 %v331, %v566
    %v1342 = vmul.f32 %v336, %v566
    %v1343 = vmul.f32 %v341, %v566
    %v1344 = vmul.f32 %v1332, %v566
    %v1345 = vmul.f32 %v351, %v566
    %v1346 = vmul.f32 %v356, %v566
    %v1347 = vmul.f32 %v361, %v566
    %v1348 = vmul.f32 %v366, %v566
    %v1349 = vmul.f32 %v371, %v566
    %v1350 = vmul.f32 %v1337, %v566
    %v1351 = vadd.f32 %v1317, %v1339
    %v1352 = vadd.f32 %v1318, %v1340
    %v1353 = vadd.f32 %v1319, %v1341
    %v1354 = vadd.f32 %v1320, %v1342
    %v1355 = vadd.f32 %v1321, %v1343
    %v1356 = vadd.f32 %v1322, %v1344
    %v1357 = vadd.f32 %v1323, %v1345
    %v1358 = vadd.f32 %v1324, %v1346
    %v1359 = vadd.f32 %v1325, %v1347
    %v1360 = vadd.f32 %v1326, %v1348
    %v1361 = vadd.f32 %v1327, %v1349
    %v1362 = vadd.f32 %v1328, %v1350
    %1364 = vset.pattern.permute.xlu0 0
    %1365 = vperm.xlu0 %1364, %v54
    %v1366 = vpop.permute.xlu0 %1365
    %1369 = vset.pattern.permute.xlu0 0
    %1370 = vperm.xlu0 %1369, %v82
    %v1371 = vpop.permute.xlu0 %1370
    %v1373 = vmul.f32 %v409, %v604
    %v1374 = vmul.f32 %v414, %v604
    %v1375 = vmul.f32 %v419, %v604
    %v1376 = vmul.f32 %v424, %v604
    %v1377 = vmul.f32 %v429, %v604
    %v1378 = vmul.f32 %v1366, %v604
    %v1379 = vmul.f32 %v439, %v604
    %v1380 = vmul.f32 %v444, %v604
    %v1381 = vmul.f32 %v449, %v604
    %v1382 = vmul.f32 %v454, %v604
    %v1383 = vmul.f32 %v459, %v604
    %v1384 = vmul.f32 %v1371, %v604
    %v1385 = vadd.f32 %v1351, %v1373
    %v1386 = vadd.f32 %v1352, %v1374
    %v1387 = vadd.f32 %v1353, %v1375
    %v1388 = vadd.f32 %v1354, %v1376
    %v1389 = vadd.f32 %v1355, %v1377
    %v1390 = vadd.f32 %v1356, %v1378
    %v1391 = vadd.f32 %v1357, %v1379
    %v1392 = vadd.f32 %v1358, %v1380
    %v1393 = vadd.f32 %v1359, %v1381
    %v1394 = vadd.f32 %v1360, %v1382
    %v1395 = vadd.f32 %v1361, %v1383
    %v1396 = vadd.f32 %v1362, %v1384
    %v1397 = vmul.f32 %v321, %v632
    %v1398 = vmul.f32 %v326, %v632
    %v1399 = vmul.f32 %v331, %v632
    %v1400 = vmul.f32 %v336, %v632
    %v1401 = vmul.f32 %v341, %v632
    %v1402 = vmul.f32 %v1332, %v632
    %v1403 = vmul.f32 %v351, %v632
    %v1404 = vmul.f32 %v356, %v632
    %v1405 = vmul.f32 %v361, %v632
    %v1406 = vmul.f32 %v366, %v632
    %v1407 = vmul.f32 %v371, %v632
    %v1408 = vmul.f32 %v1337, %v632
    %v1421 = vrot.slane %v1397, 1
    %v1422 = vrot.slane %v1398, 1
    %v1423 = vrot.slane %v1399, 1
    %v1424 = vrot.slane %v1400, 1
    %v1425 = vrot.slane %v1401, 1
    %v1426 = vrot.slane %v1402, 1
    %v1427 = vrot.slane %v1403, 1
    %v1428 = vrot.slane %v1404, 1
    %v1429 = vrot.slane %v1405, 1
    %v1430 = vrot.slane %v1406, 1
    %v1431 = vrot.slane %v1407, 1
    %v1432 = vrot.slane %v1408, 1
    %v1445 = vadd.f32 %v1385, %v1421
    %v1446 = vadd.f32 %v1386, %v1422
    %v1447 = vadd.f32 %v1387, %v1423
    %v1448 = vadd.f32 %v1388, %v1424
    %v1449 = vadd.f32 %v1389, %v1425
    %v1450 = vadd.f32 %v1390, %v1426
    %v1451 = vadd.f32 %v1391, %v1427
    %v1452 = vadd.f32 %v1392, %v1428
    %v1453 = vadd.f32 %v1393, %v1429
    %v1454 = vadd.f32 %v1394, %v1430
    %v1455 = vadd.f32 %v1395, %v1431
    %v1456 = vadd.f32 %v1396, %v1432
    %v1457 = vmax.f32 %v1113, %v1445
    %v1458 = vmax.f32 %v1114, %v1446
    %v1459 = vmax.f32 %v1115, %v1447
    %v1460 = vmax.f32 %v1116, %v1448
    %v1461 = vmax.f32 %v1117, %v1449
    %v1462 = vmax.f32 %v1118, %v1450
    %v1463 = vmax.f32 %v1119, %v1451
    %v1464 = vmax.f32 %v1120, %v1452
    %v1465 = vmax.f32 %v1121, %v1453
    %v1466 = vmax.f32 %v1122, %v1454
    %v1467 = vmax.f32 %v1123, %v1455
    %v1468 = vmax.f32 %v1124, %v1456
    %v1469 = vmul.f32 %v404, %v148
    %v1470 = vmul.f32 %v409, %v148
    %v1471 = vmul.f32 %v414, %v148
    %v1472 = vmul.f32 %v419, %v148
    %v1473 = vmul.f32 %v424, %v148
    %v1474 = vmul.f32 %v429, %v148
    %v1475 = vmul.f32 %v434, %v148
    %v1476 = vmul.f32 %v439, %v148
    %v1477 = vmul.f32 %v444, %v148
    %v1478 = vmul.f32 %v449, %v148
    %v1479 = vmul.f32 %v454, %v148
    %v1480 = vmul.f32 %v459, %v148
    %v1481 = vmul.f32 %v316, %v224
    %v1482 = vmul.f32 %v321, %v224
    %v1483 = vmul.f32 %v326, %v224
    %v1484 = vmul.f32 %v331, %v224
    %v1485 = vmul.f32 %v336, %v224
    %v1486 = vmul.f32 %v341, %v224
    %v1487 = vmul.f32 %v346, %v224
    %v1488 = vmul.f32 %v351, %v224
    %v1489 = vmul.f32 %v356, %v224
    %v1490 = vmul.f32 %v361, %v224
    %v1491 = vmul.f32 %v366, %v224
    %v1492 = vmul.f32 %v371, %v224
    %v1505 = vrot.slane %v1481, 1
    %v1506 = vrot.slane %v1482, 1
    %v1507 = vrot.slane %v1483, 1
    %v1508 = vrot.slane %v1484, 1
    %v1509 = vrot.slane %v1485, 1
    %v1510 = vrot.slane %v1486, 1
    %v1511 = vrot.slane %v1487, 1
    %v1512 = vrot.slane %v1488, 1
    %v1513 = vrot.slane %v1489, 1
    %v1514 = vrot.slane %v1490, 1
    %v1515 = vrot.slane %v1491, 1
    %v1516 = vrot.slane %v1492, 1
    %v1529 = vadd.f32 %v1469, %v1505
    %v1530 = vadd.f32 %v1470, %v1506
    %v1531 = vadd.f32 %v1471, %v1507
    %v1532 = vadd.f32 %v1472, %v1508
    %v1533 = vadd.f32 %v1473, %v1509
    %v1534 = vadd.f32 %v1474, %v1510
    %v1535 = vadd.f32 %v1475, %v1511
    %v1536 = vadd.f32 %v1476, %v1512
    %v1537 = vadd.f32 %v1477, %v1513
    %v1538 = vadd.f32 %v1478, %v1514
    %v1539 = vadd.f32 %v1479, %v1515
    %v1540 = vadd.f32 %v1480, %v1516
    %v1541 = vmul.f32 %v404, %v252
    %v1542 = vmul.f32 %v409, %v252
    %v1543 = vmul.f32 %v414, %v252
    %v1544 = vmul.f32 %v419, %v252
    %v1545 = vmul.f32 %v424, %v252
    %v1546 = vmul.f32 %v429, %v252
    %v1547 = vmul.f32 %v434, %v252
    %v1548 = vmul.f32 %v439, %v252
    %v1549 = vmul.f32 %v444, %v252
    %v1550 = vmul.f32 %v449, %v252
    %v1551 = vmul.f32 %v454, %v252
    %v1552 = vmul.f32 %v459, %v252
    %v1565 = vrot.slane %v1541, 1
    %v1566 = vrot.slane %v1542, 1
    %v1567 = vrot.slane %v1543, 1
    %v1568 = vrot.slane %v1544, 1
    %v1569 = vrot.slane %v1545, 1
    %v1570 = vrot.slane %v1546, 1
    %v1571 = vrot.slane %v1547, 1
    %v1572 = vrot.slane %v1548, 1
    %v1573 = vrot.slane %v1549, 1
    %v1574 = vrot.slane %v1550, 1
    %v1575 = vrot.slane %v1551, 1
    %v1576 = vrot.slane %v1552, 1
    %v1589 = vadd.f32 %v1529, %v1565
    %v1590 = vadd.f32 %v1530, %v1566
    %v1591 = vadd.f32 %v1531, %v1567
    %v1592 = vadd.f32 %v1532, %v1568
    %v1593 = vadd.f32 %v1533, %v1569
    %v1594 = vadd.f32 %v1534, %v1570
    %v1595 = vadd.f32 %v1535, %v1571
    %v1596 = vadd.f32 %v1536, %v1572
    %v1597 = vadd.f32 %v1537, %v1573
    %v1598 = vadd.f32 %v1538, %v1574
    %v1599 = vadd.f32 %v1539, %v1575
    %v1600 = vadd.f32 %v1540, %v1576
    %v1601 = vmul.f32 %v169, %v376
    %v1602 = vmul.f32 %v174, %v376
    %v1603 = vmul.f32 %v179, %v376
    %v1604 = vmul.f32 %v184, %v376
    %v1605 = vmul.f32 %v189, %v376
    %v1606 = vmul.f32 %v594, %v376
    %v1607 = vmul.f32 %v199, %v376
    %v1608 = vmul.f32 %v204, %v376
    %v1609 = vmul.f32 %v209, %v376
    %v1610 = vmul.f32 %v214, %v376
    %v1611 = vmul.f32 %v219, %v376
    %v1612 = vmul.f32 %v599, %v376
    %v1613 = vadd.f32 %v1589, %v1601
    %v1614 = vadd.f32 %v1590, %v1602
    %v1615 = vadd.f32 %v1591, %v1603
    %v1616 = vadd.f32 %v1592, %v1604
    %v1617 = vadd.f32 %v1593, %v1605
    %v1618 = vadd.f32 %v1594, %v1606
    %v1619 = vadd.f32 %v1595, %v1607
    %v1620 = vadd.f32 %v1596, %v1608
    %v1621 = vadd.f32 %v1597, %v1609
    %v1622 = vadd.f32 %v1598, %v1610
    %v1623 = vadd.f32 %v1599, %v1611
    %v1624 = vadd.f32 %v1600, %v1612
    %v1625 = vmul.f32 %v93, %v464
    %v1626 = vmul.f32 %v98, %v464
    %v1627 = vmul.f32 %v103, %v464
    %v1628 = vmul.f32 %v108, %v464
    %v1629 = vmul.f32 %v113, %v464
    %v1630 = vmul.f32 %v556, %v464
    %v1631 = vmul.f32 %v123, %v464
    %v1632 = vmul.f32 %v128, %v464
    %v1633 = vmul.f32 %v133, %v464
    %v1634 = vmul.f32 %v138, %v464
    %v1635 = vmul.f32 %v143, %v464
    %v1636 = vmul.f32 %v561, %v464
    %v1649 = vrot.slane %v1625, 1
    %v1650 = vrot.slane %v1626, 1
    %v1651 = vrot.slane %v1627, 1
    %v1652 = vrot.slane %v1628, 1
    %v1653 = vrot.slane %v1629, 1
    %v1654 = vrot.slane %v1630, 1
    %v1655 = vrot.slane %v1631, 1
    %v1656 = vrot.slane %v1632, 1
    %v1657 = vrot.slane %v1633, 1
    %v1658 = vrot.slane %v1634, 1
    %v1659 = vrot.slane %v1635, 1
    %v1660 = vrot.slane %v1636, 1
    %v1673 = vadd.f32 %v1613, %v1649
    %v1674 = vadd.f32 %v1614, %v1650
    %v1675 = vadd.f32 %v1615, %v1651
    %v1676 = vadd.f32 %v1616, %v1652
    %v1677 = vadd.f32 %v1617, %v1653
    %v1678 = vadd.f32 %v1618, %v1654
    %v1679 = vadd.f32 %v1619, %v1655
    %v1680 = vadd.f32 %v1620, %v1656
    %v1681 = vadd.f32 %v1621, %v1657
    %v1682 = vadd.f32 %v1622, %v1658
    %v1683 = vadd.f32 %v1623, %v1659
    %v1684 = vadd.f32 %v1624, %v1660
    %v1685 = vmul.f32 %v169, %v492
    %v1686 = vmul.f32 %v174, %v492
    %v1687 = vmul.f32 %v179, %v492
    %v1688 = vmul.f32 %v184, %v492
    %v1689 = vmul.f32 %v189, %v492
    %v1690 = vmul.f32 %v594, %v492
    %v1691 = vmul.f32 %v199, %v492
    %v1692 = vmul.f32 %v204, %v492
    %v1693 = vmul.f32 %v209, %v492
    %v1694 = vmul.f32 %v214, %v492
    %v1695 = vmul.f32 %v219, %v492
    %v1696 = vmul.f32 %v599, %v492
    %v1709 = vrot.slane %v1685, 1
    %v1710 = vrot.slane %v1686, 1
    %v1711 = vrot.slane %v1687, 1
    %v1712 = vrot.slane %v1688, 1
    %v1713 = vrot.slane %v1689, 1
    %v1714 = vrot.slane %v1690, 1
    %v1715 = vrot.slane %v1691, 1
    %v1716 = vrot.slane %v1692, 1
    %v1717 = vrot.slane %v1693, 1
    %v1718 = vrot.slane %v1694, 1
    %v1719 = vrot.slane %v1695, 1
    %v1720 = vrot.slane %v1696, 1
    %v1733 = vadd.f32 %v1673, %v1709
    %v1734 = vadd.f32 %v1674, %v1710
    %v1735 = vadd.f32 %v1675, %v1711
    %v1736 = vadd.f32 %v1676, %v1712
    %v1737 = vadd.f32 %v1677, %v1713
    %v1738 = vadd.f32 %v1678, %v1714
    %v1739 = vadd.f32 %v1679, %v1715
    %v1740 = vadd.f32 %v1680, %v1716
    %v1741 = vadd.f32 %v1681, %v1717
    %v1742 = vadd.f32 %v1682, %v1718
    %v1743 = vadd.f32 %v1683, %v1719
    %v1744 = vadd.f32 %v1684, %v1720
    %v1745 = vmul.f32 %v409, %v566
    %v1746 = vmul.f32 %v414, %v566
    %v1747 = vmul.f32 %v419, %v566
    %v1748 = vmul.f32 %v424, %v566
    %v1749 = vmul.f32 %v429, %v566
    %v1750 = vmul.f32 %v1366, %v566
    %v1751 = vmul.f32 %v439, %v566
    %v1752 = vmul.f32 %v444, %v566
    %v1753 = vmul.f32 %v449, %v566
    %v1754 = vmul.f32 %v454, %v566
    %v1755 = vmul.f32 %v459, %v566
    %v1756 = vmul.f32 %v1371, %v566
    %v1757 = vadd.f32 %v1733, %v1745
    %v1758 = vadd.f32 %v1734, %v1746
    %v1759 = vadd.f32 %v1735, %v1747
    %v1760 = vadd.f32 %v1736, %v1748
    %v1761 = vadd.f32 %v1737, %v1749
    %v1762 = vadd.f32 %v1738, %v1750
    %v1763 = vadd.f32 %v1739, %v1751
    %v1764 = vadd.f32 %v1740, %v1752
    %v1765 = vadd.f32 %v1741, %v1753
    %v1766 = vadd.f32 %v1742, %v1754
    %v1767 = vadd.f32 %v1743, %v1755
    %v1768 = vadd.f32 %v1744, %v1756
    %v1769 = vmul.f32 %v321, %v604
    %v1770 = vmul.f32 %v326, %v604
    %v1771 = vmul.f32 %v331, %v604
    %v1772 = vmul.f32 %v336, %v604
    %v1773 = vmul.f32 %v341, %v604
    %v1774 = vmul.f32 %v1332, %v604
    %v1775 = vmul.f32 %v351, %v604
    %v1776 = vmul.f32 %v356, %v604
    %v1777 = vmul.f32 %v361, %v604
    %v1778 = vmul.f32 %v366, %v604
    %v1779 = vmul.f32 %v371, %v604
    %v1780 = vmul.f32 %v1337, %v604
    %v1793 = vrot.slane %v1769, 1
    %v1794 = vrot.slane %v1770, 1
    %v1795 = vrot.slane %v1771, 1
    %v1796 = vrot.slane %v1772, 1
    %v1797 = vrot.slane %v1773, 1
    %v1798 = vrot.slane %v1774, 1
    %v1799 = vrot.slane %v1775, 1
    %v1800 = vrot.slane %v1776, 1
    %v1801 = vrot.slane %v1777, 1
    %v1802 = vrot.slane %v1778, 1
    %v1803 = vrot.slane %v1779, 1
    %v1804 = vrot.slane %v1780, 1
    %v1817 = vadd.f32 %v1757, %v1793
    %v1818 = vadd.f32 %v1758, %v1794
    %v1819 = vadd.f32 %v1759, %v1795
    %v1820 = vadd.f32 %v1760, %v1796
    %v1821 = vadd.f32 %v1761, %v1797
    %v1822 = vadd.f32 %v1762, %v1798
    %v1823 = vadd.f32 %v1763, %v1799
    %v1824 = vadd.f32 %v1764, %v1800
    %v1825 = vadd.f32 %v1765, %v1801
    %v1826 = vadd.f32 %v1766, %v1802
    %v1827 = vadd.f32 %v1767, %v1803
    %v1828 = vadd.f32 %v1768, %v1804
    %v1829 = vmul.f32 %v409, %v632
    %v1830 = vmul.f32 %v414, %v632
    %v1831 = vmul.f32 %v419, %v632
    %v1832 = vmul.f32 %v424, %v632
    %v1833 = vmul.f32 %v429, %v632
    %v1834 = vmul.f32 %v1366, %v632
    %v1835 = vmul.f32 %v439, %v632
    %v1836 = vmul.f32 %v444, %v632
    %v1837 = vmul.f32 %v449, %v632
    %v1838 = vmul.f32 %v454, %v632
    %v1839 = vmul.f32 %v459, %v632
    %v1840 = vmul.f32 %v1371, %v632
    %v1853 = vrot.slane %v1829, 1
    %v1854 = vrot.slane %v1830, 1
    %v1855 = vrot.slane %v1831, 1
    %v1856 = vrot.slane %v1832, 1
    %v1857 = vrot.slane %v1833, 1
    %v1858 = vrot.slane %v1834, 1
    %v1859 = vrot.slane %v1835, 1
    %v1860 = vrot.slane %v1836, 1
    %v1861 = vrot.slane %v1837, 1
    %v1862 = vrot.slane %v1838, 1
    %v1863 = vrot.slane %v1839, 1
    %v1864 = vrot.slane %v1840, 1
    %v1877 = vadd.f32 %v1817, %v1853
    %v1878 = vadd.f32 %v1818, %v1854
    %v1879 = vadd.f32 %v1819, %v1855
    %v1880 = vadd.f32 %v1820, %v1856
    %v1881 = vadd.f32 %v1821, %v1857
    %v1882 = vadd.f32 %v1822, %v1858
    %v1883 = vadd.f32 %v1823, %v1859
    %v1884 = vadd.f32 %v1824, %v1860
    %v1885 = vadd.f32 %v1825, %v1861
    %v1886 = vadd.f32 %v1826, %v1862
    %v1887 = vadd.f32 %v1827, %v1863
    %v1888 = vadd.f32 %v1828, %v1864
    %v1889 = vmax.f32 %v1457, %v1877
    %v1890 = vmax.f32 %v1458, %v1878
    %v1891 = vmax.f32 %v1459, %v1879
    %v1892 = vmax.f32 %v1460, %v1880
    %v1893 = vmax.f32 %v1461, %v1881
    %v1894 = vmax.f32 %v1462, %v1882
    %v1895 = vmax.f32 %v1463, %v1883
    %v1896 = vmax.f32 %v1464, %v1884
    %v1897 = vmax.f32 %v1465, %v1885
    %v1898 = vmax.f32 %v1466, %v1886
    %v1899 = vmax.f32 %v1467, %v1887
    %v1900 = vmax.f32 %v1468, %v1888
    %v1901 = vld [vmem:[%s2] sm:$0x1]
    %v1903 = vlaneseq
    %v1904 = vshrl.u32 %v1903, 7
    %v1905 = vsub.s32 0, %v1904
    %v1906 = vrot.slane %v1901, %v1905
    %v1908 = vadd.f32 %v1889, %v1906
    %v1909 = vadd.f32 %v1890, %v1906
    %v1910 = vadd.f32 %v1891, %v1906
    %v1911 = vadd.f32 %v1892, %v1906
    %v1912 = vadd.f32 %v1893, %v1906
    %v1913 = vadd.f32 %v1894, %v1906
    %v1914 = vadd.f32 %v1895, %v1906
    %v1915 = vadd.f32 %v1896, %v1906
    %v1916 = vadd.f32 %v1897, %v1906
    %v1917 = vadd.f32 %v1898, %v1906
    %v1918 = vadd.f32 %v1899, %v1906
    %v1919 = vadd.f32 %v1900, %v1906
    %v1920 = vmax.f32 %v1908, 0.0
    %v1921 = vmax.f32 %v1909, 0.0
    %v1922 = vmax.f32 %v1910, 0.0
    %v1923 = vmax.f32 %v1911, 0.0
    %v1924 = vmax.f32 %v1912, 0.0
    %v1925 = vmax.f32 %v1913, 0.0
    %v1926 = vmax.f32 %v1914, 0.0
    %v1927 = vmax.f32 %v1915, 0.0
    %v1928 = vmax.f32 %v1916, 0.0
    %v1929 = vmax.f32 %v1917, 0.0
    %v1930 = vmax.f32 %v1918, 0.0
    %v1931 = vmax.f32 %v1919, 0.0
    %v1933 = vrot.slane %v1920, 1
    %1934 = vrot.lane.b32.xlu0 %v1933, 4
    %v1935 = vpop.permute.xlu0 %1934
    %v1937 = vrot.slane %v1920, 2
    %1938 = vrot.lane.b32.xlu0 %v1937, 8
    %v1939 = vpop.permute.xlu0 %1938
    %1942 = vrot.lane.b32.xlu0 %v1921, 12
    %v1943 = vpop.permute.xlu0 %1942
    %v1945 = vrot.slane %v1921, 1
    %1946 = vrot.lane.b32.xlu0 %v1945, 16
    %v1947 = vpop.permute.xlu0 %1946
    %v1949 = vrot.slane %v1921, 2
    %1950 = vrot.lane.b32.xlu0 %v1949, 20
    %v1951 = vpop.permute.xlu0 %1950
    %1954 = vrot.lane.b32.xlu0 %v1922, 24
    %v1955 = vpop.permute.xlu0 %1954
    %v1957 = vrot.slane %v1922, 1
    %1958 = vrot.lane.b32.xlu0 %v1957, 28
    %v1959 = vpop.permute.xlu0 %1958
    %v1961 = vrot.slane %v1922, 2
    %1962 = vrot.lane.b32.xlu0 %v1961, 32
    %v1963 = vpop.permute.xlu0 %1962
    %vm1965 = vcmask 31744
    %v1966 = vsel %vm1965, %v1920, %v1935
    %vm1967 = vcmask 64512
    %v1968 = vsel %vm1967, %v1966, %v1939
    %vm1969 = vcmask 97280
    %v1970 = vsel %vm1969, %v1968, %v1943
    %vm1971 = vcmask 130048
    %v1972 = vsel %vm1971, %v1970, %v1947
    %vm1973 = vcmask 162816
    %v1974 = vsel %vm1973, %v1972, %v1951
    %vm1975 = vcmask 195584
    %v1976 = vsel %vm1975, %v1974, %v1955
    %vm1977 = vcmask 228352
    %v1978 = vsel %vm1977, %v1976, %v1959
    %vm1979 = vcmask 261120
    %v1980 = vsel %vm1979, %v1978, %v1963
    %1981 = vrot.lane.b32.xlu0 %v1945, 4
    %v1982 = vpop.permute.xlu0 %1981
    %1984 = vrot.lane.b32.xlu0 %v1949, 8
    %v1985 = vpop.permute.xlu0 %1984
    %1987 = vrot.lane.b32.xlu0 %v1922, 12
    %v1988 = vpop.permute.xlu0 %1987
    %1990 = vrot.lane.b32.xlu0 %v1957, 16
    %v1991 = vpop.permute.xlu0 %1990
    %1993 = vrot.lane.b32.xlu0 %v1961, 20
    %v1994 = vpop.permute.xlu0 %1993
    %1997 = vrot.lane.b32.xlu0 %v1923, 24
    %v1998 = vpop.permute.xlu0 %1997
    %v2000 = vrot.slane %v1923, 1
    %2001 = vrot.lane.b32.xlu0 %v2000, 28
    %v2002 = vpop.permute.xlu0 %2001
    %v2004 = vrot.slane %v1923, 2
    %2005 = vrot.lane.b32.xlu0 %v2004, 32
    %v2006 = vpop.permute.xlu0 %2005
    %v2008 = vsel %vm1965, %v1921, %v1982
    %v2009 = vsel %vm1967, %v2008, %v1985
    %v2010 = vsel %vm1969, %v2009, %v1988
    %v2011 = vsel %vm1971, %v2010, %v1991
    %v2012 = vsel %vm1973, %v2011, %v1994
    %v2013 = vsel %vm1975, %v2012, %v1998
    %v2014 = vsel %vm1977, %v2013, %v2002
    %v2015 = vsel %vm1979, %v2014, %v2006
    %2016 = vrot.lane.b32.xlu0 %v1957, 4
    %v2017 = vpop.permute.xlu0 %2016
    %2019 = vrot.lane.b32.xlu0 %v1961, 8
    %v2020 = vpop.permute.xlu0 %2019
    %2022 = vrot.lane.b32.xlu0 %v1923, 12
    %v2023 = vpop.permute.xlu0 %2022
    %2025 = vrot.lane.b32.xlu0 %v2000, 16
    %v2026 = vpop.permute.xlu0 %2025
    %2028 = vrot.lane.b32.xlu0 %v2004, 20
    %v2029 = vpop.permute.xlu0 %2028
    %2032 = vrot.lane.b32.xlu0 %v1924, 24
    %v2033 = vpop.permute.xlu0 %2032
    %v2035 = vrot.slane %v1924, 1
    %2036 = vrot.lane.b32.xlu0 %v2035, 28
    %v2037 = vpop.permute.xlu0 %2036
    %v2039 = vrot.slane %v1924, 2
    %2040 = vrot.lane.b32.xlu0 %v2039, 32
    %v2041 = vpop.permute.xlu0 %2040
    %v2043 = vsel %vm1965, %v1922, %v2017
    %v2044 = vsel %vm1967, %v2043, %v2020
    %v2045 = vsel %vm1969, %v2044, %v2023
    %v2046 = vsel %vm1971, %v2045, %v2026
    %v2047 = vsel %vm1973, %v2046, %v2029
    %v2048 = vsel %vm1975, %v2047, %v2033
    %v2049 = vsel %vm1977, %v2048, %v2037
    %v2050 = vsel %vm1979, %v2049, %v2041
    %2051 = vrot.lane.b32.xlu0 %v2000, 4
    %v2052 = vpop.permute.xlu0 %2051
    %2054 = vrot.lane.b32.xlu0 %v2004, 8
    %v2055 = vpop.permute.xlu0 %2054
    %2057 = vrot.lane.b32.xlu0 %v1924, 12
    %v2058 = vpop.permute.xlu0 %2057
    %2060 = vrot.lane.b32.xlu0 %v2035, 16
    %v2061 = vpop.permute.xlu0 %2060
    %2063 = vrot.lane.b32.xlu0 %v2039, 20
    %v2064 = vpop.permute.xlu0 %2063
    %2067 = vrot.lane.b32.xlu0 %v1925, 24
    %v2068 = vpop.permute.xlu0 %2067
    %v2070 = vrot.slane %v1925, 1
    %2071 = vrot.lane.b32.xlu0 %v2070, 28
    %v2072 = vpop.permute.xlu0 %2071
    %v2074 = vrot.slane %v1925, 2
    %2075 = vrot.lane.b32.xlu0 %v2074, 32
    %v2076 = vpop.permute.xlu0 %2075
    %v2078 = vsel %vm1965, %v1923, %v2052
    %v2079 = vsel %vm1967, %v2078, %v2055
    %v2080 = vsel %vm1969, %v2079, %v2058
    %v2081 = vsel %vm1971, %v2080, %v2061
    %v2082 = vsel %vm1973, %v2081, %v2064
    %v2083 = vsel %vm1975, %v2082, %v2068
    %v2084 = vsel %vm1977, %v2083, %v2072
    %v2085 = vsel %vm1979, %v2084, %v2076
    %v2087 = vrot.slane %v1926, 1
    %2088 = vrot.lane.b32.xlu0 %v2087, 4
    %v2089 = vpop.permute.xlu0 %2088
    %v2091 = vrot.slane %v1926, 2
    %2092 = vrot.lane.b32.xlu0 %v2091, 8
    %v2093 = vpop.permute.xlu0 %2092
    %2096 = vrot.lane.b32.xlu0 %v1927, 12
    %v2097 = vpop.permute.xlu0 %2096
    %v2099 = vrot.slane %v1927, 1
    %2100 = vrot.lane.b32.xlu0 %v2099, 16
    %v2101 = vpop.permute.xlu0 %2100
    %v2103 = vrot.slane %v1927, 2
    %2104 = vrot.lane.b32.xlu0 %v2103, 20
    %v2105 = vpop.permute.xlu0 %2104
    %2108 = vrot.lane.b32.xlu0 %v1928, 24
    %v2109 = vpop.permute.xlu0 %2108
    %v2111 = vrot.slane %v1928, 1
    %2112 = vrot.lane.b32.xlu0 %v2111, 28
    %v2113 = vpop.permute.xlu0 %2112
    %v2115 = vrot.slane %v1928, 2
    %2116 = vrot.lane.b32.xlu0 %v2115, 32
    %v2117 = vpop.permute.xlu0 %2116
    %v2119 = vsel %vm1965, %v1926, %v2089
    %v2120 = vsel %vm1967, %v2119, %v2093
    %v2121 = vsel %vm1969, %v2120, %v2097
    %v2122 = vsel %vm1971, %v2121, %v2101
    %v2123 = vsel %vm1973, %v2122, %v2105
    %v2124 = vsel %vm1975, %v2123, %v2109
    %v2125 = vsel %vm1977, %v2124, %v2113
    %v2126 = vsel %vm1979, %v2125, %v2117
    %2127 = vrot.lane.b32.xlu0 %v2099, 4
    %v2128 = vpop.permute.xlu0 %2127
    %2130 = vrot.lane.b32.xlu0 %v2103, 8
    %v2131 = vpop.permute.xlu0 %2130
    %2133 = vrot.lane.b32.xlu0 %v1928, 12
    %v2134 = vpop.permute.xlu0 %2133
    %2136 = vrot.lane.b32.xlu0 %v2111, 16
    %v2137 = vpop.permute.xlu0 %2136
    %2139 = vrot.lane.b32.xlu0 %v2115, 20
    %v2140 = vpop.permute.xlu0 %2139
    %2143 = vrot.lane.b32.xlu0 %v1929, 24
    %v2144 = vpop.permute.xlu0 %2143
    %v2146 = vrot.slane %v1929, 1
    %2147 = vrot.lane.b32.xlu0 %v2146, 28
    %v2148 = vpop.permute.xlu0 %2147
    %v2150 = vrot.slane %v1929, 2
    %2151 = vrot.lane.b32.xlu0 %v2150, 32
    %v2152 = vpop.permute.xlu0 %2151
    %v2154 = vsel %vm1965, %v1927, %v2128
    %v2155 = vsel %vm1967, %v2154, %v2131
    %v2156 = vsel %vm1969, %v2155, %v2134
    %v2157 = vsel %vm1971, %v2156, %v2137
    %v2158 = vsel %vm1973, %v2157, %v2140
    %v2159 = vsel %vm1975, %v2158, %v2144
    %v2160 = vsel %vm1977, %v2159, %v2148
    %v2161 = vsel %vm1979, %v2160, %v2152
    %2162 = vrot.lane.b32.xlu0 %v2111, 4
    %v2163 = vpop.permute.xlu0 %2162
    %2165 = vrot.lane.b32.xlu0 %v2115, 8
    %v2166 = vpop.permute.xlu0 %2165
    %2168 = vrot.lane.b32.xlu0 %v1929, 12
    %v2169 = vpop.permute.xlu0 %2168
    %2171 = vrot.lane.b32.xlu0 %v2146, 16
    %v2172 = vpop.permute.xlu0 %2171
    %2174 = vrot.lane.b32.xlu0 %v2150, 20
    %v2175 = vpop.permute.xlu0 %2174
    %2178 = vrot.lane.b32.xlu0 %v1930, 24
    %v2179 = vpop.permute.xlu0 %2178
    %v2181 = vrot.slane %v1930, 1
    %2182 = vrot.lane.b32.xlu0 %v2181, 28
    %v2183 = vpop.permute.xlu0 %2182
    %v2185 = vrot.slane %v1930, 2
    %2186 = vrot.lane.b32.xlu0 %v2185, 32
    %v2187 = vpop.permute.xlu0 %2186
    %v2189 = vsel %vm1965, %v1928, %v2163
    %v2190 = vsel %vm1967, %v2189, %v2166
    %v2191 = vsel %vm1969, %v2190, %v2169
    %v2192 = vsel %vm1971, %v2191, %v2172
    %v2193 = vsel %vm1973, %v2192, %v2175
    %v2194 = vsel %vm1975, %v2193, %v2179
    %v2195 = vsel %vm1977, %v2194, %v2183
    %v2196 = vsel %vm1979, %v2195, %v2187
    %2197 = vrot.lane.b32.xlu0 %v2146, 4
    %v2198 = vpop.permute.xlu0 %2197
    %2200 = vrot.lane.b32.xlu0 %v2150, 8
    %v2201 = vpop.permute.xlu0 %2200
    %2203 = vrot.lane.b32.xlu0 %v1930, 12
    %v2204 = vpop.permute.xlu0 %2203
    %2206 = vrot.lane.b32.xlu0 %v2181, 16
    %v2207 = vpop.permute.xlu0 %2206
    %2209 = vrot.lane.b32.xlu0 %v2185, 20
    %v2210 = vpop.permute.xlu0 %2209
    %2213 = vrot.lane.b32.xlu0 %v1931, 24
    %v2214 = vpop.permute.xlu0 %2213
    %v2216 = vrot.slane %v1931, 1
    %2217 = vrot.lane.b32.xlu0 %v2216, 28
    %v2218 = vpop.permute.xlu0 %2217
    %v2220 = vrot.slane %v1931, 2
    %2221 = vrot.lane.b32.xlu0 %v2220, 32
    %v2222 = vpop.permute.xlu0 %2221
    %v2224 = vsel %vm1965, %v1929, %v2198
    %v2225 = vsel %vm1967, %v2224, %v2201
    %v2226 = vsel %vm1969, %v2225, %v2204
    %v2227 = vsel %vm1971, %v2226, %v2207
    %v2228 = vsel %vm1973, %v2227, %v2210
    %v2229 = vsel %vm1975, %v2228, %v2214
    %v2230 = vsel %vm1977, %v2229, %v2218
    %v2231 = vsel %vm1979, %v2230, %v2222
    %v2233 = vrot.slane %v2015, 4
    %v2236 = vrot.slane %v2085, 4
    %v2239 = vrot.slane %v2161, 4
    %v2242 = vrot.slane %v2231, 4
    %vm2244 = vcmask 1043456
    %v2245 = vsel %vm2244, %v1980, %v2233
    %v2246 = vsel %vm2244, %v2050, %v2236
    %v2247 = vsel %vm2244, %v2126, %v2239
    %v2248 = vsel %vm2244, %v2196, %v2242
    %v2249 = vld [vmem:[%s3] sm:$0xff]
    %v2250 = vld [vmem:[%s3 + $0x8] sm:$0xff]
    %v2251 = vld [vmem:[%s3 + $0x10] sm:$0xff]
    %v2252 = vld [vmem:[%s3 + $0x18] sm:$0xff]
    %v2253 = vld [vmem:[%s3 + $0x20] sm:$0xf]
    %vm2254 = vcmask 293888
    %v2256 = vsel %vm2254, %v2245, 0
    %v2259 = vsel %vm2254, %v2246, 0
    %v2262 = vsel %vm2254, %v2247, 0
    %v2265 = vsel %vm2254, %v2248, 0
    %v2268 = vsel %vm2244, %v2253, 0
    %2270 = vmatprep.subr.mxu0 0.0
    %2271 = vmatpush1.msra.mxu0 0.0
    %2272 = vmatprep.subr.mxu0 0.0
    %2273 = vmatpush1.msra.mxu0 0.0
    %2274 = vmatprep.subr.mxu0 0.0
    %2275 = vmatpush1.msra.mxu0 0.0
    %2276 = vmatprep.subr.mxu0 0.0
    %2277 = vmatpush1.msra.mxu0 0.0
    %2278 = vmatprep.subr.mxu0 0.0
    %2279 = vmatpush1.msra.mxu0 0.0
    %2280 = vmatprep.subr.mxu0 0.0
    %2281 = vmatpush1.msra.mxu0 0.0
    %2282 = vmatprep.subr.mxu0 0.0
    %2283 = vmatpush1.msra.mxu0 0.0
    %2284 = vmatprep.subr.mxu0 0.0
    %2285 = vmatpush1.msra.mxu0 0.0
    %2286 = vmatprep.subr.mxu0 0.0
    %2287 = vmatpush1.msra.mxu0 0.0
    %2288 = vmatprep.subr.mxu0 0.0
    %2289 = vmatpush1.msra.mxu0 0.0
    %2290 = vmatprep.subr.mxu0 0.0
    %2291 = vmatpush1.msra.mxu0 0.0
    %2292 = vmatprep.subr.mxu0 0.0
    %2293 = vmatpush1.msra.mxu0 %v2268
    %2294 = vmatprep.subr.mxu0 0.0
    %2295 = vmatpush1.msra.mxu0 %v2252
    %2296 = vmatprep.subr.mxu0 0.0
    %2297 = vmatpush1.msra.mxu0 %v2251
    %2298 = vmatprep.subr.mxu0 0.0
    %2299 = vmatpush1.msra.mxu0 %v2250
    %2300 = vmatprep.subr.mxu0 0.0
    %2301 = vmatpush1.msra.mxu0 %v2249
    %2302 = vmatprep.subr.mxu0 0.0
    %2303 = vmatpush2.msra.mxu0 0.0
    %2304 = vmatprep.subr.mxu0 0.0
    %2305 = vmatpush2.msra.mxu0 0.0
    %2306 = vmatprep.subr.mxu0 0.0
    %2307 = vmatpush2.msra.mxu0 0.0
    %2308 = vmatprep.subr.mxu0 0.0
    %2309 = vmatpush2.msra.mxu0 0.0
    %2310 = vmatprep.subr.mxu0 0.0
    %2311 = vmatpush2.msra.mxu0 0.0
    %2312 = vmatprep.subr.mxu0 0.0
    %2313 = vmatpush2.msra.mxu0 0.0
    %2314 = vmatprep.subr.mxu0 0.0
    %2315 = vmatpush2.msra.mxu0 0.0
    %2316 = vmatprep.subr.mxu0 0.0
    %2317 = vmatpush2.msra.mxu0 0.0
    %2318 = vmatprep.subr.mxu0 0.0
    %2319 = vmatpush2.msra.mxu0 0.0
    %2320 = vmatprep.subr.mxu0 0.0
    %2321 = vmatpush2.msra.mxu0 0.0
    %2322 = vmatprep.subr.mxu0 0.0
    %2323 = vmatpush2.msra.mxu0 0.0
    %2324 = vmatprep.subr.mxu0 0.0
    %2325 = vmatpush2.msra.mxu0 0.0
    %2326 = vmatprep.subr.mxu0 0.0
    %2327 = vmatpush2.msra.mxu0 0.0
    %2328 = vmatprep.subr.mxu0 0.0
    %2329 = vmatpush2.msra.mxu0 0.0
    %2330 = vmatprep.subr.mxu0 0.0
    %2331 = vmatpush2.msra.mxu0 0.0
    %2332 = vmatprep.subr.mxu0 0.0
    %2333 = vmatpush2.msra.mxu0 0.0
    %2334 = vmatprep.mubr.f32.mxu0 0.0
    %2335 = vmatmul.mubr.f32.gmra.mxu0 %v2256
    %v2336 = vpop.f32.mrf.mxu0
    %v2337 = vadd.f32 0.0, %v2336
    %v2338 = vpop.f32.mrf.mxu0
    %2339 = vmatprep.mubr.f32.mxu0 0.0
    %2340 = vmatmul.mubr.f32.gmra.mxu0 %v2259
    %v2341 = vpop.f32.mrf.mxu0
    %v2342 = vadd.f32 0.0, %v2341
    %v2343 = vpop.f32.mrf.mxu0
    %2344 = vmatprep.mubr.f32.mxu0 0.0
    %2345 = vmatmul.mubr.f32.gmra.mxu0 %v2262
    %v2346 = vpop.f32.mrf.mxu0
    %v2347 = vadd.f32 0.0, %v2346
    %v2348 = vpop.f32.mrf.mxu0
    %2349 = vmatprep.mubr.f32.mxu0 0.0
    %2350 = vmatmul.mubr.f32.gmra.mxu0 %v2265
    %v2351 = vpop.f32.mrf.mxu0
    %v2352 = vadd.f32 0.0, %v2351
    %v2353 = vpop.f32.mrf.mxu0
    %2354 = vdwg.mxu0
    %v2356 = vrot.slane %v2337, 1
    %v2358 = vmax.f32 %v2337, %v2356
    %v2360 = vrot.slane %v2358, 4
    %v2362 = vmax.f32 %v2358, %v2360
    %v2364 = vrot.slane %v2347, 1
    %v2366 = vmax.f32 %v2347, %v2364
    %v2368 = vrot.slane %v2366, 4
    %v2370 = vmax.f32 %v2366, %v2368
    %v2372 = vrot.slane %v2342, 1
    %v2374 = vmax.f32 %v2342, %v2372
    %v2376 = vrot.slane %v2374, 4
    %v2378 = vmax.f32 %v2374, %v2376
    %v2380 = vrot.slane %v2352, 1
    %v2382 = vmax.f32 %v2352, %v2380
    %v2384 = vrot.slane %v2382, 4
    %v2386 = vmax.f32 %v2382, %v2384
    %v2388 = vrot.slane %v2370, 7
    %v2391 = vrot.slane %v2378, 4
    %v2394 = vrot.slane %v2386, 3
    %vm2396 = vcmask 1040384
    %v2397 = vsel %vm2396, %v2362, %v2388
    %vm2398 = vcmask 1041408
    %v2399 = vsel %vm2398, %v2397, %v2362
    %vm2400 = vcmask 1042432
    %v2401 = vsel %vm2400, %v2399, %v2388
    %v2402 = vsel %vm2244, %v2401, %v2391
    %vm2403 = vcmask 1044480
    %v2404 = vsel %vm2403, %v2402, %v2394
    %vm2405 = vcmask 1045504
    %v2406 = vsel %vm2405, %v2404, %v2391
    %vm2407 = vcmask 1046528
    %v2408 = vsel %vm2407, %v2406, %v2394
    %v2409 = vld [vmem:[%s4] sm:$0x1]
    %v2411 = vlaneseq
    %v2412 = vshrl.u32 %v2411, 7
    %v2413 = vsub.s32 0, %v2412
    %v2414 = vrot.slane %v2409, %v2413
    %v2416 = vadd.f32 %v2408, %v2414
    %v2417 = vmax.f32 %v2416, 0.0
    %v2418 = vld [vmem:[%s5] sm:$0xff]
    %v2419 = vld [vmem:[%s5 + $0x8] sm:$0xff]
    %v2420 = vld [vmem:[%s5 + $0x10] sm:$0xff]
    %v2421 = vld [vmem:[%s5 + $0x18] sm:$0xff]
    %v2422 = vld [vmem:[%s5 + $0x20] sm:$0xff]
    %v2423 = vld [vmem:[%s5 + $0x28] sm:$0xff]
    %v2424 = vld [vmem:[%s5 + $0x30] sm:$0xff]
    %v2425 = vld [vmem:[%s5 + $0x38] sm:$0xff]
    %v2426 = vld [vmem:[%s5 + $0x40] sm:$0xff]
    %v2427 = vld [vmem:[%s5 + $0x48] sm:$0xff]
    %v2428 = vld [vmem:[%s5 + $0x50] sm:$0xff]
    %v2429 = vld [vmem:[%s5 + $0x58] sm:$0xff]
    %v2430 = vld [vmem:[%s5 + $0x60] sm:$0xff]
    %v2431 = vld [vmem:[%s5 + $0x68] sm:$0xff]
    %v2432 = vld [vmem:[%s5 + $0x70] sm:$0xff]
    %v2433 = vld [vmem:[%s5 + $0x78] sm:$0xff]
    %s2434 = scalar_lea.vmem %s5, 128
    %v2435 = vld [vmem:[%s2434] sm:$0xff]
    %v2436 = vld [vmem:[%s2434 + $0x8] sm:$0xff]
    %v2437 = vld [vmem:[%s2434 + $0x10] sm:$0xff]
    %v2438 = vld [vmem:[%s2434 + $0x18] sm:$0xff]
    %v2439 = vld [vmem:[%s2434 + $0x20] sm:$0xff]
    %v2440 = vld [vmem:[%s2434 + $0x28] sm:$0xff]
    %v2441 = vld [vmem:[%s2434 + $0x30] sm:$0xff]
    %v2442 = vld [vmem:[%s2434 + $0x38] sm:$0xff]
    %v2443 = vld [vmem:[%s2434 + $0x40] sm:$0xff]
    %v2444 = vld [vmem:[%s2434 + $0x48] sm:$0xff]
    %v2445 = vld [vmem:[%s2434 + $0x50] sm:$0xff]
    %v2446 = vld [vmem:[%s2434 + $0x58] sm:$0xff]
    %v2447 = vld [vmem:[%s2434 + $0x60] sm:$0xff]
    %v2448 = vld [vmem:[%s2434 + $0x68] sm:$0xff]
    %v2449 = vld [vmem:[%s2434 + $0x70] sm:$0xff]
    %v2450 = vld [vmem:[%s2434 + $0x78] sm:$0xff]
    %v2452 = vrot.slane %v2417, 2
    %2454 = vmatprep.subr.mxu0 0.0
    %2455 = vmatpush1.msra.mxu0 %v2450
    %2456 = vmatprep.subr.mxu0 0.0
    %2457 = vmatpush1.msra.mxu0 %v2449
    %2458 = vmatprep.subr.mxu0 0.0
    %2459 = vmatpush1.msra.mxu0 %v2448
    %2460 = vmatprep.subr.mxu0 0.0
    %2461 = vmatpush1.msra.mxu0 %v2447
    %2462 = vmatprep.subr.mxu0 0.0
    %2463 = vmatpush1.msra.mxu0 %v2446
    %2464 = vmatprep.subr.mxu0 0.0
    %2465 = vmatpush1.msra.mxu0 %v2445
    %2466 = vmatprep.subr.mxu0 0.0
    %2467 = vmatpush1.msra.mxu0 %v2444
    %2468 = vmatprep.subr.mxu0 0.0
    %2469 = vmatpush1.msra.mxu0 %v2443
    %2470 = vmatprep.subr.mxu0 0.0
    %2471 = vmatpush1.msra.mxu0 %v2442
    %2472 = vmatprep.subr.mxu0 0.0
    %2473 = vmatpush1.msra.mxu0 %v2441
    %2474 = vmatprep.subr.mxu0 0.0
    %2475 = vmatpush1.msra.mxu0 %v2440
    %2476 = vmatprep.subr.mxu0 0.0
    %2477 = vmatpush1.msra.mxu0 %v2439
    %2478 = vmatprep.subr.mxu0 0.0
    %2479 = vmatpush1.msra.mxu0 %v2438
    %2480 = vmatprep.subr.mxu0 0.0
    %2481 = vmatpush1.msra.mxu0 %v2437
    %2482 = vmatprep.subr.mxu0 0.0
    %2483 = vmatpush1.msra.mxu0 %v2436
    %2484 = vmatprep.subr.mxu0 0.0
    %2485 = vmatpush1.msra.mxu0 %v2435
    %2486 = vmatprep.subr.mxu0 0.0
    %2487 = vmatpush2.msra.mxu0 0.0
    %2488 = vmatprep.subr.mxu0 0.0
    %2489 = vmatpush2.msra.mxu0 0.0
    %2490 = vmatprep.subr.mxu0 0.0
    %2491 = vmatpush2.msra.mxu0 0.0
    %2492 = vmatprep.subr.mxu0 0.0
    %2493 = vmatpush2.msra.mxu0 0.0
    %2494 = vmatprep.subr.mxu0 0.0
    %2495 = vmatpush2.msra.mxu0 0.0
    %2496 = vmatprep.subr.mxu0 0.0
    %2497 = vmatpush2.msra.mxu0 0.0
    %2498 = vmatprep.subr.mxu0 0.0
    %2499 = vmatpush2.msra.mxu0 0.0
    %2500 = vmatprep.subr.mxu0 0.0
    %2501 = vmatpush2.msra.mxu0 0.0
    %2502 = vmatprep.subr.mxu0 0.0
    %2503 = vmatpush2.msra.mxu0 0.0
    %2504 = vmatprep.subr.mxu0 0.0
    %2505 = vmatpush2.msra.mxu0 0.0
    %2506 = vmatprep.subr.mxu0 0.0
    %2507 = vmatpush2.msra.mxu0 0.0
    %2508 = vmatprep.subr.mxu0 0.0
    %2509 = vmatpush2.msra.mxu0 0.0
    %2510 = vmatprep.subr.mxu0 0.0
    %2511 = vmatpush2.msra.mxu0 0.0
    %2512 = vmatprep.subr.mxu0 0.0
    %2513 = vmatpush2.msra.mxu0 0.0
    %2514 = vmatprep.subr.mxu0 0.0
    %2515 = vmatpush2.msra.mxu0 0.0
    %2516 = vmatprep.subr.mxu0 0.0
    %2517 = vmatpush2.msra.mxu0 0.0
    %2518 = vmatprep.mubr.f32.mxu0 0.0
    %2519 = vmatmul.mubr.f32.gmra.mxu0 %v2452
    %v2520 = vpop.f32.mrf.mxu0
    %v2521 = vadd.f32 0.0, %v2520
    %v2522 = vpop.f32.mrf.mxu0
    %2523 = vdwg.mxu0
    %2524 = vmatprep.subr.mxu0 0.0
    %2525 = vmatpush1.msra.mxu0 %v2433
    %2526 = vmatprep.subr.mxu0 0.0
    %2527 = vmatpush1.msra.mxu0 %v2432
    %2528 = vmatprep.subr.mxu0 0.0
    %2529 = vmatpush1.msra.mxu0 %v2431
    %2530 = vmatprep.subr.mxu0 0.0
    %2531 = vmatpush1.msra.mxu0 %v2430
    %2532 = vmatprep.subr.mxu0 0.0
    %2533 = vmatpush1.msra.mxu0 %v2429
    %2534 = vmatprep.subr.mxu0 0.0
    %2535 = vmatpush1.msra.mxu0 %v2428
    %2536 = vmatprep.subr.mxu0 0.0
    %2537 = vmatpush1.msra.mxu0 %v2427
    %2538 = vmatprep.subr.mxu0 0.0
    %2539 = vmatpush1.msra.mxu0 %v2426
    %2540 = vmatprep.subr.mxu0 0.0
    %2541 = vmatpush1.msra.mxu0 %v2425
    %2542 = vmatprep.subr.mxu0 0.0
    %2543 = vmatpush1.msra.mxu0 %v2424
    %2544 = vmatprep.subr.mxu0 0.0
    %2545 = vmatpush1.msra.mxu0 %v2423
    %2546 = vmatprep.subr.mxu0 0.0
    %2547 = vmatpush1.msra.mxu0 %v2422
    %2548 = vmatprep.subr.mxu0 0.0
    %2549 = vmatpush1.msra.mxu0 %v2421
    %2550 = vmatprep.subr.mxu0 0.0
    %2551 = vmatpush1.msra.mxu0 %v2420
    %2552 = vmatprep.subr.mxu0 0.0
    %2553 = vmatpush1.msra.mxu0 %v2419
    %2554 = vmatprep.subr.mxu0 0.0
    %2555 = vmatpush1.msra.mxu0 %v2418
    %2556 = vmatprep.subr.mxu0 0.0
    %2557 = vmatpush2.msra.mxu0 0.0
    %2558 = vmatprep.subr.mxu0 0.0
    %2559 = vmatpush2.msra.mxu0 0.0
    %2560 = vmatprep.subr.mxu0 0.0
    %2561 = vmatpush2.msra.mxu0 0.0
    %2562 = vmatprep.subr.mxu0 0.0
    %2563 = vmatpush2.msra.mxu0 0.0
    %2564 = vmatprep.subr.mxu0 0.0
    %2565 = vmatpush2.msra.mxu0 0.0
    %2566 = vmatprep.subr.mxu0 0.0
    %2567 = vmatpush2.msra.mxu0 0.0
    %2568 = vmatprep.subr.mxu0 0.0
    %2569 = vmatpush2.msra.mxu0 0.0
    %2570 = vmatprep.subr.mxu0 0.0
    %2571 = vmatpush2.msra.mxu0 0.0
    %2572 = vmatprep.subr.mxu0 0.0
    %2573 = vmatpush2.msra.mxu0 0.0
    %2574 = vmatprep.subr.mxu0 0.0
    %2575 = vmatpush2.msra.mxu0 0.0
    %2576 = vmatprep.subr.mxu0 0.0
    %2577 = vmatpush2.msra.mxu0 0.0
    %2578 = vmatprep.subr.mxu0 0.0
    %2579 = vmatpush2.msra.mxu0 0.0
    %2580 = vmatprep.subr.mxu0 0.0
    %2581 = vmatpush2.msra.mxu0 0.0
    %2582 = vmatprep.subr.mxu0 0.0
    %2583 = vmatpush2.msra.mxu0 0.0
    %2584 = vmatprep.subr.mxu0 0.0
    %2585 = vmatpush2.msra.mxu0 0.0
    %2586 = vmatprep.subr.mxu0 0.0
    %2587 = vmatpush2.msra.mxu0 0.0
    %2588 = vmatprep.mubr.f32.mxu0 0.0
    %2589 = vmatmul.mubr.f32.gmra.mxu0 %v2417
    %v2590 = vpop.f32.mrf.mxu0
    %v2591 = vadd.f32 %v2521, %v2590
    %v2592 = vpop.f32.mrf.mxu0
    %2593 = vdwg.mxu0
    %s2594 = scalar_lea.vmem %s5, 256
    %v2595 = vld [vmem:[%s2594] sm:$0xff]
    %v2596 = vld [vmem:[%s2594 + $0x8] sm:$0xff]
    %v2597 = vld [vmem:[%s2594 + $0x10] sm:$0xff]
    %v2598 = vld [vmem:[%s2594 + $0x18] sm:$0xff]
    %v2599 = vld [vmem:[%s2594 + $0x20] sm:$0xff]
    %v2600 = vld [vmem:[%s2594 + $0x28] sm:$0xff]
    %v2601 = vld [vmem:[%s2594 + $0x30] sm:$0xff]
    %v2602 = vld [vmem:[%s2594 + $0x38] sm:$0xff]
    %v2603 = vld [vmem:[%s2594 + $0x40] sm:$0xff]
    %v2604 = vld [vmem:[%s2594 + $0x48] sm:$0xff]
    %v2605 = vld [vmem:[%s2594 + $0x50] sm:$0xff]
    %v2606 = vld [vmem:[%s2594 + $0x58] sm:$0xff]
    %v2607 = vld [vmem:[%s2594 + $0x60] sm:$0xff]
    %v2608 = vld [vmem:[%s2594 + $0x68] sm:$0xff]
    %v2609 = vld [vmem:[%s2594 + $0x70] sm:$0xff]
    %v2610 = vld [vmem:[%s2594 + $0x78] sm:$0xff]
    %v2611 = vrot.slane %v2417, 4
    %2613 = vmatprep.subr.mxu0 0.0
    %2614 = vmatpush1.msra.mxu0 %v2610
    %2615 = vmatprep.subr.mxu0 0.0
    %2616 = vmatpush1.msra.mxu0 %v2609
    %2617 = vmatprep.subr.mxu0 0.0
    %2618 = vmatpush1.msra.mxu0 %v2608
    %2619 = vmatprep.subr.mxu0 0.0
    %2620 = vmatpush1.msra.mxu0 %v2607
    %2621 = vmatprep.subr.mxu0 0.0
    %2622 = vmatpush1.msra.mxu0 %v2606
    %2623 = vmatprep.subr.mxu0 0.0
    %2624 = vmatpush1.msra.mxu0 %v2605
    %2625 = vmatprep.subr.mxu0 0.0
    %2626 = vmatpush1.msra.mxu0 %v2604
    %2627 = vmatprep.subr.mxu0 0.0
    %2628 = vmatpush1.msra.mxu0 %v2603
    %2629 = vmatprep.subr.mxu0 0.0
    %2630 = vmatpush1.msra.mxu0 %v2602
    %2631 = vmatprep.subr.mxu0 0.0
    %2632 = vmatpush1.msra.mxu0 %v2601
    %2633 = vmatprep.subr.mxu0 0.0
    %2634 = vmatpush1.msra.mxu0 %v2600
    %2635 = vmatprep.subr.mxu0 0.0
    %2636 = vmatpush1.msra.mxu0 %v2599
    %2637 = vmatprep.subr.mxu0 0.0
    %2638 = vmatpush1.msra.mxu0 %v2598
    %2639 = vmatprep.subr.mxu0 0.0
    %2640 = vmatpush1.msra.mxu0 %v2597
    %2641 = vmatprep.subr.mxu0 0.0
    %2642 = vmatpush1.msra.mxu0 %v2596
    %2643 = vmatprep.subr.mxu0 0.0
    %2644 = vmatpush1.msra.mxu0 %v2595
    %2645 = vmatprep.subr.mxu0 0.0
    %2646 = vmatpush2.msra.mxu0 0.0
    %2647 = vmatprep.subr.mxu0 0.0
    %2648 = vmatpush2.msra.mxu0 0.0
    %2649 = vmatprep.subr.mxu0 0.0
    %2650 = vmatpush2.msra.mxu0 0.0
    %2651 = vmatprep.subr.mxu0 0.0
    %2652 = vmatpush2.msra.mxu0 0.0
    %2653 = vmatprep.subr.mxu0 0.0
    %2654 = vmatpush2.msra.mxu0 0.0
    %2655 = vmatprep.subr.mxu0 0.0
    %2656 = vmatpush2.msra.mxu0 0.0
    %2657 = vmatprep.subr.mxu0 0.0
    %2658 = vmatpush2.msra.mxu0 0.0
    %2659 = vmatprep.subr.mxu0 0.0
    %2660 = vmatpush2.msra.mxu0 0.0
    %2661 = vmatprep.subr.mxu0 0.0
    %2662 = vmatpush2.msra.mxu0 0.0
    %2663 = vmatprep.subr.mxu0 0.0
    %2664 = vmatpush2.msra.mxu0 0.0
    %2665 = vmatprep.subr.mxu0 0.0
    %2666 = vmatpush2.msra.mxu0 0.0
    %2667 = vmatprep.subr.mxu0 0.0
    %2668 = vmatpush2.msra.mxu0 0.0
    %2669 = vmatprep.subr.mxu0 0.0
    %2670 = vmatpush2.msra.mxu0 0.0
    %2671 = vmatprep.subr.mxu0 0.0
    %2672 = vmatpush2.msra.mxu0 0.0
    %2673 = vmatprep.subr.mxu0 0.0
    %2674 = vmatpush2.msra.mxu0 0.0
    %2675 = vmatprep.subr.mxu0 0.0
    %2676 = vmatpush2.msra.mxu0 0.0
    %2677 = vmatprep.mubr.f32.mxu0 0.0
    %2678 = vmatmul.mubr.f32.gmra.mxu0 %v2611
    %v2679 = vpop.f32.mrf.mxu0
    %v2680 = vadd.f32 0.0, %v2679
    %v2681 = vpop.f32.mrf.mxu0
    %2682 = vdwg.mxu0
    %v2683 = vadd.f32 %v2591, %v2680
    %s2684 = scalar_lea.vmem %s5, 384
    %v2685 = vld [vmem:[%s2684] sm:$0xff]
    %v2686 = vld [vmem:[%s2684 + $0x8] sm:$0xff]
    %v2687 = vld [vmem:[%s2684 + $0x10] sm:$0xff]
    %v2688 = vld [vmem:[%s2684 + $0x18] sm:$0xff]
    %v2689 = vld [vmem:[%s2684 + $0x20] sm:$0xff]
    %v2690 = vld [vmem:[%s2684 + $0x28] sm:$0xff]
    %v2691 = vld [vmem:[%s2684 + $0x30] sm:$0xff]
    %v2692 = vld [vmem:[%s2684 + $0x38] sm:$0xff]
    %v2693 = vld [vmem:[%s2684 + $0x40] sm:$0xff]
    %v2694 = vld [vmem:[%s2684 + $0x48] sm:$0xff]
    %v2695 = vld [vmem:[%s2684 + $0x50] sm:$0xff]
    %v2696 = vld [vmem:[%s2684 + $0x58] sm:$0xff]
    %v2697 = vld [vmem:[%s2684 + $0x60] sm:$0xff]
    %v2698 = vld [vmem:[%s2684 + $0x68] sm:$0xff]
    %v2699 = vld [vmem:[%s2684 + $0x70] sm:$0xff]
    %v2700 = vld [vmem:[%s2684 + $0x78] sm:$0xff]
    %v2701 = vrot.slane %v2417, 6
    %2703 = vmatprep.subr.mxu0 0.0
    %2704 = vmatpush1.msra.mxu0 %v2700
    %2705 = vmatprep.subr.mxu0 0.0
    %2706 = vmatpush1.msra.mxu0 %v2699
    %2707 = vmatprep.subr.mxu0 0.0
    %2708 = vmatpush1.msra.mxu0 %v2698
    %2709 = vmatprep.subr.mxu0 0.0
    %2710 = vmatpush1.msra.mxu0 %v2697
    %2711 = vmatprep.subr.mxu0 0.0
    %2712 = vmatpush1.msra.mxu0 %v2696
    %2713 = vmatprep.subr.mxu0 0.0
    %2714 = vmatpush1.msra.mxu0 %v2695
    %2715 = vmatprep.subr.mxu0 0.0
    %2716 = vmatpush1.msra.mxu0 %v2694
    %2717 = vmatprep.subr.mxu0 0.0
    %2718 = vmatpush1.msra.mxu0 %v2693
    %2719 = vmatprep.subr.mxu0 0.0
    %2720 = vmatpush1.msra.mxu0 %v2692
    %2721 = vmatprep.subr.mxu0 0.0
    %2722 = vmatpush1.msra.mxu0 %v2691
    %2723 = vmatprep.subr.mxu0 0.0
    %2724 = vmatpush1.msra.mxu0 %v2690
    %2725 = vmatprep.subr.mxu0 0.0
    %2726 = vmatpush1.msra.mxu0 %v2689
    %2727 = vmatprep.subr.mxu0 0.0
    %2728 = vmatpush1.msra.mxu0 %v2688
    %2729 = vmatprep.subr.mxu0 0.0
    %2730 = vmatpush1.msra.mxu0 %v2687
    %2731 = vmatprep.subr.mxu0 0.0
    %2732 = vmatpush1.msra.mxu0 %v2686
    %2733 = vmatprep.subr.mxu0 0.0
    %2734 = vmatpush1.msra.mxu0 %v2685
    %2735 = vmatprep.subr.mxu0 0.0
    %2736 = vmatpush2.msra.mxu0 0.0
    %2737 = vmatprep.subr.mxu0 0.0
    %2738 = vmatpush2.msra.mxu0 0.0
    %2739 = vmatprep.subr.mxu0 0.0
    %2740 = vmatpush2.msra.mxu0 0.0
    %2741 = vmatprep.subr.mxu0 0.0
    %2742 = vmatpush2.msra.mxu0 0.0
    %2743 = vmatprep.subr.mxu0 0.0
    %2744 = vmatpush2.msra.mxu0 0.0
    %2745 = vmatprep.subr.mxu0 0.0
    %2746 = vmatpush2.msra.mxu0 0.0
    %2747 = vmatprep.subr.mxu0 0.0
    %2748 = vmatpush2.msra.mxu0 0.0
    %2749 = vmatprep.subr.mxu0 0.0
    %2750 = vmatpush2.msra.mxu0 0.0
    %2751 = vmatprep.subr.mxu0 0.0
    %2752 = vmatpush2.msra.mxu0 0.0
    %2753 = vmatprep.subr.mxu0 0.0
    %2754 = vmatpush2.msra.mxu0 0.0
    %2755 = vmatprep.subr.mxu0 0.0
    %2756 = vmatpush2.msra.mxu0 0.0
    %2757 = vmatprep.subr.mxu0 0.0
    %2758 = vmatpush2.msra.mxu0 0.0
    %2759 = vmatprep.subr.mxu0 0.0
    %2760 = vmatpush2.msra.mxu0 0.0
    %2761 = vmatprep.subr.mxu0 0.0
    %2762 = vmatpush2.msra.mxu0 0.0
    %2763 = vmatprep.subr.mxu0 0.0
    %2764 = vmatpush2.msra.mxu0 0.0
    %2765 = vmatprep.subr.mxu0 0.0
    %2766 = vmatpush2.msra.mxu0 0.0
    %2767 = vmatprep.mubr.f32.mxu0 0.0
    %2768 = vmatmul.mubr.f32.gmra.mxu0 %v2701
    %v2769 = vpop.f32.mrf.mxu0
    %v2770 = vadd.f32 0.0, %v2769
    %v2771 = vpop.f32.mrf.mxu0
    %2772 = vdwg.mxu0
    %v2773 = vadd.f32 %v2683, %v2770
    %v2774 = vld [vmem:[%s6] sm:$0x1]
    %v2776 = vlaneseq
    %v2777 = vshrl.u32 %v2776, 7
    %v2778 = vsub.s32 0, %v2777
    %v2779 = vrot.slane %v2774, %v2778
    %v2781 = vadd.f32 %v2773, %v2779
    %vm2782 = vcmask 9216
    %2783 = vst.msk [vmem:[#allocation2] sm:$0x3] %vm2782, %v2781
    // Predicated region
    $region30: #{selfnet_forward_pallas.1} parent=1 // pred_check
      _
    $region31: #{selfnet_forward_pallas.1} parent=1 // pred_check_branch
      %2785 = sbr.rel (0) target = $region33
    $region32: #{selfnet_forward_pallas.1} parent=1 // pred_region
      %s2787 = ssub.s32 32, 32
      %2788 = vsyncadd [#allocation3], %s2787
      %s2790 = sshll.u32 [#allocation2], 4
      %s2791 = int_to_ptr.vmem [resolvable:$true] %s2790
      %2793 = dma.vmem_to_hbm [thread:$0]  %s2791, 32, %s7, [#allocation3]
    $region33: #{selfnet_forward_pallas.1} parent=1 // pred_fallthru
      _
    // Predicated region
    $region34: #{selfnet_forward_pallas.1} parent=1 // pred_check
      _
    $region35: #{selfnet_forward_pallas.1} parent=1 // pred_check_branch
      %2795 = sbr.rel (0) target = $region37
    $region36: #{selfnet_forward_pallas.1} parent=1 // pred_region
      %2796 = dma.done [#allocation3], 32
    $region37: #{selfnet_forward_pallas.1} parent=1 // pred_fallthru
      _
    %2797 = vsyncpa [#allocation3], 1

</llo_original>
